<compile_context>
chip_gen: v7x
topology: tpu7x:2x2x1
jax: 0.10.0
libtpu: 0.0.40
codegen_flags: <defaults>
</compile_context>

<pallas_src>
import jax
import jax.numpy as jnp
from jax.experimental import pallas as pl
from jax.experimental.pallas import tpu as pltpu

NUM_GOALS = 16


def _goal_mlp_kernel(goal_ref, x_ref, w1_ref, b1_ref, w2_ref, b2_ref,
                     fold_ref, out_ref):
    x = x_ref[...]                                             # (TB, F)

    # Fused layer 1: every goal's policy & value first Linear in one dot.
    h1 = jnp.tanh(
        jnp.dot(x, w1_ref[...], preferred_element_type=jnp.float32)
        + b1_ref[...])                                         # (TB, 16*2*H1)

    # Fused layer 2: block-diagonal weights (per-goal, per-branch blocks).
    h2 = jnp.tanh(
        jnp.dot(h1, w2_ref[...], preferred_element_type=jnp.float32)
        + b2_ref[...])                                         # (TB, 16*2*H2)

    tb, c2 = h2.shape
    two_h2 = c2 // NUM_GOALS

    # Per-row goal selection: keep only the lanes of this row's goal block.
    col = jax.lax.broadcasted_iota(jnp.int32, (tb, c2), 1)
    lo = goal_ref[...] * two_h2                                # (TB, 1)
    mask = (col >= lo) & (col < lo + two_h2)
    masked = jnp.where(mask, h2, 0.0)

    # Fold the 16 goal blocks onto one lane-dense (TB, P>=128) slab with a
    # single MXU push against an exact 0/1 matrix (fold[g*2H2 + j, j] = 1).
    out_ref[...] = jnp.dot(masked, fold_ref[...],
                           preferred_element_type=jnp.float32)


def pack_params(params):
    """Pack stacked per-goal params into the fused layout used by the kernel."""
    wp1, bp1, wp2, bp2 = params["wp1"], params["bp1"], params["wp2"], params["bp2"]
    wv1, bv1, wv2, bv2 = params["wv1"], params["bv1"], params["wv2"], params["bv2"]
    g, f, h1 = wp1.shape
    h2 = wp2.shape[2]
    two_h1, two_h2 = 2 * h1, 2 * h2

    # Layer 1: (F, G*2*H1), per goal [policy H1 | value H1].
    w1 = jnp.concatenate([wp1, wv1], axis=2)                   # (G, F, 2H1)
    w1 = jnp.transpose(w1, (1, 0, 2)).reshape(f, g * two_h1)
    b1 = jnp.concatenate([bp1, bv1], axis=1).reshape(1, g * two_h1)

    # Layer 2: block-diagonal (G*2*H1, G*2*H2); each goal block is itself
    # block-diag of [policy W2, value W2].
    z = jnp.zeros((g, h1, h2), wp2.dtype)
    blk = jnp.concatenate(
        [jnp.concatenate([wp2, z], axis=2),
         jnp.concatenate([z, wv2], axis=2)], axis=1)           # (G, 2H1, 2H2)
    eye_g = jnp.eye(g, dtype=wp2.dtype)[:, :, None, None]      # (G, G, 1, 1)
    w2 = eye_g * blk[:, None, :, :]                            # (G, G, 2H1, 2H2)
    w2 = jnp.transpose(w2, (0, 2, 1, 3)).reshape(g * two_h1, g * two_h2)
    b2 = jnp.concatenate([bp2, bv2], axis=1).reshape(1, g * two_h2)

    # Fold matrix: (G*2*H2, P) with fold[g*2H2 + j, j] = 1.  P is a multiple
    # of 128 so the kernel output slab is lane-dense.
    p = max(128, -(-two_h2 // 128) * 128)
    fold = jnp.tile(jnp.eye(two_h2, p, dtype=jnp.float32), (g, 1))

    return dict(w1=w1, b1=b1, w2=w2, b2=b2, fold=fold)


def goal_mlp_extractor(features, goal, packed, *, batch_tile=512):
    """features: [B, F] f32; goal: [B, 1] int32; packed: output of pack_params."""
    B, F = features.shape
    w1, b1, w2, b2, fold = (packed["w1"], packed["b1"], packed["w2"],
                            packed["b2"], packed["fold"])
    C1 = w1.shape[1]
    C2 = w2.shape[1]
    P = fold.shape[1]
    two_h2 = C2 // NUM_GOALS
    H2 = two_h2 // 2

    # Single grid step for small batches; batch-parallel tiles for large B
    # (megacore sharding on v7x).  Tiles must divide B; else fall back.
    TB = batch_tile if (B > batch_tile and B % batch_tile == 0) else B
    grid = (B // TB,)

    in_specs = [
        pl.BlockSpec((TB, 1), lambda i: (i, 0)),    # goal ids
        pl.BlockSpec((TB, F), lambda i: (i, 0)),    # features
        pl.BlockSpec((F, C1), lambda i: (0, 0)),    # fused layer-1 weights
        pl.BlockSpec((1, C1), lambda i: (0, 0)),    # fused layer-1 bias
        pl.BlockSpec((C1, C2), lambda i: (0, 0)),   # block-diag layer-2 weights
        pl.BlockSpec((1, C2), lambda i: (0, 0)),    # fused layer-2 bias
        pl.BlockSpec((C2, P), lambda i: (0, 0)),    # fold / routing matrix
    ]
    out_specs = pl.BlockSpec((TB, P), lambda i: (i, 0))

    out = pl.pallas_call(
        _goal_mlp_kernel,
        out_shape=jax.ShapeDtypeStruct((B, P), jnp.float32),
        grid=grid,
        in_specs=in_specs,
        out_specs=out_specs,
        compiler_params=pltpu.CompilerParams(
            dimension_semantics=("parallel",),
            vmem_limit_bytes=32 * 1024 * 1024),
    )(goal, features, w1, b1, w2, b2, fold)

    # Lane-dense slab -> (latent_pi, latent_vf); pad lanes beyond 2*H2 are 0.
    return out[:, :H2], out[:, H2:two_h2]


def init_params(key, feature_dim, net_arch):
    """Deterministic init of 16 stacked policy/value 2-layer MLPs."""
    h1, h2 = net_arch
    keys = jax.random.split(key, 8)

    def u(k, shape, fan_in):
        bound = 1.0 / jnp.sqrt(fan_in)
        return jax.random.uniform(k, shape, jnp.float32, -bound, bound)

    return dict(
        wp1=u(keys[0], (NUM_GOALS, feature_dim, h1), feature_dim),
        bp1=u(keys[1], (NUM_GOALS, h1), feature_dim),
        wp2=u(keys[2], (NUM_GOALS, h1, h2), h1),
        bp2=u(keys[3], (NUM_GOALS, h2), h1),
        wv1=u(keys[4], (NUM_GOALS, feature_dim, h1), feature_dim),
        bv1=u(keys[5], (NUM_GOALS, h1), feature_dim),
        wv2=u(keys[6], (NUM_GOALS, h1, h2), h1),
        bv2=u(keys[7], (NUM_GOALS, h2), h1),
    )


def reference(features, goal, params):
    """Plain-JAX reference identical to the PyTorch routing (2D goal path)."""
    g = goal[:, 0]

    def net(x, w1, b1, w2, b2):
        h = jnp.tanh(x @ w1 + b1)
        return jnp.tanh(h @ w2 + b2)

    pi_all = jax.vmap(lambda w1, b1, w2, b2: net(features, w1, b1, w2, b2))(
        params["wp1"], params["bp1"], params["wp2"], params["bp2"])  # (16, B, H)
    vf_all = jax.vmap(lambda w1, b1, w2, b2: net(features, w1, b1, w2, b2))(
        params["wv1"], params["bv1"], params["wv2"], params["bv2"])
    idx = jnp.arange(features.shape[0])
    return pi_all[g, idx], vf_all[g, idx]


# TODO(synk): the 0-d (scalar int) goal path of forward_actor/forward_critic and
# arbitrary-depth / dict net_arch are not implemented; fixed 2-layer Tanh MLPs.

if __name__ == "__main__":
    key = jax.random.PRNGKey(0)
    k_feat, k_goal, k_param = jax.random.split(key, 3)

    batch = 8
    feature_dim = 32
    net_arch = [32, 32]   # pi == vf arch (list form of net_arch)

    features = jax.random.normal(k_feat, (batch, feature_dim), jnp.float32)
    goal = jax.random.randint(k_goal, (batch, 1), 0, NUM_GOALS, jnp.int32)
    params = init_params(k_param, feature_dim, net_arch)
    packed = pack_params(params)

    latent_pi, latent_vf = goal_mlp_extractor(features, goal, packed)
    jax.block_until_ready((latent_pi, latent_vf))

    ref_pi, ref_vf = reference(features, goal, params)
    assert jnp.allclose(latent_pi, ref_pi, atol=1e-5), "policy mismatch"
    assert jnp.allclose(latent_vf, ref_vf, atol=1e-5), "value mismatch"

    print("KERNEL_OK")
</pallas_src>

<mosaic_0001>
module attributes {stable_mosaic.version = 11 : i64} {
  func.func @_goal_mlp_kernel(%arg0: i32, %arg1: memref<8x1xi32, #tpu.memory_space<vmem>>, %arg2: memref<8x32xf32, #tpu.memory_space<vmem>>, %arg3: memref<32x1024xf32, #tpu.memory_space<vmem>>, %arg4: memref<1x1024xf32, #tpu.memory_space<vmem>>, %arg5: memref<1024x1024xf32, #tpu.memory_space<vmem>>, %arg6: memref<1x1024xf32, #tpu.memory_space<vmem>>, %arg7: memref<1024x128xf32, #tpu.memory_space<vmem>>, %arg8: memref<8x128xf32, #tpu.memory_space<vmem>>) attributes {dimension_semantics = [#tpu.dimension_semantics<parallel>], iteration_bounds = array<i64: 1>, scalar_prefetch = 0 : i64, scratch_operands = 0 : i64, tpu.core_type = #tpu.core_type<tc>, window_params = [{transform_indices = @transform_0, window_bounds = array<i64: 8, 1>}, {transform_indices = @transform_1, window_bounds = array<i64: 8, 32>}, {pipeline_mode = #tpu.pipeline_mode<synchronous>, transform_indices = @transform_2, window_bounds = array<i64: 32, 1024>}, {pipeline_mode = #tpu.pipeline_mode<synchronous>, transform_indices = @transform_3, window_bounds = array<i64: 1, 1024>}, {pipeline_mode = #tpu.pipeline_mode<synchronous>, transform_indices = @transform_4, window_bounds = array<i64: 1024, 1024>}, {pipeline_mode = #tpu.pipeline_mode<synchronous>, transform_indices = @transform_5, window_bounds = array<i64: 1, 1024>}, {pipeline_mode = #tpu.pipeline_mode<synchronous>, transform_indices = @transform_6, window_bounds = array<i64: 1024, 128>}, {transform_indices = @transform_7, window_bounds = array<i64: 8, 128>}]} {
    %c0 = arith.constant 0 : index
    %c0_0 = arith.constant 0 : index
    %0 = vector.load %arg2[%c0, %c0_0] : memref<8x32xf32, #tpu.memory_space<vmem>>, vector<8x32xf32>
    %c0_1 = arith.constant 0 : index
    %c0_2 = arith.constant 0 : index
    %1 = vector.load %arg3[%c0_1, %c0_2] : memref<32x1024xf32, #tpu.memory_space<vmem>>, vector<32x1024xf32>
    %cst = arith.constant dense<0.000000e+00> : vector<8x1024xf32>
    %2 = tpu.matmul %0, %1, %cst {dimension_numbers = #tpu.dot_dimension_numbers<[1], [0], [0], [1], [0, 0, 1, 1], [], []>} : vector<8x32xf32>, vector<32x1024xf32>, vector<8x1024xf32> -> vector<8x1024xf32>
    %c0_3 = arith.constant 0 : index
    %c0_4 = arith.constant 0 : index
    %3 = vector.load %arg4[%c0_3, %c0_4] : memref<1x1024xf32, #tpu.memory_space<vmem>>, vector<1x1024xf32>
    %4 = vector.broadcast %3 : vector<1x1024xf32> to vector<8x1024xf32>
    %5 = arith.addf %2, %4 : vector<8x1024xf32>
    %6 = math.tanh %5 : vector<8x1024xf32>
    %c0_5 = arith.constant 0 : index
    %c0_6 = arith.constant 0 : index
    %7 = vector.load %arg5[%c0_5, %c0_6] : memref<1024x1024xf32, #tpu.memory_space<vmem>>, vector<1024x1024xf32>
    %cst_7 = arith.constant dense<0.000000e+00> : vector<8x1024xf32>
    %8 = tpu.matmul %6, %7, %cst_7 {dimension_numbers = #tpu.dot_dimension_numbers<[1], [0], [0], [1], [0, 0, 1, 1], [], []>} : vector<8x1024xf32>, vector<1024x1024xf32>, vector<8x1024xf32> -> vector<8x1024xf32>
    %c0_8 = arith.constant 0 : index
    %c0_9 = arith.constant 0 : index
    %9 = vector.load %arg6[%c0_8, %c0_9] : memref<1x1024xf32, #tpu.memory_space<vmem>>, vector<1x1024xf32>
    %10 = vector.broadcast %9 : vector<1x1024xf32> to vector<8x1024xf32>
    %11 = arith.addf %8, %10 : vector<8x1024xf32>
    %12 = math.tanh %11 : vector<8x1024xf32>
    %13 = tpu.iota {dimensions = array<i32: 1>} : vector<8x1024xi32>
    %c0_10 = arith.constant 0 : index
    %c0_11 = arith.constant 0 : index
    %14 = vector.load %arg1[%c0_10, %c0_11] : memref<8x1xi32, #tpu.memory_space<vmem>>, vector<8x1xi32>
    %c64_i32 = arith.constant 64 : i32
    %15 = vector.broadcast %c64_i32 : i32 to vector<8x1xi32>
    %16 = arith.muli %14, %15 : vector<8x1xi32>
    %17 = vector.broadcast %16 : vector<8x1xi32> to vector<8x1024xi32>
    %18 = arith.cmpi sge, %13, %17 : vector<8x1024xi32>
    %c64_i32_12 = arith.constant 64 : i32
    %19 = vector.broadcast %c64_i32_12 : i32 to vector<8x1xi32>
    %20 = arith.addi %16, %19 : vector<8x1xi32>
    %21 = vector.broadcast %20 : vector<8x1xi32> to vector<8x1024xi32>
    %22 = arith.cmpi slt, %13, %21 : vector<8x1024xi32>
    %23 = arith.andi %18, %22 : vector<8x1024xi1>
    %cst_13 = arith.constant 0.000000e+00 : f32
    %24 = vector.broadcast %cst_13 : f32 to vector<8x1024xf32>
    %25 = arith.select %23, %12, %24 : vector<8x1024xi1>, vector<8x1024xf32>
    %c0_14 = arith.constant 0 : index
    %c0_15 = arith.constant 0 : index
    %26 = vector.load %arg7[%c0_14, %c0_15] : memref<1024x128xf32, #tpu.memory_space<vmem>>, vector<1024x128xf32>
    %cst_16 = arith.constant dense<0.000000e+00> : vector<8x128xf32>
    %27 = tpu.matmul %25, %26, %cst_16 {dimension_numbers = #tpu.dot_dimension_numbers<[1], [0], [0], [1], [0, 0, 1, 1], [], []>} : vector<8x1024xf32>, vector<1024x128xf32>, vector<8x128xf32> -> vector<8x128xf32>
    %c0_17 = arith.constant 0 : index
    %c0_18 = arith.constant 0 : index
    %28 = vector.load %arg8[%c0_17, %c0_18] : memref<8x128xf32, #tpu.memory_space<vmem>>, vector<8x128xf32>
    tpu.vector_store %arg8[%c0_17, %c0_18], %27 {strides = array<i32>} : memref<8x128xf32, #tpu.memory_space<vmem>>, vector<8x128xf32>,
    return
  }
  func.func @transform_0(%arg0: i32) -> (i32, i32) {
    %c0_i32 = arith.constant 0 : i32
    %c0_i32_0 = arith.constant 0 : i32
    return %arg0, %c0_i32 : i32, i32
  }
  func.func @transform_1(%arg0: i32) -> (i32, i32) {
    %c0_i32 = arith.constant 0 : i32
    %c0_i32_0 = arith.constant 0 : i32
    return %arg0, %c0_i32 : i32, i32
  }
  func.func @transform_2(%arg0: i32) -> (i32, i32) {
    %c0_i32 = arith.constant 0 : i32
    %c0_i32_0 = arith.constant 0 : i32
    %c0_i32_1 = arith.constant 0 : i32
    return %c0_i32, %c0_i32_0 : i32, i32
  }
  func.func @transform_3(%arg0: i32) -> (i32, i32) {
    %c0_i32 = arith.constant 0 : i32
    %c0_i32_0 = arith.constant 0 : i32
    %c0_i32_1 = arith.constant 0 : i32
    return %c0_i32, %c0_i32_0 : i32, i32
  }
  func.func @transform_4(%arg0: i32) -> (i32, i32) {
    %c0_i32 = arith.constant 0 : i32
    %c0_i32_0 = arith.constant 0 : i32
    %c0_i32_1 = arith.constant 0 : i32
    return %c0_i32, %c0_i32_0 : i32, i32
  }
  func.func @transform_5(%arg0: i32) -> (i32, i32) {
    %c0_i32 = arith.constant 0 : i32
    %c0_i32_0 = arith.constant 0 : i32
    %c0_i32_1 = arith.constant 0 : i32
    return %c0_i32, %c0_i32_0 : i32, i32
  }
  func.func @transform_6(%arg0: i32) -> (i32, i32) {
    %c0_i32 = arith.constant 0 : i32
    %c0_i32_0 = arith.constant 0 : i32
    %c0_i32_1 = arith.constant 0 : i32
    return %c0_i32, %c0_i32_0 : i32, i32
  }
  func.func @transform_7(%arg0: i32) -> (i32, i32) {
    %c0_i32 = arith.constant 0 : i32
    %c0_i32_0 = arith.constant 0 : i32
    return %arg0, %c0_i32 : i32, i32
  }
}

</mosaic_0001>

<llo_original>
// kernel: tpu_custom_call.1
$region0: #{tpu_custom_call.1}
  #allocation0 [shape = 'u32[]', space=smem, size = 0x4, offset = 0x4, fixed_abs, tag = 'smem constant byte address 0x4 - core index']
  #allocation1 [shape = 'u32[144,128]{1,0:T(1,128)}', space=vmem, size = 0x12000, scoped, tag = 'internal scratch']
  %s0 = inlined_call_operand.vmem [shape: s32[8,1], index: 0, kind: input, shape index: {}]
  %s1 = inlined_call_operand.hbm [shape: f32[8,32], index: 1, kind: input, shape index: {}]
  %s2 = inlined_call_operand.hbm [shape: f32[32,1024], index: 2, kind: input, shape index: {}]
  %s3 = inlined_call_operand.hbm [shape: f32[1,1024], index: 3, kind: input, shape index: {}]
  %s4 = inlined_call_operand.hbm [shape: f32[1024,1024], index: 4, kind: input, shape index: {}]
  %s5 = inlined_call_operand.hbm [shape: f32[1,1024], index: 5, kind: input, shape index: {}]
  %s6 = inlined_call_operand.hbm [shape: f32[1024,128], index: 6, kind: input, shape index: {}]
  %s7 = inlined_call_operand.hbm [shape: f32[8,128], index: 7, kind: output, shape index: {}]
  %s8 = sld [smem:[#allocation0]]
  $region62: #{tpu_custom_call.1} parent=0
    _
  %s10 = ssub.s32 1, %s8
  %s11 = scalar_select 0, %s10, %s8
  $region1: #{tpu_custom_call.1} parent=0
    #allocation2 [shape = 'u8[4096]{0}', space=vmem, size = 0x1000, scoped, tag = 'input window, operand 1, single buffered']
    #allocation3 [shape = 's32[1]{0}', space=sflag, size = 0x4, scoped, tag = 'scoped memory for tpu_custom_call.1']
    #allocation4 [shape = 's32[1]{0}', space=sflag, size = 0x4, scoped, tag = 'scoped memory for tpu_custom_call.1']
    #allocation5 [shape = 'u8[131072]{0}', space=vmem, size = 0x20000, scoped, tag = 'input window, operand 2, single buffered']
    #allocation6 [shape = 's32[1]{0}', space=sflag, size = 0x4, scoped, tag = 'scoped memory for tpu_custom_call.1']
    #allocation7 [shape = 'u8[4096]{0}', space=vmem, size = 0x1000, scoped, tag = 'input window, operand 3, single buffered']
    #allocation8 [shape = 'u8[4194304]{0}', space=vmem, size = 0x400000, scoped, tag = 'input window, operand 4, single buffered']
    #allocation9 [shape = 's32[1]{0}', space=sflag, size = 0x4, scoped, tag = 'scoped memory for tpu_custom_call.1']
    #allocation10 [shape = 'u8[4096]{0}', space=vmem, size = 0x1000, scoped, tag = 'input window, operand 5, single buffered']
    #allocation11 [shape = 'u8[524288]{0}', space=vmem, size = 0x80000, scoped, tag = 'input window, operand 6, single buffered']
    #allocation12 [shape = 's32[1]{0}', space=sflag, size = 0x4, scoped, tag = 'scoped memory for tpu_custom_call.1']
    #allocation13 [shape = 'u8[4096]{0}', space=vmem, size = 0x1000, scoped, tag = 'output window, operand 0, single buffered']
    %12 = vsyncpa [#allocation3], 0
    %13 = vsyncpa [#allocation6], 0
    %14 = vsyncpa [#allocation9], 0
    %15 = vsyncpa [#allocation12], 0
    %16 = vsyncpa [#allocation4], 0
    // Predicated region
    $region2: #{tpu_custom_call.1} parent=1 // pred_check
      _
    $region3: #{tpu_custom_call.1} parent=1 // pred_check_branch
      %18 = sbr.rel (0) target = $region5
    $region4: #{tpu_custom_call.1} parent=1 // pred_region
      _
    $region5: #{tpu_custom_call.1} parent=1 // pred_fallthru
      _
    // Predicated region
    $region6: #{tpu_custom_call.1} parent=1 // pred_check
      _
    $region7: #{tpu_custom_call.1} parent=1 // pred_check_branch
      %20 = sbr.rel (0) target = $region9
    $region8: #{tpu_custom_call.1} parent=1 // pred_region
      %s22 = ssub.s32 128, 128
      %23 = vsyncadd [#allocation3], %s22
      %s25 = sshll.u32 [#allocation2], 4
      %s26 = int_to_ptr.vmem [resolvable:$true] %s25
      %28 = dma.hbm_to_vmem [thread:$0]  %s1, 128, %s26, [#allocation3]
    $region9: #{tpu_custom_call.1} parent=1 // pred_fallthru
      _
    // Predicated region
    $region10: #{tpu_custom_call.1} parent=1 // pred_check
      _
    $region11: #{tpu_custom_call.1} parent=1 // pred_check_branch
      %30 = sbr.rel (0) target = $region13
    $region12: #{tpu_custom_call.1} parent=1 // pred_region
      %s32 = ssub.s32 4096, 4096
      %33 = vsyncadd [#allocation6], %s32
      %s34 = sshll.u32 [#allocation5], 4
      %s35 = int_to_ptr.vmem [resolvable:$true] %s34
      %40 = dma.hbm_to_vmem [thread:$0]  %s2, 4096, %s35, [#allocation6], 1024, 1024, 64
    $region13: #{tpu_custom_call.1} parent=1 // pred_fallthru
      _
    // Predicated region
    $region14: #{tpu_custom_call.1} parent=1 // pred_check
      _
    $region15: #{tpu_custom_call.1} parent=1 // pred_check_branch
      %42 = sbr.rel (0) target = $region17
    $region16: #{tpu_custom_call.1} parent=1 // pred_region
      %s44 = ssub.s32 128, 128
      %45 = vsyncadd [#allocation6], %s44
      %s47 = sshll.u32 [#allocation7], 4
      %s48 = int_to_ptr.vmem [resolvable:$true] %s47
      %50 = dma.hbm_to_vmem [thread:$0]  %s3, 128, %s48, [#allocation6]
    $region17: #{tpu_custom_call.1} parent=1 // pred_fallthru
      _
    // Predicated region
    $region18: #{tpu_custom_call.1} parent=1 // pred_check
      _
    $region19: #{tpu_custom_call.1} parent=1 // pred_check_branch
      %52 = sbr.rel (0) target = $region21
    $region20: #{tpu_custom_call.1} parent=1 // pred_region
      %s54 = ssub.s32 131072, 131072
      %55 = vsyncadd [#allocation9], %s54
      %s56 = sshll.u32 [#allocation8], 4
      %s57 = int_to_ptr.vmem [resolvable:$true] %s56
      %62 = dma.hbm_to_vmem [thread:$0]  %s4, 131072, %s57, [#allocation9], 1024, 1024, 64
    $region21: #{tpu_custom_call.1} parent=1 // pred_fallthru
      _
    // Predicated region
    $region22: #{tpu_custom_call.1} parent=1 // pred_check
      _
    $region23: #{tpu_custom_call.1} parent=1 // pred_check_branch
      %64 = sbr.rel (0) target = $region25
    $region24: #{tpu_custom_call.1} parent=1 // pred_region
      %s66 = ssub.s32 128, 128
      %67 = vsyncadd [#allocation9], %s66
      %s69 = sshll.u32 [#allocation10], 4
      %s70 = int_to_ptr.vmem [resolvable:$true] %s69
      %72 = dma.hbm_to_vmem [thread:$0]  %s5, 128, %s70, [#allocation9]
    $region25: #{tpu_custom_call.1} parent=1 // pred_fallthru
      _
    // Predicated region
    $region26: #{tpu_custom_call.1} parent=1 // pred_check
      _
    $region27: #{tpu_custom_call.1} parent=1 // pred_check_branch
      %74 = sbr.rel (0) target = $region29
    $region28: #{tpu_custom_call.1} parent=1 // pred_region
      %s76 = ssub.s32 16384, 16384
      %77 = vsyncadd [#allocation12], %s76
      %s78 = sshll.u32 [#allocation11], 4
      %s79 = int_to_ptr.vmem [resolvable:$true] %s78
      %84 = dma.hbm_to_vmem [thread:$0]  %s6, 16384, %s79, [#allocation12], 128, 128, 8
    $region29: #{tpu_custom_call.1} parent=1 // pred_fallthru
      _
    // Predicated region
    $region30: #{tpu_custom_call.1} parent=1 // pred_check
      _
    $region31: #{tpu_custom_call.1} parent=1 // pred_check_branch
      %86 = sbr.rel (0) target = $region33
    $region32: #{tpu_custom_call.1} parent=1 // pred_region
      %87 = dma.done [#allocation3], 128
    $region33: #{tpu_custom_call.1} parent=1 // pred_fallthru
      _
    // Predicated region
    $region34: #{tpu_custom_call.1} parent=1 // pred_check
      _
    $region35: #{tpu_custom_call.1} parent=1 // pred_check_branch
      %89 = sbr.rel (0) target = $region37
    $region36: #{tpu_custom_call.1} parent=1 // pred_region
      %90 = dma.done [#allocation6], 4096
    $region37: #{tpu_custom_call.1} parent=1 // pred_fallthru
      _
    // Predicated region
    $region38: #{tpu_custom_call.1} parent=1 // pred_check
      _
    $region39: #{tpu_custom_call.1} parent=1 // pred_check_branch
      %92 = sbr.rel (0) target = $region41
    $region40: #{tpu_custom_call.1} parent=1 // pred_region
      %93 = dma.done [#allocation6], 128
    $region41: #{tpu_custom_call.1} parent=1 // pred_fallthru
      _
    // Predicated region
    $region42: #{tpu_custom_call.1} parent=1 // pred_check
      _
    $region43: #{tpu_custom_call.1} parent=1 // pred_check_branch
      %95 = sbr.rel (0) target = $region45
    $region44: #{tpu_custom_call.1} parent=1 // pred_region
      %96 = dma.done [#allocation9], 131072
    $region45: #{tpu_custom_call.1} parent=1 // pred_fallthru
      _
    // Predicated region
    $region46: #{tpu_custom_call.1} parent=1 // pred_check
      _
    $region47: #{tpu_custom_call.1} parent=1 // pred_check_branch
      %98 = sbr.rel (0) target = $region49
    $region48: #{tpu_custom_call.1} parent=1 // pred_region
      %99 = dma.done [#allocation9], 128
    $region49: #{tpu_custom_call.1} parent=1 // pred_fallthru
      _
    // Predicated region
    $region50: #{tpu_custom_call.1} parent=1 // pred_check
      _
    $region51: #{tpu_custom_call.1} parent=1 // pred_check_branch
      %101 = sbr.rel (0) target = $region53
    $region52: #{tpu_custom_call.1} parent=1 // pred_region
      %102 = dma.done [#allocation12], 16384
    $region53: #{tpu_custom_call.1} parent=1 // pred_fallthru
      _
    %v103 = vld [vmem:[#allocation2] sm:$0xff]
    %v104 = vld [vmem:[#allocation5] sm:$0xff]
    %v105 = vld [vmem:[#allocation5 + $0x8] sm:$0xff]
    %v106 = vld [vmem:[#allocation5 + $0x10] sm:$0xff]
    %v107 = vld [vmem:[#allocation5 + $0x18] sm:$0xff]
    %v108 = vld [vmem:[#allocation5 + $0x20] sm:$0xff]
    %v109 = vld [vmem:[#allocation5 + $0x28] sm:$0xff]
    %v110 = vld [vmem:[#allocation5 + $0x30] sm:$0xff]
    %v111 = vld [vmem:[#allocation5 + $0x38] sm:$0xff]
    %v112 = vld [vmem:[#allocation5 + $0x40] sm:$0xff]
    %v113 = vld [vmem:[#allocation5 + $0x48] sm:$0xff]
    %v114 = vld [vmem:[#allocation5 + $0x50] sm:$0xff]
    %v115 = vld [vmem:[#allocation5 + $0x58] sm:$0xff]
    %v116 = vld [vmem:[#allocation5 + $0x60] sm:$0xff]
    %v117 = vld [vmem:[#allocation5 + $0x68] sm:$0xff]
    %v118 = vld [vmem:[#allocation5 + $0x70] sm:$0xff]
    %v119 = vld [vmem:[#allocation5 + $0x78] sm:$0xff]
    %v120 = vld [vmem:[#allocation5 + $0x80] sm:$0xff]
    %v121 = vld [vmem:[#allocation5 + $0x88] sm:$0xff]
    %v122 = vld [vmem:[#allocation5 + $0x90] sm:$0xff]
    %v123 = vld [vmem:[#allocation5 + $0x98] sm:$0xff]
    %v124 = vld [vmem:[#allocation5 + $0xa0] sm:$0xff]
    %v125 = vld [vmem:[#allocation5 + $0xa8] sm:$0xff]
    %v126 = vld [vmem:[#allocation5 + $0xb0] sm:$0xff]
    %v127 = vld [vmem:[#allocation5 + $0xb8] sm:$0xff]
    %v128 = vld [vmem:[#allocation5 + $0xc0] sm:$0xff]
    %v129 = vld [vmem:[#allocation5 + $0xc8] sm:$0xff]
    %v130 = vld [vmem:[#allocation5 + $0xd0] sm:$0xff]
    %v131 = vld [vmem:[#allocation5 + $0xd8] sm:$0xff]
    %v132 = vld [vmem:[#allocation5 + $0xe0] sm:$0xff]
    %v133 = vld [vmem:[#allocation5 + $0xe8] sm:$0xff]
    %v134 = vld [vmem:[#allocation5 + $0xf0] sm:$0xff]
    %v135 = vld [vmem:[#allocation5 + $0xf8] sm:$0xff]
    %v136 = vld [vmem:[#allocation7] sm:$0xff]
    %v138 = vlaneseq
    %v139 = vshrl.u32 %v138, 7
    %v140 = vsub.s32 0, %v139
    %v141 = vrot.slane %v136, %v140
    %v142 = vlaneseq
    %v143 = vshrl.u32 %v142, 7
    %v144 = vsub.s32 1, %v143
    %v145 = vrot.slane %v136, %v144
    %v146 = vlaneseq
    %v147 = vshrl.u32 %v146, 7
    %v148 = vsub.s32 2, %v147
    %v149 = vrot.slane %v136, %v148
    %v150 = vlaneseq
    %v151 = vshrl.u32 %v150, 7
    %v152 = vsub.s32 3, %v151
    %v153 = vrot.slane %v136, %v152
    %v154 = vlaneseq
    %v155 = vshrl.u32 %v154, 7
    %v156 = vsub.s32 4, %v155
    %v157 = vrot.slane %v136, %v156
    %v158 = vlaneseq
    %v159 = vshrl.u32 %v158, 7
    %v160 = vsub.s32 5, %v159
    %v161 = vrot.slane %v136, %v160
    %v162 = vlaneseq
    %v163 = vshrl.u32 %v162, 7
    %v164 = vsub.s32 6, %v163
    %v165 = vrot.slane %v136, %v164
    %v166 = vlaneseq
    %v167 = vshrl.u32 %v166, 7
    %v168 = vsub.s32 7, %v167
    %v169 = vrot.slane %v136, %v168
    %vm178 = vcmask 261120
    %v180 = vsel %vm178, %v103, 0
    %182 = vmatprep.subr.mxu0 %v105
    %183 = vmatpush1.msra.mxu0 %v104
    %184 = vmatprep.subr.mxu0 %v113
    %185 = vmatpush1.msra.mxu0 %v112
    %186 = vmatprep.subr.mxu0 %v121
    %187 = vmatpush1.msra.mxu0 %v120
    %188 = vmatprep.subr.mxu0 %v129
    %189 = vmatpush1.msra.mxu0 %v128
    %190 = vmatprep.subr.mxu0 0.0
    %191 = vmatpush1.msra.mxu0 0.0
    %192 = vmatprep.subr.mxu0 0.0
    %193 = vmatpush1.msra.mxu0 0.0
    %194 = vmatprep.subr.mxu0 0.0
    %195 = vmatpush1.msra.mxu0 0.0
    %196 = vmatprep.subr.mxu0 0.0
    %197 = vmatpush1.msra.mxu0 0.0
    %198 = vmatprep.subr.mxu0 0.0
    %199 = vmatpush1.msra.mxu0 0.0
    %200 = vmatprep.subr.mxu0 0.0
    %201 = vmatpush1.msra.mxu0 0.0
    %202 = vmatprep.subr.mxu0 0.0
    %203 = vmatpush1.msra.mxu0 0.0
    %204 = vmatprep.subr.mxu0 0.0
    %205 = vmatpush1.msra.mxu0 0.0
    %206 = vmatprep.subr.mxu0 0.0
    %207 = vmatpush1.msra.mxu0 0.0
    %208 = vmatprep.subr.mxu0 0.0
    %209 = vmatpush1.msra.mxu0 0.0
    %210 = vmatprep.subr.mxu0 0.0
    %211 = vmatpush1.msra.mxu0 0.0
    %212 = vmatprep.subr.mxu0 0.0
    %213 = vmatpush1.msra.mxu0 0.0
    %214 = vmatprep.subr.mxu0 0.0
    %215 = vmatpush1.msra.mxu0 0.0
    %216 = vmatprep.subr.mxu0 0.0
    %217 = vmatpush1.msra.mxu0 0.0
    %218 = vmatprep.subr.mxu0 0.0
    %219 = vmatpush1.msra.mxu0 0.0
    %220 = vmatprep.subr.mxu0 0.0
    %221 = vmatpush1.msra.mxu0 0.0
    %222 = vmatprep.subr.mxu0 0.0
    %223 = vmatpush1.msra.mxu0 0.0
    %224 = vmatprep.subr.mxu0 0.0
    %225 = vmatpush1.msra.mxu0 0.0
    %226 = vmatprep.subr.mxu0 0.0
    %227 = vmatpush1.msra.mxu0 0.0
    %228 = vmatprep.subr.mxu0 0.0
    %229 = vmatpush1.msra.mxu0 0.0
    %230 = vmatprep.subr.mxu0 0.0
    %231 = vmatpush1.msra.mxu0 0.0
    %232 = vmatprep.subr.mxu0 0.0
    %233 = vmatpush1.msra.mxu0 0.0
    %234 = vmatprep.subr.mxu0 0.0
    %235 = vmatpush1.msra.mxu0 0.0
    %236 = vmatprep.subr.mxu0 0.0
    %237 = vmatpush1.msra.mxu0 0.0
    %238 = vmatprep.subr.mxu0 0.0
    %239 = vmatpush1.msra.mxu0 0.0
    %240 = vmatprep.subr.mxu0 0.0
    %241 = vmatpush1.msra.mxu0 0.0
    %242 = vmatprep.subr.mxu0 0.0
    %243 = vmatpush1.msra.mxu0 0.0
    %244 = vmatprep.subr.mxu0 0.0
    %245 = vmatpush1.msra.mxu0 0.0
    %246 = vmatprep.mubr.f32.mxu0 0.0
    %247 = vmatmul.mubr.f32.gmra.mrb[0].mxu0 %v180
    %v248 = vpop.f32.mrb[0].mxu0
    %v249 = vadd.f32 %v141, %v248
    %v250 = vpop.f32.mrb[0].mxu0
    %v251 = vadd.f32 %v145, %v250
    %252 = vdwg.mxu0
    %253 = vmatprep.subr.mxu0 %v107
    %254 = vmatpush1.msra.mxu0 %v106
    %255 = vmatprep.subr.mxu0 %v115
    %256 = vmatpush1.msra.mxu0 %v114
    %257 = vmatprep.subr.mxu0 %v123
    %258 = vmatpush1.msra.mxu0 %v122
    %259 = vmatprep.subr.mxu0 %v131
    %260 = vmatpush1.msra.mxu0 %v130
    %261 = vmatprep.subr.mxu0 0.0
    %262 = vmatpush1.msra.mxu0 0.0
    %263 = vmatprep.subr.mxu0 0.0
    %264 = vmatpush1.msra.mxu0 0.0
    %265 = vmatprep.subr.mxu0 0.0
    %266 = vmatpush1.msra.mxu0 0.0
    %267 = vmatprep.subr.mxu0 0.0
    %268 = vmatpush1.msra.mxu0 0.0
    %269 = vmatprep.subr.mxu0 0.0
    %270 = vmatpush1.msra.mxu0 0.0
    %271 = vmatprep.subr.mxu0 0.0
    %272 = vmatpush1.msra.mxu0 0.0
    %273 = vmatprep.subr.mxu0 0.0
    %274 = vmatpush1.msra.mxu0 0.0
    %275 = vmatprep.subr.mxu0 0.0
    %276 = vmatpush1.msra.mxu0 0.0
    %277 = vmatprep.subr.mxu0 0.0
    %278 = vmatpush1.msra.mxu0 0.0
    %279 = vmatprep.subr.mxu0 0.0
    %280 = vmatpush1.msra.mxu0 0.0
    %281 = vmatprep.subr.mxu0 0.0
    %282 = vmatpush1.msra.mxu0 0.0
    %283 = vmatprep.subr.mxu0 0.0
    %284 = vmatpush1.msra.mxu0 0.0
    %285 = vmatprep.subr.mxu0 0.0
    %286 = vmatpush1.msra.mxu0 0.0
    %287 = vmatprep.subr.mxu0 0.0
    %288 = vmatpush1.msra.mxu0 0.0
    %289 = vmatprep.subr.mxu0 0.0
    %290 = vmatpush1.msra.mxu0 0.0
    %291 = vmatprep.subr.mxu0 0.0
    %292 = vmatpush1.msra.mxu0 0.0
    %293 = vmatprep.subr.mxu0 0.0
    %294 = vmatpush1.msra.mxu0 0.0
    %295 = vmatprep.subr.mxu0 0.0
    %296 = vmatpush1.msra.mxu0 0.0
    %297 = vmatprep.subr.mxu0 0.0
    %298 = vmatpush1.msra.mxu0 0.0
    %299 = vmatprep.subr.mxu0 0.0
    %300 = vmatpush1.msra.mxu0 0.0
    %301 = vmatprep.subr.mxu0 0.0
    %302 = vmatpush1.msra.mxu0 0.0
    %303 = vmatprep.subr.mxu0 0.0
    %304 = vmatpush1.msra.mxu0 0.0
    %305 = vmatprep.subr.mxu0 0.0
    %306 = vmatpush1.msra.mxu0 0.0
    %307 = vmatprep.subr.mxu0 0.0
    %308 = vmatpush1.msra.mxu0 0.0
    %309 = vmatprep.subr.mxu0 0.0
    %310 = vmatpush1.msra.mxu0 0.0
    %311 = vmatprep.subr.mxu0 0.0
    %312 = vmatpush1.msra.mxu0 0.0
    %313 = vmatprep.subr.mxu0 0.0
    %314 = vmatpush1.msra.mxu0 0.0
    %315 = vmatprep.subr.mxu0 0.0
    %316 = vmatpush1.msra.mxu0 0.0
    %317 = vmatprep.mubr.f32.mxu0 0.0
    %318 = vmatmul.mubr.f32.gmra.mrb[0].mxu0 %v180
    %v319 = vpop.f32.mrb[0].mxu0
    %v320 = vadd.f32 %v149, %v319
    %v321 = vpop.f32.mrb[0].mxu0
    %v322 = vadd.f32 %v153, %v321
    %323 = vdwg.mxu0
    %324 = vmatprep.subr.mxu0 %v109
    %325 = vmatpush1.msra.mxu0 %v108
    %326 = vmatprep.subr.mxu0 %v117
    %327 = vmatpush1.msra.mxu0 %v116
    %328 = vmatprep.subr.mxu0 %v125
    %329 = vmatpush1.msra.mxu0 %v124
    %330 = vmatprep.subr.mxu0 %v133
    %331 = vmatpush1.msra.mxu0 %v132
    %332 = vmatprep.subr.mxu0 0.0
    %333 = vmatpush1.msra.mxu0 0.0
    %334 = vmatprep.subr.mxu0 0.0
    %335 = vmatpush1.msra.mxu0 0.0
    %336 = vmatprep.subr.mxu0 0.0
    %337 = vmatpush1.msra.mxu0 0.0
    %338 = vmatprep.subr.mxu0 0.0
    %339 = vmatpush1.msra.mxu0 0.0
    %340 = vmatprep.subr.mxu0 0.0
    %341 = vmatpush1.msra.mxu0 0.0
    %342 = vmatprep.subr.mxu0 0.0
    %343 = vmatpush1.msra.mxu0 0.0
    %344 = vmatprep.subr.mxu0 0.0
    %345 = vmatpush1.msra.mxu0 0.0
    %346 = vmatprep.subr.mxu0 0.0
    %347 = vmatpush1.msra.mxu0 0.0
    %348 = vmatprep.subr.mxu0 0.0
    %349 = vmatpush1.msra.mxu0 0.0
    %350 = vmatprep.subr.mxu0 0.0
    %351 = vmatpush1.msra.mxu0 0.0
    %352 = vmatprep.subr.mxu0 0.0
    %353 = vmatpush1.msra.mxu0 0.0
    %354 = vmatprep.subr.mxu0 0.0
    %355 = vmatpush1.msra.mxu0 0.0
    %356 = vmatprep.subr.mxu0 0.0
    %357 = vmatpush1.msra.mxu0 0.0
    %358 = vmatprep.subr.mxu0 0.0
    %359 = vmatpush1.msra.mxu0 0.0
    %360 = vmatprep.subr.mxu0 0.0
    %361 = vmatpush1.msra.mxu0 0.0
    %362 = vmatprep.subr.mxu0 0.0
    %363 = vmatpush1.msra.mxu0 0.0
    %364 = vmatprep.subr.mxu0 0.0
    %365 = vmatpush1.msra.mxu0 0.0
    %366 = vmatprep.subr.mxu0 0.0
    %367 = vmatpush1.msra.mxu0 0.0
    %368 = vmatprep.subr.mxu0 0.0
    %369 = vmatpush1.msra.mxu0 0.0
    %370 = vmatprep.subr.mxu0 0.0
    %371 = vmatpush1.msra.mxu0 0.0
    %372 = vmatprep.subr.mxu0 0.0
    %373 = vmatpush1.msra.mxu0 0.0
    %374 = vmatprep.subr.mxu0 0.0
    %375 = vmatpush1.msra.mxu0 0.0
    %376 = vmatprep.subr.mxu0 0.0
    %377 = vmatpush1.msra.mxu0 0.0
    %378 = vmatprep.subr.mxu0 0.0
    %379 = vmatpush1.msra.mxu0 0.0
    %380 = vmatprep.subr.mxu0 0.0
    %381 = vmatpush1.msra.mxu0 0.0
    %382 = vmatprep.subr.mxu0 0.0
    %383 = vmatpush1.msra.mxu0 0.0
    %384 = vmatprep.subr.mxu0 0.0
    %385 = vmatpush1.msra.mxu0 0.0
    %386 = vmatprep.subr.mxu0 0.0
    %387 = vmatpush1.msra.mxu0 0.0
    %388 = vmatprep.mubr.f32.mxu0 0.0
    %389 = vmatmul.mubr.f32.gmra.mrb[0].mxu0 %v180
    %v390 = vpop.f32.mrb[0].mxu0
    %v391 = vadd.f32 %v157, %v390
    %v392 = vpop.f32.mrb[0].mxu0
    %v393 = vadd.f32 %v161, %v392
    %394 = vdwg.mxu0
    %395 = vmatprep.subr.mxu0 %v111
    %396 = vmatpush1.msra.mxu0 %v110
    %397 = vmatprep.subr.mxu0 %v119
    %398 = vmatpush1.msra.mxu0 %v118
    %399 = vmatprep.subr.mxu0 %v127
    %400 = vmatpush1.msra.mxu0 %v126
    %401 = vmatprep.subr.mxu0 %v135
    %402 = vmatpush1.msra.mxu0 %v134
    %403 = vmatprep.subr.mxu0 0.0
    %404 = vmatpush1.msra.mxu0 0.0
    %405 = vmatprep.subr.mxu0 0.0
    %406 = vmatpush1.msra.mxu0 0.0
    %407 = vmatprep.subr.mxu0 0.0
    %408 = vmatpush1.msra.mxu0 0.0
    %409 = vmatprep.subr.mxu0 0.0
    %410 = vmatpush1.msra.mxu0 0.0
    %411 = vmatprep.subr.mxu0 0.0
    %412 = vmatpush1.msra.mxu0 0.0
    %413 = vmatprep.subr.mxu0 0.0
    %414 = vmatpush1.msra.mxu0 0.0
    %415 = vmatprep.subr.mxu0 0.0
    %416 = vmatpush1.msra.mxu0 0.0
    %417 = vmatprep.subr.mxu0 0.0
    %418 = vmatpush1.msra.mxu0 0.0
    %419 = vmatprep.subr.mxu0 0.0
    %420 = vmatpush1.msra.mxu0 0.0
    %421 = vmatprep.subr.mxu0 0.0
    %422 = vmatpush1.msra.mxu0 0.0
    %423 = vmatprep.subr.mxu0 0.0
    %424 = vmatpush1.msra.mxu0 0.0
    %425 = vmatprep.subr.mxu0 0.0
    %426 = vmatpush1.msra.mxu0 0.0
    %427 = vmatprep.subr.mxu0 0.0
    %428 = vmatpush1.msra.mxu0 0.0
    %429 = vmatprep.subr.mxu0 0.0
    %430 = vmatpush1.msra.mxu0 0.0
    %431 = vmatprep.subr.mxu0 0.0
    %432 = vmatpush1.msra.mxu0 0.0
    %433 = vmatprep.subr.mxu0 0.0
    %434 = vmatpush1.msra.mxu0 0.0
    %435 = vmatprep.subr.mxu0 0.0
    %436 = vmatpush1.msra.mxu0 0.0
    %437 = vmatprep.subr.mxu0 0.0
    %438 = vmatpush1.msra.mxu0 0.0
    %439 = vmatprep.subr.mxu0 0.0
    %440 = vmatpush1.msra.mxu0 0.0
    %441 = vmatprep.subr.mxu0 0.0
    %442 = vmatpush1.msra.mxu0 0.0
    %443 = vmatprep.subr.mxu0 0.0
    %444 = vmatpush1.msra.mxu0 0.0
    %445 = vmatprep.subr.mxu0 0.0
    %446 = vmatpush1.msra.mxu0 0.0
    %447 = vmatprep.subr.mxu0 0.0
    %448 = vmatpush1.msra.mxu0 0.0
    %449 = vmatprep.subr.mxu0 0.0
    %450 = vmatpush1.msra.mxu0 0.0
    %451 = vmatprep.subr.mxu0 0.0
    %452 = vmatpush1.msra.mxu0 0.0
    %453 = vmatprep.subr.mxu0 0.0
    %454 = vmatpush1.msra.mxu0 0.0
    %455 = vmatprep.subr.mxu0 0.0
    %456 = vmatpush1.msra.mxu0 0.0
    %457 = vmatprep.subr.mxu0 0.0
    %458 = vmatpush1.msra.mxu0 0.0
    %459 = vmatprep.mubr.f32.mxu0 0.0
    %460 = vmatmul.mubr.f32.gmra.mrb[0].mxu0 %v180
    %v461 = vpop.f32.mrb[0].mxu0
    %v462 = vadd.f32 %v165, %v461
    %v463 = vpop.f32.mrb[0].mxu0
    %v464 = vadd.f32 %v169, %v463
    %465 = vdwg.mxu0
    %v466 = vtanh.pop %v249
    %v467 = vtanh.pop %v251
    %v468 = vtanh.pop %v320
    %v469 = vtanh.pop %v322
    %v470 = vtanh.pop %v391
    %v471 = vtanh.pop %v393
    %v472 = vtanh.pop %v462
    %v473 = vtanh.pop %v464
    %v474 = vld [vmem:[#allocation8] sm:$0xff]
    %v475 = vld [vmem:[#allocation8 + $0x8] sm:$0xff]
    %v476 = vld [vmem:[#allocation8 + $0x10] sm:$0xff]
    %v477 = vld [vmem:[#allocation8 + $0x18] sm:$0xff]
    %v478 = vld [vmem:[#allocation8 + $0x20] sm:$0xff]
    %v479 = vld [vmem:[#allocation8 + $0x28] sm:$0xff]
    %v480 = vld [vmem:[#allocation8 + $0x30] sm:$0xff]
    %v481 = vld [vmem:[#allocation8 + $0x38] sm:$0xff]
    %v482 = vld [vmem:[#allocation8 + $0x40] sm:$0xff]
    %v483 = vld [vmem:[#allocation8 + $0x48] sm:$0xff]
    %v484 = vld [vmem:[#allocation8 + $0x50] sm:$0xff]
    %v485 = vld [vmem:[#allocation8 + $0x58] sm:$0xff]
    %v486 = vld [vmem:[#allocation8 + $0x60] sm:$0xff]
    %v487 = vld [vmem:[#allocation8 + $0x68] sm:$0xff]
    %v488 = vld [vmem:[#allocation8 + $0x70] sm:$0xff]
    %v489 = vld [vmem:[#allocation8 + $0x78] sm:$0xff]
    %v490 = vld [vmem:[#allocation8 + $0x80] sm:$0xff]
    %v491 = vld [vmem:[#allocation8 + $0x88] sm:$0xff]
    %v492 = vld [vmem:[#allocation8 + $0x90] sm:$0xff]
    %v493 = vld [vmem:[#allocation8 + $0x98] sm:$0xff]
    %v494 = vld [vmem:[#allocation8 + $0xa0] sm:$0xff]
    %v495 = vld [vmem:[#allocation8 + $0xa8] sm:$0xff]
    %v496 = vld [vmem:[#allocation8 + $0xb0] sm:$0xff]
    %v497 = vld [vmem:[#allocation8 + $0xb8] sm:$0xff]
    %v498 = vld [vmem:[#allocation8 + $0xc0] sm:$0xff]
    %v499 = vld [vmem:[#allocation8 + $0xc8] sm:$0xff]
    %v500 = vld [vmem:[#allocation8 + $0xd0] sm:$0xff]
    %v501 = vld [vmem:[#allocation8 + $0xd8] sm:$0xff]
    %v502 = vld [vmem:[#allocation8 + $0xe0] sm:$0xff]
    %v503 = vld [vmem:[#allocation8 + $0xe8] sm:$0xff]
    %v504 = vld [vmem:[#allocation8 + $0xf0] sm:$0xff]
    %v505 = vld [vmem:[#allocation8 + $0xf8] sm:$0xff]
    %v506 = vld [vmem:[#allocation8 + $0x100] sm:$0xff]
    %v507 = vld [vmem:[#allocation8 + $0x108] sm:$0xff]
    %v508 = vld [vmem:[#allocation8 + $0x110] sm:$0xff]
    %v509 = vld [vmem:[#allocation8 + $0x118] sm:$0xff]
    %v510 = vld [vmem:[#allocation8 + $0x120] sm:$0xff]
    %v511 = vld [vmem:[#allocation8 + $0x128] sm:$0xff]
    %v512 = vld [vmem:[#allocation8 + $0x130] sm:$0xff]
    %v513 = vld [vmem:[#allocation8 + $0x138] sm:$0xff]
    %v514 = vld [vmem:[#allocation8 + $0x140] sm:$0xff]
    %v515 = vld [vmem:[#allocation8 + $0x148] sm:$0xff]
    %v516 = vld [vmem:[#allocation8 + $0x150] sm:$0xff]
    %v517 = vld [vmem:[#allocation8 + $0x158] sm:$0xff]
    %v518 = vld [vmem:[#allocation8 + $0x160] sm:$0xff]
    %v519 = vld [vmem:[#allocation8 + $0x168] sm:$0xff]
    %v520 = vld [vmem:[#allocation8 + $0x170] sm:$0xff]
    %v521 = vld [vmem:[#allocation8 + $0x178] sm:$0xff]
    %v522 = vld [vmem:[#allocation8 + $0x180] sm:$0xff]
    %v523 = vld [vmem:[#allocation8 + $0x188] sm:$0xff]
    %v524 = vld [vmem:[#allocation8 + $0x190] sm:$0xff]
    %v525 = vld [vmem:[#allocation8 + $0x198] sm:$0xff]
    %v526 = vld [vmem:[#allocation8 + $0x1a0] sm:$0xff]
    %v527 = vld [vmem:[#allocation8 + $0x1a8] sm:$0xff]
    %v528 = vld [vmem:[#allocation8 + $0x1b0] sm:$0xff]
    %v529 = vld [vmem:[#allocation8 + $0x1b8] sm:$0xff]
    %v530 = vld [vmem:[#allocation8 + $0x1c0] sm:$0xff]
    %v531 = vld [vmem:[#allocation8 + $0x1c8] sm:$0xff]
    %v532 = vld [vmem:[#allocation8 + $0x1d0] sm:$0xff]
    %v533 = vld [vmem:[#allocation8 + $0x1d8] sm:$0xff]
    %v534 = vld [vmem:[#allocation8 + $0x1e0] sm:$0xff]
    %v535 = vld [vmem:[#allocation8 + $0x1e8] sm:$0xff]
    %v536 = vld [vmem:[#allocation8 + $0x1f0] sm:$0xff]
    %v537 = vld [vmem:[#allocation8 + $0x1f8] sm:$0xff]
    %v538 = vld [vmem:[#allocation8 + $0x200] sm:$0xff]
    %v539 = vld [vmem:[#allocation8 + $0x208] sm:$0xff]
    %v540 = vld [vmem:[#allocation8 + $0x210] sm:$0xff]
    %v541 = vld [vmem:[#allocation8 + $0x218] sm:$0xff]
    %v542 = vld [vmem:[#allocation8 + $0x220] sm:$0xff]
    %v543 = vld [vmem:[#allocation8 + $0x228] sm:$0xff]
    %v544 = vld [vmem:[#allocation8 + $0x230] sm:$0xff]
    %v545 = vld [vmem:[#allocation8 + $0x238] sm:$0xff]
    %v546 = vld [vmem:[#allocation8 + $0x240] sm:$0xff]
    %v547 = vld [vmem:[#allocation8 + $0x248] sm:$0xff]
    %v548 = vld [vmem:[#allocation8 + $0x250] sm:$0xff]
    %v549 = vld [vmem:[#allocation8 + $0x258] sm:$0xff]
    %v550 = vld [vmem:[#allocation8 + $0x260] sm:$0xff]
    %v551 = vld [vmem:[#allocation8 + $0x268] sm:$0xff]
    %v552 = vld [vmem:[#allocation8 + $0x270] sm:$0xff]
    %v553 = vld [vmem:[#allocation8 + $0x278] sm:$0xff]
    %v554 = vld [vmem:[#allocation8 + $0x280] sm:$0xff]
    %v555 = vld [vmem:[#allocation8 + $0x288] sm:$0xff]
    %v556 = vld [vmem:[#allocation8 + $0x290] sm:$0xff]
    %v557 = vld [vmem:[#allocation8 + $0x298] sm:$0xff]
    %v558 = vld [vmem:[#allocation8 + $0x2a0] sm:$0xff]
    %v559 = vld [vmem:[#allocation8 + $0x2a8] sm:$0xff]
    %v560 = vld [vmem:[#allocation8 + $0x2b0] sm:$0xff]
    %v561 = vld [vmem:[#allocation8 + $0x2b8] sm:$0xff]
    %v562 = vld [vmem:[#allocation8 + $0x2c0] sm:$0xff]
    %v563 = vld [vmem:[#allocation8 + $0x2c8] sm:$0xff]
    %v564 = vld [vmem:[#allocation8 + $0x2d0] sm:$0xff]
    %v565 = vld [vmem:[#allocation8 + $0x2d8] sm:$0xff]
    %v566 = vld [vmem:[#allocation8 + $0x2e0] sm:$0xff]
    %v567 = vld [vmem:[#allocation8 + $0x2e8] sm:$0xff]
    %v568 = vld [vmem:[#allocation8 + $0x2f0] sm:$0xff]
    %v569 = vld [vmem:[#allocation8 + $0x2f8] sm:$0xff]
    %v570 = vld [vmem:[#allocation8 + $0x300] sm:$0xff]
    %v571 = vld [vmem:[#allocation8 + $0x308] sm:$0xff]
    %v572 = vld [vmem:[#allocation8 + $0x310] sm:$0xff]
    %v573 = vld [vmem:[#allocation8 + $0x318] sm:$0xff]
    %v574 = vld [vmem:[#allocation8 + $0x320] sm:$0xff]
    %v575 = vld [vmem:[#allocation8 + $0x328] sm:$0xff]
    %v576 = vld [vmem:[#allocation8 + $0x330] sm:$0xff]
    %v577 = vld [vmem:[#allocation8 + $0x338] sm:$0xff]
    %v578 = vld [vmem:[#allocation8 + $0x340] sm:$0xff]
    %v579 = vld [vmem:[#allocation8 + $0x348] sm:$0xff]
    %v580 = vld [vmem:[#allocation8 + $0x350] sm:$0xff]
    %v581 = vld [vmem:[#allocation8 + $0x358] sm:$0xff]
    %v582 = vld [vmem:[#allocation8 + $0x360] sm:$0xff]
    %v583 = vld [vmem:[#allocation8 + $0x368] sm:$0xff]
    %v584 = vld [vmem:[#allocation8 + $0x370] sm:$0xff]
    %v585 = vld [vmem:[#allocation8 + $0x378] sm:$0xff]
    %v586 = vld [vmem:[#allocation8 + $0x380] sm:$0xff]
    %v587 = vld [vmem:[#allocation8 + $0x388] sm:$0xff]
    %v588 = vld [vmem:[#allocation8 + $0x390] sm:$0xff]
    %v589 = vld [vmem:[#allocation8 + $0x398] sm:$0xff]
    %v590 = vld [vmem:[#allocation8 + $0x3a0] sm:$0xff]
    %v591 = vld [vmem:[#allocation8 + $0x3a8] sm:$0xff]
    %v592 = vld [vmem:[#allocation8 + $0x3b0] sm:$0xff]
    %v593 = vld [vmem:[#allocation8 + $0x3b8] sm:$0xff]
    %v594 = vld [vmem:[#allocation8 + $0x3c0] sm:$0xff]
    %v595 = vld [vmem:[#allocation8 + $0x3c8] sm:$0xff]
    %v596 = vld [vmem:[#allocation8 + $0x3d0] sm:$0xff]
    %v597 = vld [vmem:[#allocation8 + $0x3d8] sm:$0xff]
    %v598 = vld [vmem:[#allocation8 + $0x3e0] sm:$0xff]
    %v599 = vld [vmem:[#allocation8 + $0x3e8] sm:$0xff]
    %v600 = vld [vmem:[#allocation8 + $0x3f0] sm:$0xff]
    %v601 = vld [vmem:[#allocation8 + $0x3f8] sm:$0xff]
    %v602 = vld [vmem:[#allocation8 + $0x400] sm:$0xff]
    %v603 = vld [vmem:[#allocation8 + $0x408] sm:$0xff]
    %v604 = vld [vmem:[#allocation8 + $0x410] sm:$0xff]
    %v605 = vld [vmem:[#allocation8 + $0x418] sm:$0xff]
    %v606 = vld [vmem:[#allocation8 + $0x420] sm:$0xff]
    %v607 = vld [vmem:[#allocation8 + $0x428] sm:$0xff]
    %v608 = vld [vmem:[#allocation8 + $0x430] sm:$0xff]
    %v609 = vld [vmem:[#allocation8 + $0x438] sm:$0xff]
    %v610 = vld [vmem:[#allocation8 + $0x440] sm:$0xff]
    %v611 = vld [vmem:[#allocation8 + $0x448] sm:$0xff]
    %v612 = vld [vmem:[#allocation8 + $0x450] sm:$0xff]
    %v613 = vld [vmem:[#allocation8 + $0x458] sm:$0xff]
    %v614 = vld [vmem:[#allocation8 + $0x460] sm:$0xff]
    %v615 = vld [vmem:[#allocation8 + $0x468] sm:$0xff]
    %v616 = vld [vmem:[#allocation8 + $0x470] sm:$0xff]
    %v617 = vld [vmem:[#allocation8 + $0x478] sm:$0xff]
    %v618 = vld [vmem:[#allocation8 + $0x480] sm:$0xff]
    %v619 = vld [vmem:[#allocation8 + $0x488] sm:$0xff]
    %v620 = vld [vmem:[#allocation8 + $0x490] sm:$0xff]
    %v621 = vld [vmem:[#allocation8 + $0x498] sm:$0xff]
    %v622 = vld [vmem:[#allocation8 + $0x4a0] sm:$0xff]
    %v623 = vld [vmem:[#allocation8 + $0x4a8] sm:$0xff]
    %v624 = vld [vmem:[#allocation8 + $0x4b0] sm:$0xff]
    %v625 = vld [vmem:[#allocation8 + $0x4b8] sm:$0xff]
    %v626 = vld [vmem:[#allocation8 + $0x4c0] sm:$0xff]
    %v627 = vld [vmem:[#allocation8 + $0x4c8] sm:$0xff]
    %v628 = vld [vmem:[#allocation8 + $0x4d0] sm:$0xff]
    %v629 = vld [vmem:[#allocation8 + $0x4d8] sm:$0xff]
    %v630 = vld [vmem:[#allocation8 + $0x4e0] sm:$0xff]
    %v631 = vld [vmem:[#allocation8 + $0x4e8] sm:$0xff]
    %v632 = vld [vmem:[#allocation8 + $0x4f0] sm:$0xff]
    %v633 = vld [vmem:[#allocation8 + $0x4f8] sm:$0xff]
    %v634 = vld [vmem:[#allocation8 + $0x500] sm:$0xff]
    %v635 = vld [vmem:[#allocation8 + $0x508] sm:$0xff]
    %v636 = vld [vmem:[#allocation8 + $0x510] sm:$0xff]
    %v637 = vld [vmem:[#allocation8 + $0x518] sm:$0xff]
    %v638 = vld [vmem:[#allocation8 + $0x520] sm:$0xff]
    %v639 = vld [vmem:[#allocation8 + $0x528] sm:$0xff]
    %v640 = vld [vmem:[#allocation8 + $0x530] sm:$0xff]
    %v641 = vld [vmem:[#allocation8 + $0x538] sm:$0xff]
    %v642 = vld [vmem:[#allocation8 + $0x540] sm:$0xff]
    %v643 = vld [vmem:[#allocation8 + $0x548] sm:$0xff]
    %v644 = vld [vmem:[#allocation8 + $0x550] sm:$0xff]
    %v645 = vld [vmem:[#allocation8 + $0x558] sm:$0xff]
    %v646 = vld [vmem:[#allocation8 + $0x560] sm:$0xff]
    %v647 = vld [vmem:[#allocation8 + $0x568] sm:$0xff]
    %v648 = vld [vmem:[#allocation8 + $0x570] sm:$0xff]
    %v649 = vld [vmem:[#allocation8 + $0x578] sm:$0xff]
    %v650 = vld [vmem:[#allocation8 + $0x580] sm:$0xff]
    %v651 = vld [vmem:[#allocation8 + $0x588] sm:$0xff]
    %v652 = vld [vmem:[#allocation8 + $0x590] sm:$0xff]
    %v653 = vld [vmem:[#allocation8 + $0x598] sm:$0xff]
    %v654 = vld [vmem:[#allocation8 + $0x5a0] sm:$0xff]
    %v655 = vld [vmem:[#allocation8 + $0x5a8] sm:$0xff]
    %v656 = vld [vmem:[#allocation8 + $0x5b0] sm:$0xff]
    %v657 = vld [vmem:[#allocation8 + $0x5b8] sm:$0xff]
    %v658 = vld [vmem:[#allocation8 + $0x5c0] sm:$0xff]
    %v659 = vld [vmem:[#allocation8 + $0x5c8] sm:$0xff]
    %v660 = vld [vmem:[#allocation8 + $0x5d0] sm:$0xff]
    %v661 = vld [vmem:[#allocation8 + $0x5d8] sm:$0xff]
    %v662 = vld [vmem:[#allocation8 + $0x5e0] sm:$0xff]
    %v663 = vld [vmem:[#allocation8 + $0x5e8] sm:$0xff]
    %v664 = vld [vmem:[#allocation8 + $0x5f0] sm:$0xff]
    %v665 = vld [vmem:[#allocation8 + $0x5f8] sm:$0xff]
    %v666 = vld [vmem:[#allocation8 + $0x600] sm:$0xff]
    %v667 = vld [vmem:[#allocation8 + $0x608] sm:$0xff]
    %v668 = vld [vmem:[#allocation8 + $0x610] sm:$0xff]
    %v669 = vld [vmem:[#allocation8 + $0x618] sm:$0xff]
    %v670 = vld [vmem:[#allocation8 + $0x620] sm:$0xff]
    %v671 = vld [vmem:[#allocation8 + $0x628] sm:$0xff]
    %v672 = vld [vmem:[#allocation8 + $0x630] sm:$0xff]
    %v673 = vld [vmem:[#allocation8 + $0x638] sm:$0xff]
    %v674 = vld [vmem:[#allocation8 + $0x640] sm:$0xff]
    %v675 = vld [vmem:[#allocation8 + $0x648] sm:$0xff]
    %v676 = vld [vmem:[#allocation8 + $0x650] sm:$0xff]
    %v677 = vld [vmem:[#allocation8 + $0x658] sm:$0xff]
    %v678 = vld [vmem:[#allocation8 + $0x660] sm:$0xff]
    %v679 = vld [vmem:[#allocation8 + $0x668] sm:$0xff]
    %v680 = vld [vmem:[#allocation8 + $0x670] sm:$0xff]
    %v681 = vld [vmem:[#allocation8 + $0x678] sm:$0xff]
    %v682 = vld [vmem:[#allocation8 + $0x680] sm:$0xff]
    %v683 = vld [vmem:[#allocation8 + $0x688] sm:$0xff]
    %v684 = vld [vmem:[#allocation8 + $0x690] sm:$0xff]
    %v685 = vld [vmem:[#allocation8 + $0x698] sm:$0xff]
    %v686 = vld [vmem:[#allocation8 + $0x6a0] sm:$0xff]
    %v687 = vld [vmem:[#allocation8 + $0x6a8] sm:$0xff]
    %v688 = vld [vmem:[#allocation8 + $0x6b0] sm:$0xff]
    %v689 = vld [vmem:[#allocation8 + $0x6b8] sm:$0xff]
    %v690 = vld [vmem:[#allocation8 + $0x6c0] sm:$0xff]
    %v691 = vld [vmem:[#allocation8 + $0x6c8] sm:$0xff]
    %v692 = vld [vmem:[#allocation8 + $0x6d0] sm:$0xff]
    %v693 = vld [vmem:[#allocation8 + $0x6d8] sm:$0xff]
    %v694 = vld [vmem:[#allocation8 + $0x6e0] sm:$0xff]
    %v695 = vld [vmem:[#allocation8 + $0x6e8] sm:$0xff]
    %v696 = vld [vmem:[#allocation8 + $0x6f0] sm:$0xff]
    %v697 = vld [vmem:[#allocation8 + $0x6f8] sm:$0xff]
    %v698 = vld [vmem:[#allocation8 + $0x700] sm:$0xff]
    %v699 = vld [vmem:[#allocation8 + $0x708] sm:$0xff]
    %v700 = vld [vmem:[#allocation8 + $0x710] sm:$0xff]
    %v701 = vld [vmem:[#allocation8 + $0x718] sm:$0xff]
    %v702 = vld [vmem:[#allocation8 + $0x720] sm:$0xff]
    %v703 = vld [vmem:[#allocation8 + $0x728] sm:$0xff]
    %v704 = vld [vmem:[#allocation8 + $0x730] sm:$0xff]
    %v705 = vld [vmem:[#allocation8 + $0x738] sm:$0xff]
    %v706 = vld [vmem:[#allocation8 + $0x740] sm:$0xff]
    %v707 = vld [vmem:[#allocation8 + $0x748] sm:$0xff]
    %v708 = vld [vmem:[#allocation8 + $0x750] sm:$0xff]
    %v709 = vld [vmem:[#allocation8 + $0x758] sm:$0xff]
    %v710 = vld [vmem:[#allocation8 + $0x760] sm:$0xff]
    %v711 = vld [vmem:[#allocation8 + $0x768] sm:$0xff]
    %v712 = vld [vmem:[#allocation8 + $0x770] sm:$0xff]
    %v713 = vld [vmem:[#allocation8 + $0x778] sm:$0xff]
    %v714 = vld [vmem:[#allocation8 + $0x780] sm:$0xff]
    %v715 = vld [vmem:[#allocation8 + $0x788] sm:$0xff]
    %v716 = vld [vmem:[#allocation8 + $0x790] sm:$0xff]
    %v717 = vld [vmem:[#allocation8 + $0x798] sm:$0xff]
    %v718 = vld [vmem:[#allocation8 + $0x7a0] sm:$0xff]
    %v719 = vld [vmem:[#allocation8 + $0x7a8] sm:$0xff]
    %v720 = vld [vmem:[#allocation8 + $0x7b0] sm:$0xff]
    %v721 = vld [vmem:[#allocation8 + $0x7b8] sm:$0xff]
    %v722 = vld [vmem:[#allocation8 + $0x7c0] sm:$0xff]
    %v723 = vld [vmem:[#allocation8 + $0x7c8] sm:$0xff]
    %v724 = vld [vmem:[#allocation8 + $0x7d0] sm:$0xff]
    %v725 = vld [vmem:[#allocation8 + $0x7d8] sm:$0xff]
    %v726 = vld [vmem:[#allocation8 + $0x7e0] sm:$0xff]
    %v727 = vld [vmem:[#allocation8 + $0x7e8] sm:$0xff]
    %v728 = vld [vmem:[#allocation8 + $0x7f0] sm:$0xff]
    %v729 = vld [vmem:[#allocation8 + $0x7f8] sm:$0xff]
    %v730 = vld [vmem:[#allocation8 + $0x800] sm:$0xff]
    %v731 = vld [vmem:[#allocation8 + $0x808] sm:$0xff]
    %v732 = vld [vmem:[#allocation8 + $0x810] sm:$0xff]
    %v733 = vld [vmem:[#allocation8 + $0x818] sm:$0xff]
    %v734 = vld [vmem:[#allocation8 + $0x820] sm:$0xff]
    %v735 = vld [vmem:[#allocation8 + $0x828] sm:$0xff]
    %v736 = vld [vmem:[#allocation8 + $0x830] sm:$0xff]
    %v737 = vld [vmem:[#allocation8 + $0x838] sm:$0xff]
    %v738 = vld [vmem:[#allocation8 + $0x840] sm:$0xff]
    %v739 = vld [vmem:[#allocation8 + $0x848] sm:$0xff]
    %v740 = vld [vmem:[#allocation8 + $0x850] sm:$0xff]
    %v741 = vld [vmem:[#allocation8 + $0x858] sm:$0xff]
    %v742 = vld [vmem:[#allocation8 + $0x860] sm:$0xff]
    %v743 = vld [vmem:[#allocation8 + $0x868] sm:$0xff]
    %v744 = vld [vmem:[#allocation8 + $0x870] sm:$0xff]
    %v745 = vld [vmem:[#allocation8 + $0x878] sm:$0xff]
    %v746 = vld [vmem:[#allocation8 + $0x880] sm:$0xff]
    %v747 = vld [vmem:[#allocation8 + $0x888] sm:$0xff]
    %v748 = vld [vmem:[#allocation8 + $0x890] sm:$0xff]
    %v749 = vld [vmem:[#allocation8 + $0x898] sm:$0xff]
    %v750 = vld [vmem:[#allocation8 + $0x8a0] sm:$0xff]
    %v751 = vld [vmem:[#allocation8 + $0x8a8] sm:$0xff]
    %v752 = vld [vmem:[#allocation8 + $0x8b0] sm:$0xff]
    %v753 = vld [vmem:[#allocation8 + $0x8b8] sm:$0xff]
    %v754 = vld [vmem:[#allocation8 + $0x8c0] sm:$0xff]
    %v755 = vld [vmem:[#allocation8 + $0x8c8] sm:$0xff]
    %v756 = vld [vmem:[#allocation8 + $0x8d0] sm:$0xff]
    %v757 = vld [vmem:[#allocation8 + $0x8d8] sm:$0xff]
    %v758 = vld [vmem:[#allocation8 + $0x8e0] sm:$0xff]
    %v759 = vld [vmem:[#allocation8 + $0x8e8] sm:$0xff]
    %v760 = vld [vmem:[#allocation8 + $0x8f0] sm:$0xff]
    %v761 = vld [vmem:[#allocation8 + $0x8f8] sm:$0xff]
    %v762 = vld [vmem:[#allocation8 + $0x900] sm:$0xff]
    %v763 = vld [vmem:[#allocation8 + $0x908] sm:$0xff]
    %v764 = vld [vmem:[#allocation8 + $0x910] sm:$0xff]
    %v765 = vld [vmem:[#allocation8 + $0x918] sm:$0xff]
    %v766 = vld [vmem:[#allocation8 + $0x920] sm:$0xff]
    %v767 = vld [vmem:[#allocation8 + $0x928] sm:$0xff]
    %v768 = vld [vmem:[#allocation8 + $0x930] sm:$0xff]
    %v769 = vld [vmem:[#allocation8 + $0x938] sm:$0xff]
    %v770 = vld [vmem:[#allocation8 + $0x940] sm:$0xff]
    %v771 = vld [vmem:[#allocation8 + $0x948] sm:$0xff]
    %v772 = vld [vmem:[#allocation8 + $0x950] sm:$0xff]
    %v773 = vld [vmem:[#allocation8 + $0x958] sm:$0xff]
    %v774 = vld [vmem:[#allocation8 + $0x960] sm:$0xff]
    %v775 = vld [vmem:[#allocation8 + $0x968] sm:$0xff]
    %v776 = vld [vmem:[#allocation8 + $0x970] sm:$0xff]
    %v777 = vld [vmem:[#allocation8 + $0x978] sm:$0xff]
    %v778 = vld [vmem:[#allocation8 + $0x980] sm:$0xff]
    %v779 = vld [vmem:[#allocation8 + $0x988] sm:$0xff]
    %v780 = vld [vmem:[#allocation8 + $0x990] sm:$0xff]
    %v781 = vld [vmem:[#allocation8 + $0x998] sm:$0xff]
    %v782 = vld [vmem:[#allocation8 + $0x9a0] sm:$0xff]
    %v783 = vld [vmem:[#allocation8 + $0x9a8] sm:$0xff]
    %v784 = vld [vmem:[#allocation8 + $0x9b0] sm:$0xff]
    %v785 = vld [vmem:[#allocation8 + $0x9b8] sm:$0xff]
    %v786 = vld [vmem:[#allocation8 + $0x9c0] sm:$0xff]
    %v787 = vld [vmem:[#allocation8 + $0x9c8] sm:$0xff]
    %v788 = vld [vmem:[#allocation8 + $0x9d0] sm:$0xff]
    %v789 = vld [vmem:[#allocation8 + $0x9d8] sm:$0xff]
    %v790 = vld [vmem:[#allocation8 + $0x9e0] sm:$0xff]
    %v791 = vld [vmem:[#allocation8 + $0x9e8] sm:$0xff]
    %v792 = vld [vmem:[#allocation8 + $0x9f0] sm:$0xff]
    %v793 = vld [vmem:[#allocation8 + $0x9f8] sm:$0xff]
    %v794 = vld [vmem:[#allocation8 + $0xa00] sm:$0xff]
    %v795 = vld [vmem:[#allocation8 + $0xa08] sm:$0xff]
    %v796 = vld [vmem:[#allocation8 + $0xa10] sm:$0xff]
    %v797 = vld [vmem:[#allocation8 + $0xa18] sm:$0xff]
    %v798 = vld [vmem:[#allocation8 + $0xa20] sm:$0xff]
    %v799 = vld [vmem:[#allocation8 + $0xa28] sm:$0xff]
    %v800 = vld [vmem:[#allocation8 + $0xa30] sm:$0xff]
    %v801 = vld [vmem:[#allocation8 + $0xa38] sm:$0xff]
    %v802 = vld [vmem:[#allocation8 + $0xa40] sm:$0xff]
    %v803 = vld [vmem:[#allocation8 + $0xa48] sm:$0xff]
    %v804 = vld [vmem:[#allocation8 + $0xa50] sm:$0xff]
    %v805 = vld [vmem:[#allocation8 + $0xa58] sm:$0xff]
    %v806 = vld [vmem:[#allocation8 + $0xa60] sm:$0xff]
    %v807 = vld [vmem:[#allocation8 + $0xa68] sm:$0xff]
    %v808 = vld [vmem:[#allocation8 + $0xa70] sm:$0xff]
    %v809 = vld [vmem:[#allocation8 + $0xa78] sm:$0xff]
    %v810 = vld [vmem:[#allocation8 + $0xa80] sm:$0xff]
    %v811 = vld [vmem:[#allocation8 + $0xa88] sm:$0xff]
    %v812 = vld [vmem:[#allocation8 + $0xa90] sm:$0xff]
    %v813 = vld [vmem:[#allocation8 + $0xa98] sm:$0xff]
    %v814 = vld [vmem:[#allocation8 + $0xaa0] sm:$0xff]
    %v815 = vld [vmem:[#allocation8 + $0xaa8] sm:$0xff]
    %v816 = vld [vmem:[#allocation8 + $0xab0] sm:$0xff]
    %v817 = vld [vmem:[#allocation8 + $0xab8] sm:$0xff]
    %v818 = vld [vmem:[#allocation8 + $0xac0] sm:$0xff]
    %v819 = vld [vmem:[#allocation8 + $0xac8] sm:$0xff]
    %v820 = vld [vmem:[#allocation8 + $0xad0] sm:$0xff]
    %v821 = vld [vmem:[#allocation8 + $0xad8] sm:$0xff]
    %v822 = vld [vmem:[#allocation8 + $0xae0] sm:$0xff]
    %v823 = vld [vmem:[#allocation8 + $0xae8] sm:$0xff]
    %v824 = vld [vmem:[#allocation8 + $0xaf0] sm:$0xff]
    %v825 = vld [vmem:[#allocation8 + $0xaf8] sm:$0xff]
    %v826 = vld [vmem:[#allocation8 + $0xb00] sm:$0xff]
    %v827 = vld [vmem:[#allocation8 + $0xb08] sm:$0xff]
    %v828 = vld [vmem:[#allocation8 + $0xb10] sm:$0xff]
    %v829 = vld [vmem:[#allocation8 + $0xb18] sm:$0xff]
    %v830 = vld [vmem:[#allocation8 + $0xb20] sm:$0xff]
    %v831 = vld [vmem:[#allocation8 + $0xb28] sm:$0xff]
    %v832 = vld [vmem:[#allocation8 + $0xb30] sm:$0xff]
    %v833 = vld [vmem:[#allocation8 + $0xb38] sm:$0xff]
    %v834 = vld [vmem:[#allocation8 + $0xb40] sm:$0xff]
    %v835 = vld [vmem:[#allocation8 + $0xb48] sm:$0xff]
    %v836 = vld [vmem:[#allocation8 + $0xb50] sm:$0xff]
    %v837 = vld [vmem:[#allocation8 + $0xb58] sm:$0xff]
    %v838 = vld [vmem:[#allocation8 + $0xb60] sm:$0xff]
    %v839 = vld [vmem:[#allocation8 + $0xb68] sm:$0xff]
    %v840 = vld [vmem:[#allocation8 + $0xb70] sm:$0xff]
    %v841 = vld [vmem:[#allocation8 + $0xb78] sm:$0xff]
    %v842 = vld [vmem:[#allocation8 + $0xb80] sm:$0xff]
    %v843 = vld [vmem:[#allocation8 + $0xb88] sm:$0xff]
    %v844 = vld [vmem:[#allocation8 + $0xb90] sm:$0xff]
    %v845 = vld [vmem:[#allocation8 + $0xb98] sm:$0xff]
    %v846 = vld [vmem:[#allocation8 + $0xba0] sm:$0xff]
    %v847 = vld [vmem:[#allocation8 + $0xba8] sm:$0xff]
    %v848 = vld [vmem:[#allocation8 + $0xbb0] sm:$0xff]
    %v849 = vld [vmem:[#allocation8 + $0xbb8] sm:$0xff]
    %v850 = vld [vmem:[#allocation8 + $0xbc0] sm:$0xff]
    %v851 = vld [vmem:[#allocation8 + $0xbc8] sm:$0xff]
    %v852 = vld [vmem:[#allocation8 + $0xbd0] sm:$0xff]
    %v853 = vld [vmem:[#allocation8 + $0xbd8] sm:$0xff]
    %v854 = vld [vmem:[#allocation8 + $0xbe0] sm:$0xff]
    %v855 = vld [vmem:[#allocation8 + $0xbe8] sm:$0xff]
    %v856 = vld [vmem:[#allocation8 + $0xbf0] sm:$0xff]
    %v857 = vld [vmem:[#allocation8 + $0xbf8] sm:$0xff]
    %v858 = vld [vmem:[#allocation8 + $0xc00] sm:$0xff]
    %v859 = vld [vmem:[#allocation8 + $0xc08] sm:$0xff]
    %v860 = vld [vmem:[#allocation8 + $0xc10] sm:$0xff]
    %v861 = vld [vmem:[#allocation8 + $0xc18] sm:$0xff]
    %v862 = vld [vmem:[#allocation8 + $0xc20] sm:$0xff]
    %v863 = vld [vmem:[#allocation8 + $0xc28] sm:$0xff]
    %v864 = vld [vmem:[#allocation8 + $0xc30] sm:$0xff]
    %v865 = vld [vmem:[#allocation8 + $0xc38] sm:$0xff]
    %v866 = vld [vmem:[#allocation8 + $0xc40] sm:$0xff]
    %v867 = vld [vmem:[#allocation8 + $0xc48] sm:$0xff]
    %v868 = vld [vmem:[#allocation8 + $0xc50] sm:$0xff]
    %v869 = vld [vmem:[#allocation8 + $0xc58] sm:$0xff]
    %v870 = vld [vmem:[#allocation8 + $0xc60] sm:$0xff]
    %v871 = vld [vmem:[#allocation8 + $0xc68] sm:$0xff]
    %v872 = vld [vmem:[#allocation8 + $0xc70] sm:$0xff]
    %v873 = vld [vmem:[#allocation8 + $0xc78] sm:$0xff]
    %v874 = vld [vmem:[#allocation8 + $0xc80] sm:$0xff]
    %v875 = vld [vmem:[#allocation8 + $0xc88] sm:$0xff]
    %v876 = vld [vmem:[#allocation8 + $0xc90] sm:$0xff]
    %v877 = vld [vmem:[#allocation8 + $0xc98] sm:$0xff]
    %v878 = vld [vmem:[#allocation8 + $0xca0] sm:$0xff]
    %v879 = vld [vmem:[#allocation8 + $0xca8] sm:$0xff]
    %v880 = vld [vmem:[#allocation8 + $0xcb0] sm:$0xff]
    %v881 = vld [vmem:[#allocation8 + $0xcb8] sm:$0xff]
    %v882 = vld [vmem:[#allocation8 + $0xcc0] sm:$0xff]
    %v883 = vld [vmem:[#allocation8 + $0xcc8] sm:$0xff]
    %v884 = vld [vmem:[#allocation8 + $0xcd0] sm:$0xff]
    %v885 = vld [vmem:[#allocation8 + $0xcd8] sm:$0xff]
    %v886 = vld [vmem:[#allocation8 + $0xce0] sm:$0xff]
    %v887 = vld [vmem:[#allocation8 + $0xce8] sm:$0xff]
    %v888 = vld [vmem:[#allocation8 + $0xcf0] sm:$0xff]
    %v889 = vld [vmem:[#allocation8 + $0xcf8] sm:$0xff]
    %v890 = vld [vmem:[#allocation8 + $0xd00] sm:$0xff]
    %v891 = vld [vmem:[#allocation8 + $0xd08] sm:$0xff]
    %v892 = vld [vmem:[#allocation8 + $0xd10] sm:$0xff]
    %v893 = vld [vmem:[#allocation8 + $0xd18] sm:$0xff]
    %v894 = vld [vmem:[#allocation8 + $0xd20] sm:$0xff]
    %v895 = vld [vmem:[#allocation8 + $0xd28] sm:$0xff]
    %v896 = vld [vmem:[#allocation8 + $0xd30] sm:$0xff]
    %v897 = vld [vmem:[#allocation8 + $0xd38] sm:$0xff]
    %v898 = vld [vmem:[#allocation8 + $0xd40] sm:$0xff]
    %v899 = vld [vmem:[#allocation8 + $0xd48] sm:$0xff]
    %v900 = vld [vmem:[#allocation8 + $0xd50] sm:$0xff]
    %v901 = vld [vmem:[#allocation8 + $0xd58] sm:$0xff]
    %v902 = vld [vmem:[#allocation8 + $0xd60] sm:$0xff]
    %v903 = vld [vmem:[#allocation8 + $0xd68] sm:$0xff]
    %v904 = vld [vmem:[#allocation8 + $0xd70] sm:$0xff]
    %v905 = vld [vmem:[#allocation8 + $0xd78] sm:$0xff]
    %v906 = vld [vmem:[#allocation8 + $0xd80] sm:$0xff]
    %v907 = vld [vmem:[#allocation8 + $0xd88] sm:$0xff]
    %v908 = vld [vmem:[#allocation8 + $0xd90] sm:$0xff]
    %v909 = vld [vmem:[#allocation8 + $0xd98] sm:$0xff]
    %v910 = vld [vmem:[#allocation8 + $0xda0] sm:$0xff]
    %v911 = vld [vmem:[#allocation8 + $0xda8] sm:$0xff]
    %v912 = vld [vmem:[#allocation8 + $0xdb0] sm:$0xff]
    %v913 = vld [vmem:[#allocation8 + $0xdb8] sm:$0xff]
    %v914 = vld [vmem:[#allocation8 + $0xdc0] sm:$0xff]
    %v915 = vld [vmem:[#allocation8 + $0xdc8] sm:$0xff]
    %v916 = vld [vmem:[#allocation8 + $0xdd0] sm:$0xff]
    %v917 = vld [vmem:[#allocation8 + $0xdd8] sm:$0xff]
    %v918 = vld [vmem:[#allocation8 + $0xde0] sm:$0xff]
    %v919 = vld [vmem:[#allocation8 + $0xde8] sm:$0xff]
    %v920 = vld [vmem:[#allocation8 + $0xdf0] sm:$0xff]
    %v921 = vld [vmem:[#allocation8 + $0xdf8] sm:$0xff]
    %v922 = vld [vmem:[#allocation8 + $0xe00] sm:$0xff]
    %v923 = vld [vmem:[#allocation8 + $0xe08] sm:$0xff]
    %v924 = vld [vmem:[#allocation8 + $0xe10] sm:$0xff]
    %v925 = vld [vmem:[#allocation8 + $0xe18] sm:$0xff]
    %v926 = vld [vmem:[#allocation8 + $0xe20] sm:$0xff]
    %v927 = vld [vmem:[#allocation8 + $0xe28] sm:$0xff]
    %v928 = vld [vmem:[#allocation8 + $0xe30] sm:$0xff]
    %v929 = vld [vmem:[#allocation8 + $0xe38] sm:$0xff]
    %v930 = vld [vmem:[#allocation8 + $0xe40] sm:$0xff]
    %v931 = vld [vmem:[#allocation8 + $0xe48] sm:$0xff]
    %v932 = vld [vmem:[#allocation8 + $0xe50] sm:$0xff]
    %v933 = vld [vmem:[#allocation8 + $0xe58] sm:$0xff]
    %v934 = vld [vmem:[#allocation8 + $0xe60] sm:$0xff]
    %v935 = vld [vmem:[#allocation8 + $0xe68] sm:$0xff]
    %v936 = vld [vmem:[#allocation8 + $0xe70] sm:$0xff]
    %v937 = vld [vmem:[#allocation8 + $0xe78] sm:$0xff]
    %v938 = vld [vmem:[#allocation8 + $0xe80] sm:$0xff]
    %v939 = vld [vmem:[#allocation8 + $0xe88] sm:$0xff]
    %v940 = vld [vmem:[#allocation8 + $0xe90] sm:$0xff]
    %v941 = vld [vmem:[#allocation8 + $0xe98] sm:$0xff]
    %v942 = vld [vmem:[#allocation8 + $0xea0] sm:$0xff]
    %v943 = vld [vmem:[#allocation8 + $0xea8] sm:$0xff]
    %v944 = vld [vmem:[#allocation8 + $0xeb0] sm:$0xff]
    %v945 = vld [vmem:[#allocation8 + $0xeb8] sm:$0xff]
    %v946 = vld [vmem:[#allocation8 + $0xec0] sm:$0xff]
    %v947 = vld [vmem:[#allocation8 + $0xec8] sm:$0xff]
    %v948 = vld [vmem:[#allocation8 + $0xed0] sm:$0xff]
    %v949 = vld [vmem:[#allocation8 + $0xed8] sm:$0xff]
    %v950 = vld [vmem:[#allocation8 + $0xee0] sm:$0xff]
    %v951 = vld [vmem:[#allocation8 + $0xee8] sm:$0xff]
    %v952 = vld [vmem:[#allocation8 + $0xef0] sm:$0xff]
    %v953 = vld [vmem:[#allocation8 + $0xef8] sm:$0xff]
    %v954 = vld [vmem:[#allocation8 + $0xf00] sm:$0xff]
    %v955 = vld [vmem:[#allocation8 + $0xf08] sm:$0xff]
    %v956 = vld [vmem:[#allocation8 + $0xf10] sm:$0xff]
    %v957 = vld [vmem:[#allocation8 + $0xf18] sm:$0xff]
    %v958 = vld [vmem:[#allocation8 + $0xf20] sm:$0xff]
    %v959 = vld [vmem:[#allocation8 + $0xf28] sm:$0xff]
    %v960 = vld [vmem:[#allocation8 + $0xf30] sm:$0xff]
    %v961 = vld [vmem:[#allocation8 + $0xf38] sm:$0xff]
    %v962 = vld [vmem:[#allocation8 + $0xf40] sm:$0xff]
    %v963 = vld [vmem:[#allocation8 + $0xf48] sm:$0xff]
    %v964 = vld [vmem:[#allocation8 + $0xf50] sm:$0xff]
    %v965 = vld [vmem:[#allocation8 + $0xf58] sm:$0xff]
    %v966 = vld [vmem:[#allocation8 + $0xf60] sm:$0xff]
    %v967 = vld [vmem:[#allocation8 + $0xf68] sm:$0xff]
    %v968 = vld [vmem:[#allocation8 + $0xf70] sm:$0xff]
    %v969 = vld [vmem:[#allocation8 + $0xf78] sm:$0xff]
    %v970 = vld [vmem:[#allocation8 + $0xf80] sm:$0xff]
    %v971 = vld [vmem:[#allocation8 + $0xf88] sm:$0xff]
    %v972 = vld [vmem:[#allocation8 + $0xf90] sm:$0xff]
    %v973 = vld [vmem:[#allocation8 + $0xf98] sm:$0xff]
    %v974 = vld [vmem:[#allocation8 + $0xfa0] sm:$0xff]
    %v975 = vld [vmem:[#allocation8 + $0xfa8] sm:$0xff]
    %v976 = vld [vmem:[#allocation8 + $0xfb0] sm:$0xff]
    %v977 = vld [vmem:[#allocation8 + $0xfb8] sm:$0xff]
    %v978 = vld [vmem:[#allocation8 + $0xfc0] sm:$0xff]
    %v979 = vld [vmem:[#allocation8 + $0xfc8] sm:$0xff]
    %v980 = vld [vmem:[#allocation8 + $0xfd0] sm:$0xff]
    %v981 = vld [vmem:[#allocation8 + $0xfd8] sm:$0xff]
    %v982 = vld [vmem:[#allocation8 + $0xfe0] sm:$0xff]
    %v983 = vld [vmem:[#allocation8 + $0xfe8] sm:$0xff]
    %v984 = vld [vmem:[#allocation8 + $0xff0] sm:$0xff]
    %v985 = vld [vmem:[#allocation8 + $0xff8] sm:$0xff]
    %v986 = vld [vmem:[#allocation8 + $0x1000] sm:$0xff]
    %v987 = vld [vmem:[#allocation8 + $0x1008] sm:$0xff]
    %v988 = vld [vmem:[#allocation8 + $0x1010] sm:$0xff]
    %v989 = vld [vmem:[#allocation8 + $0x1018] sm:$0xff]
    %v990 = vld [vmem:[#allocation8 + $0x1020] sm:$0xff]
    %v991 = vld [vmem:[#allocation8 + $0x1028] sm:$0xff]
    %v992 = vld [vmem:[#allocation8 + $0x1030] sm:$0xff]
    %v993 = vld [vmem:[#allocation8 + $0x1038] sm:$0xff]
    %v994 = vld [vmem:[#allocation8 + $0x1040] sm:$0xff]
    %v995 = vld [vmem:[#allocation8 + $0x1048] sm:$0xff]
    %v996 = vld [vmem:[#allocation8 + $0x1050] sm:$0xff]
    %v997 = vld [vmem:[#allocation8 + $0x1058] sm:$0xff]
    %v998 = vld [vmem:[#allocation8 + $0x1060] sm:$0xff]
    %v999 = vld [vmem:[#allocation8 + $0x1068] sm:$0xff]
    %v1000 = vld [vmem:[#allocation8 + $0x1070] sm:$0xff]
    %v1001 = vld [vmem:[#allocation8 + $0x1078] sm:$0xff]
    %v1002 = vld [vmem:[#allocation8 + $0x1080] sm:$0xff]
    %v1003 = vld [vmem:[#allocation8 + $0x1088] sm:$0xff]
    %v1004 = vld [vmem:[#allocation8 + $0x1090] sm:$0xff]
    %v1005 = vld [vmem:[#allocation8 + $0x1098] sm:$0xff]
    %v1006 = vld [vmem:[#allocation8 + $0x10a0] sm:$0xff]
    %v1007 = vld [vmem:[#allocation8 + $0x10a8] sm:$0xff]
    %v1008 = vld [vmem:[#allocation8 + $0x10b0] sm:$0xff]
    %v1009 = vld [vmem:[#allocation8 + $0x10b8] sm:$0xff]
    %v1010 = vld [vmem:[#allocation8 + $0x10c0] sm:$0xff]
    %v1011 = vld [vmem:[#allocation8 + $0x10c8] sm:$0xff]
    %v1012 = vld [vmem:[#allocation8 + $0x10d0] sm:$0xff]
    %v1013 = vld [vmem:[#allocation8 + $0x10d8] sm:$0xff]
    %v1014 = vld [vmem:[#allocation8 + $0x10e0] sm:$0xff]
    %v1015 = vld [vmem:[#allocation8 + $0x10e8] sm:$0xff]
    %v1016 = vld [vmem:[#allocation8 + $0x10f0] sm:$0xff]
    %v1017 = vld [vmem:[#allocation8 + $0x10f8] sm:$0xff]
    %v1018 = vld [vmem:[#allocation8 + $0x1100] sm:$0xff]
    %v1019 = vld [vmem:[#allocation8 + $0x1108] sm:$0xff]
    %v1020 = vld [vmem:[#allocation8 + $0x1110] sm:$0xff]
    %v1021 = vld [vmem:[#allocation8 + $0x1118] sm:$0xff]
    %v1022 = vld [vmem:[#allocation8 + $0x1120] sm:$0xff]
    %v1023 = vld [vmem:[#allocation8 + $0x1128] sm:$0xff]
    %v1024 = vld [vmem:[#allocation8 + $0x1130] sm:$0xff]
    %v1025 = vld [vmem:[#allocation8 + $0x1138] sm:$0xff]
    %v1026 = vld [vmem:[#allocation8 + $0x1140] sm:$0xff]
    %v1027 = vld [vmem:[#allocation8 + $0x1148] sm:$0xff]
    %v1028 = vld [vmem:[#allocation8 + $0x1150] sm:$0xff]
    %v1029 = vld [vmem:[#allocation8 + $0x1158] sm:$0xff]
    %v1030 = vld [vmem:[#allocation8 + $0x1160] sm:$0xff]
    %v1031 = vld [vmem:[#allocation8 + $0x1168] sm:$0xff]
    %v1032 = vld [vmem:[#allocation8 + $0x1170] sm:$0xff]
    %v1033 = vld [vmem:[#allocation8 + $0x1178] sm:$0xff]
    %v1034 = vld [vmem:[#allocation8 + $0x1180] sm:$0xff]
    %v1035 = vld [vmem:[#allocation8 + $0x1188] sm:$0xff]
    %v1036 = vld [vmem:[#allocation8 + $0x1190] sm:$0xff]
    %v1037 = vld [vmem:[#allocation8 + $0x1198] sm:$0xff]
    %v1038 = vld [vmem:[#allocation8 + $0x11a0] sm:$0xff]
    %v1039 = vld [vmem:[#allocation8 + $0x11a8] sm:$0xff]
    %v1040 = vld [vmem:[#allocation8 + $0x11b0] sm:$0xff]
    %v1041 = vld [vmem:[#allocation8 + $0x11b8] sm:$0xff]
    %v1042 = vld [vmem:[#allocation8 + $0x11c0] sm:$0xff]
    %v1043 = vld [vmem:[#allocation8 + $0x11c8] sm:$0xff]
    %v1044 = vld [vmem:[#allocation8 + $0x11d0] sm:$0xff]
    %v1045 = vld [vmem:[#allocation8 + $0x11d8] sm:$0xff]
    %v1046 = vld [vmem:[#allocation8 + $0x11e0] sm:$0xff]
    %v1047 = vld [vmem:[#allocation8 + $0x11e8] sm:$0xff]
    %v1048 = vld [vmem:[#allocation8 + $0x11f0] sm:$0xff]
    %v1049 = vld [vmem:[#allocation8 + $0x11f8] sm:$0xff]
    %v1050 = vld [vmem:[#allocation8 + $0x1200] sm:$0xff]
    %v1051 = vld [vmem:[#allocation8 + $0x1208] sm:$0xff]
    %v1052 = vld [vmem:[#allocation8 + $0x1210] sm:$0xff]
    %v1053 = vld [vmem:[#allocation8 + $0x1218] sm:$0xff]
    %v1054 = vld [vmem:[#allocation8 + $0x1220] sm:$0xff]
    %v1055 = vld [vmem:[#allocation8 + $0x1228] sm:$0xff]
    %v1056 = vld [vmem:[#allocation8 + $0x1230] sm:$0xff]
    %v1057 = vld [vmem:[#allocation8 + $0x1238] sm:$0xff]
    %v1058 = vld [vmem:[#allocation8 + $0x1240] sm:$0xff]
    %v1059 = vld [vmem:[#allocation8 + $0x1248] sm:$0xff]
    %v1060 = vld [vmem:[#allocation8 + $0x1250] sm:$0xff]
    %v1061 = vld [vmem:[#allocation8 + $0x1258] sm:$0xff]
    %v1062 = vld [vmem:[#allocation8 + $0x1260] sm:$0xff]
    %v1063 = vld [vmem:[#allocation8 + $0x1268] sm:$0xff]
    %v1064 = vld [vmem:[#allocation8 + $0x1270] sm:$0xff]
    %v1065 = vld [vmem:[#allocation8 + $0x1278] sm:$0xff]
    %v1066 = vld [vmem:[#allocation8 + $0x1280] sm:$0xff]
    %v1067 = vld [vmem:[#allocation8 + $0x1288] sm:$0xff]
    %v1068 = vld [vmem:[#allocation8 + $0x1290] sm:$0xff]
    %v1069 = vld [vmem:[#allocation8 + $0x1298] sm:$0xff]
    %v1070 = vld [vmem:[#allocation8 + $0x12a0] sm:$0xff]
    %v1071 = vld [vmem:[#allocation8 + $0x12a8] sm:$0xff]
    %v1072 = vld [vmem:[#allocation8 + $0x12b0] sm:$0xff]
    %v1073 = vld [vmem:[#allocation8 + $0x12b8] sm:$0xff]
    %v1074 = vld [vmem:[#allocation8 + $0x12c0] sm:$0xff]
    %v1075 = vld [vmem:[#allocation8 + $0x12c8] sm:$0xff]
    %v1076 = vld [vmem:[#allocation8 + $0x12d0] sm:$0xff]
    %v1077 = vld [vmem:[#allocation8 + $0x12d8] sm:$0xff]
    %v1078 = vld [vmem:[#allocation8 + $0x12e0] sm:$0xff]
    %v1079 = vld [vmem:[#allocation8 + $0x12e8] sm:$0xff]
    %v1080 = vld [vmem:[#allocation8 + $0x12f0] sm:$0xff]
    %v1081 = vld [vmem:[#allocation8 + $0x12f8] sm:$0xff]
    %v1082 = vld [vmem:[#allocation8 + $0x1300] sm:$0xff]
    %v1083 = vld [vmem:[#allocation8 + $0x1308] sm:$0xff]
    %v1084 = vld [vmem:[#allocation8 + $0x1310] sm:$0xff]
    %v1085 = vld [vmem:[#allocation8 + $0x1318] sm:$0xff]
    %v1086 = vld [vmem:[#allocation8 + $0x1320] sm:$0xff]
    %v1087 = vld [vmem:[#allocation8 + $0x1328] sm:$0xff]
    %v1088 = vld [vmem:[#allocation8 + $0x1330] sm:$0xff]
    %v1089 = vld [vmem:[#allocation8 + $0x1338] sm:$0xff]
    %v1090 = vld [vmem:[#allocation8 + $0x1340] sm:$0xff]
    %v1091 = vld [vmem:[#allocation8 + $0x1348] sm:$0xff]
    %v1092 = vld [vmem:[#allocation8 + $0x1350] sm:$0xff]
    %v1093 = vld [vmem:[#allocation8 + $0x1358] sm:$0xff]
    %v1094 = vld [vmem:[#allocation8 + $0x1360] sm:$0xff]
    %v1095 = vld [vmem:[#allocation8 + $0x1368] sm:$0xff]
    %v1096 = vld [vmem:[#allocation8 + $0x1370] sm:$0xff]
    %v1097 = vld [vmem:[#allocation8 + $0x1378] sm:$0xff]
    %v1098 = vld [vmem:[#allocation8 + $0x1380] sm:$0xff]
    %v1099 = vld [vmem:[#allocation8 + $0x1388] sm:$0xff]
    %v1100 = vld [vmem:[#allocation8 + $0x1390] sm:$0xff]
    %v1101 = vld [vmem:[#allocation8 + $0x1398] sm:$0xff]
    %v1102 = vld [vmem:[#allocation8 + $0x13a0] sm:$0xff]
    %v1103 = vld [vmem:[#allocation8 + $0x13a8] sm:$0xff]
    %v1104 = vld [vmem:[#allocation8 + $0x13b0] sm:$0xff]
    %v1105 = vld [vmem:[#allocation8 + $0x13b8] sm:$0xff]
    %v1106 = vld [vmem:[#allocation8 + $0x13c0] sm:$0xff]
    %v1107 = vld [vmem:[#allocation8 + $0x13c8] sm:$0xff]
    %v1108 = vld [vmem:[#allocation8 + $0x13d0] sm:$0xff]
    %v1109 = vld [vmem:[#allocation8 + $0x13d8] sm:$0xff]
    %v1110 = vld [vmem:[#allocation8 + $0x13e0] sm:$0xff]
    %v1111 = vld [vmem:[#allocation8 + $0x13e8] sm:$0xff]
    %v1112 = vld [vmem:[#allocation8 + $0x13f0] sm:$0xff]
    %v1113 = vld [vmem:[#allocation8 + $0x13f8] sm:$0xff]
    %v1114 = vld [vmem:[#allocation8 + $0x1400] sm:$0xff]
    %v1115 = vld [vmem:[#allocation8 + $0x1408] sm:$0xff]
    %v1116 = vld [vmem:[#allocation8 + $0x1410] sm:$0xff]
    %v1117 = vld [vmem:[#allocation8 + $0x1418] sm:$0xff]
    %v1118 = vld [vmem:[#allocation8 + $0x1420] sm:$0xff]
    %v1119 = vld [vmem:[#allocation8 + $0x1428] sm:$0xff]
    %v1120 = vld [vmem:[#allocation8 + $0x1430] sm:$0xff]
    %v1121 = vld [vmem:[#allocation8 + $0x1438] sm:$0xff]
    %v1122 = vld [vmem:[#allocation8 + $0x1440] sm:$0xff]
    %v1123 = vld [vmem:[#allocation8 + $0x1448] sm:$0xff]
    %v1124 = vld [vmem:[#allocation8 + $0x1450] sm:$0xff]
    %v1125 = vld [vmem:[#allocation8 + $0x1458] sm:$0xff]
    %v1126 = vld [vmem:[#allocation8 + $0x1460] sm:$0xff]
    %v1127 = vld [vmem:[#allocation8 + $0x1468] sm:$0xff]
    %v1128 = vld [vmem:[#allocation8 + $0x1470] sm:$0xff]
    %v1129 = vld [vmem:[#allocation8 + $0x1478] sm:$0xff]
    %v1130 = vld [vmem:[#allocation8 + $0x1480] sm:$0xff]
    %v1131 = vld [vmem:[#allocation8 + $0x1488] sm:$0xff]
    %v1132 = vld [vmem:[#allocation8 + $0x1490] sm:$0xff]
    %v1133 = vld [vmem:[#allocation8 + $0x1498] sm:$0xff]
    %v1134 = vld [vmem:[#allocation8 + $0x14a0] sm:$0xff]
    %v1135 = vld [vmem:[#allocation8 + $0x14a8] sm:$0xff]
    %v1136 = vld [vmem:[#allocation8 + $0x14b0] sm:$0xff]
    %v1137 = vld [vmem:[#allocation8 + $0x14b8] sm:$0xff]
    %v1138 = vld [vmem:[#allocation8 + $0x14c0] sm:$0xff]
    %v1139 = vld [vmem:[#allocation8 + $0x14c8] sm:$0xff]
    %v1140 = vld [vmem:[#allocation8 + $0x14d0] sm:$0xff]
    %v1141 = vld [vmem:[#allocation8 + $0x14d8] sm:$0xff]
    %v1142 = vld [vmem:[#allocation8 + $0x14e0] sm:$0xff]
    %v1143 = vld [vmem:[#allocation8 + $0x14e8] sm:$0xff]
    %v1144 = vld [vmem:[#allocation8 + $0x14f0] sm:$0xff]
    %v1145 = vld [vmem:[#allocation8 + $0x14f8] sm:$0xff]
    %v1146 = vld [vmem:[#allocation8 + $0x1500] sm:$0xff]
    %v1147 = vld [vmem:[#allocation8 + $0x1508] sm:$0xff]
    %v1148 = vld [vmem:[#allocation8 + $0x1510] sm:$0xff]
    %v1149 = vld [vmem:[#allocation8 + $0x1518] sm:$0xff]
    %v1150 = vld [vmem:[#allocation8 + $0x1520] sm:$0xff]
    %v1151 = vld [vmem:[#allocation8 + $0x1528] sm:$0xff]
    %v1152 = vld [vmem:[#allocation8 + $0x1530] sm:$0xff]
    %v1153 = vld [vmem:[#allocation8 + $0x1538] sm:$0xff]
    %v1154 = vld [vmem:[#allocation8 + $0x1540] sm:$0xff]
    %v1155 = vld [vmem:[#allocation8 + $0x1548] sm:$0xff]
    %v1156 = vld [vmem:[#allocation8 + $0x1550] sm:$0xff]
    %v1157 = vld [vmem:[#allocation8 + $0x1558] sm:$0xff]
    %v1158 = vld [vmem:[#allocation8 + $0x1560] sm:$0xff]
    %v1159 = vld [vmem:[#allocation8 + $0x1568] sm:$0xff]
    %v1160 = vld [vmem:[#allocation8 + $0x1570] sm:$0xff]
    %v1161 = vld [vmem:[#allocation8 + $0x1578] sm:$0xff]
    %v1162 = vld [vmem:[#allocation8 + $0x1580] sm:$0xff]
    %v1163 = vld [vmem:[#allocation8 + $0x1588] sm:$0xff]
    %v1164 = vld [vmem:[#allocation8 + $0x1590] sm:$0xff]
    %v1165 = vld [vmem:[#allocation8 + $0x1598] sm:$0xff]
    %v1166 = vld [vmem:[#allocation8 + $0x15a0] sm:$0xff]
    %v1167 = vld [vmem:[#allocation8 + $0x15a8] sm:$0xff]
    %v1168 = vld [vmem:[#allocation8 + $0x15b0] sm:$0xff]
    %v1169 = vld [vmem:[#allocation8 + $0x15b8] sm:$0xff]
    %v1170 = vld [vmem:[#allocation8 + $0x15c0] sm:$0xff]
    %v1171 = vld [vmem:[#allocation8 + $0x15c8] sm:$0xff]
    %v1172 = vld [vmem:[#allocation8 + $0x15d0] sm:$0xff]
    %v1173 = vld [vmem:[#allocation8 + $0x15d8] sm:$0xff]
    %v1174 = vld [vmem:[#allocation8 + $0x15e0] sm:$0xff]
    %v1175 = vld [vmem:[#allocation8 + $0x15e8] sm:$0xff]
    %v1176 = vld [vmem:[#allocation8 + $0x15f0] sm:$0xff]
    %v1177 = vld [vmem:[#allocation8 + $0x15f8] sm:$0xff]
    %v1178 = vld [vmem:[#allocation8 + $0x1600] sm:$0xff]
    %v1179 = vld [vmem:[#allocation8 + $0x1608] sm:$0xff]
    %v1180 = vld [vmem:[#allocation8 + $0x1610] sm:$0xff]
    %v1181 = vld [vmem:[#allocation8 + $0x1618] sm:$0xff]
    %v1182 = vld [vmem:[#allocation8 + $0x1620] sm:$0xff]
    %v1183 = vld [vmem:[#allocation8 + $0x1628] sm:$0xff]
    %v1184 = vld [vmem:[#allocation8 + $0x1630] sm:$0xff]
    %v1185 = vld [vmem:[#allocation8 + $0x1638] sm:$0xff]
    %v1186 = vld [vmem:[#allocation8 + $0x1640] sm:$0xff]
    %v1187 = vld [vmem:[#allocation8 + $0x1648] sm:$0xff]
    %v1188 = vld [vmem:[#allocation8 + $0x1650] sm:$0xff]
    %v1189 = vld [vmem:[#allocation8 + $0x1658] sm:$0xff]
    %v1190 = vld [vmem:[#allocation8 + $0x1660] sm:$0xff]
    %v1191 = vld [vmem:[#allocation8 + $0x1668] sm:$0xff]
    %v1192 = vld [vmem:[#allocation8 + $0x1670] sm:$0xff]
    %v1193 = vld [vmem:[#allocation8 + $0x1678] sm:$0xff]
    %v1194 = vld [vmem:[#allocation8 + $0x1680] sm:$0xff]
    %v1195 = vld [vmem:[#allocation8 + $0x1688] sm:$0xff]
    %v1196 = vld [vmem:[#allocation8 + $0x1690] sm:$0xff]
    %v1197 = vld [vmem:[#allocation8 + $0x1698] sm:$0xff]
    %v1198 = vld [vmem:[#allocation8 + $0x16a0] sm:$0xff]
    %v1199 = vld [vmem:[#allocation8 + $0x16a8] sm:$0xff]
    %v1200 = vld [vmem:[#allocation8 + $0x16b0] sm:$0xff]
    %v1201 = vld [vmem:[#allocation8 + $0x16b8] sm:$0xff]
    %v1202 = vld [vmem:[#allocation8 + $0x16c0] sm:$0xff]
    %v1203 = vld [vmem:[#allocation8 + $0x16c8] sm:$0xff]
    %v1204 = vld [vmem:[#allocation8 + $0x16d0] sm:$0xff]
    %v1205 = vld [vmem:[#allocation8 + $0x16d8] sm:$0xff]
    %v1206 = vld [vmem:[#allocation8 + $0x16e0] sm:$0xff]
    %v1207 = vld [vmem:[#allocation8 + $0x16e8] sm:$0xff]
    %v1208 = vld [vmem:[#allocation8 + $0x16f0] sm:$0xff]
    %v1209 = vld [vmem:[#allocation8 + $0x16f8] sm:$0xff]
    %v1210 = vld [vmem:[#allocation8 + $0x1700] sm:$0xff]
    %v1211 = vld [vmem:[#allocation8 + $0x1708] sm:$0xff]
    %v1212 = vld [vmem:[#allocation8 + $0x1710] sm:$0xff]
    %v1213 = vld [vmem:[#allocation8 + $0x1718] sm:$0xff]
    %v1214 = vld [vmem:[#allocation8 + $0x1720] sm:$0xff]
    %v1215 = vld [vmem:[#allocation8 + $0x1728] sm:$0xff]
    %v1216 = vld [vmem:[#allocation8 + $0x1730] sm:$0xff]
    %v1217 = vld [vmem:[#allocation8 + $0x1738] sm:$0xff]
    %v1218 = vld [vmem:[#allocation8 + $0x1740] sm:$0xff]
    %v1219 = vld [vmem:[#allocation8 + $0x1748] sm:$0xff]
    %v1220 = vld [vmem:[#allocation8 + $0x1750] sm:$0xff]
    %v1221 = vld [vmem:[#allocation8 + $0x1758] sm:$0xff]
    %v1222 = vld [vmem:[#allocation8 + $0x1760] sm:$0xff]
    %v1223 = vld [vmem:[#allocation8 + $0x1768] sm:$0xff]
    %v1224 = vld [vmem:[#allocation8 + $0x1770] sm:$0xff]
    %v1225 = vld [vmem:[#allocation8 + $0x1778] sm:$0xff]
    %v1226 = vld [vmem:[#allocation8 + $0x1780] sm:$0xff]
    %v1227 = vld [vmem:[#allocation8 + $0x1788] sm:$0xff]
    %v1228 = vld [vmem:[#allocation8 + $0x1790] sm:$0xff]
    %v1229 = vld [vmem:[#allocation8 + $0x1798] sm:$0xff]
    %v1230 = vld [vmem:[#allocation8 + $0x17a0] sm:$0xff]
    %v1231 = vld [vmem:[#allocation8 + $0x17a8] sm:$0xff]
    %v1232 = vld [vmem:[#allocation8 + $0x17b0] sm:$0xff]
    %v1233 = vld [vmem:[#allocation8 + $0x17b8] sm:$0xff]
    %v1234 = vld [vmem:[#allocation8 + $0x17c0] sm:$0xff]
    %v1235 = vld [vmem:[#allocation8 + $0x17c8] sm:$0xff]
    %v1236 = vld [vmem:[#allocation8 + $0x17d0] sm:$0xff]
    %v1237 = vld [vmem:[#allocation8 + $0x17d8] sm:$0xff]
    %v1238 = vld [vmem:[#allocation8 + $0x17e0] sm:$0xff]
    %v1239 = vld [vmem:[#allocation8 + $0x17e8] sm:$0xff]
    %v1240 = vld [vmem:[#allocation8 + $0x17f0] sm:$0xff]
    %v1241 = vld [vmem:[#allocation8 + $0x17f8] sm:$0xff]
    %v1242 = vld [vmem:[#allocation8 + $0x1800] sm:$0xff]
    %v1243 = vld [vmem:[#allocation8 + $0x1808] sm:$0xff]
    %v1244 = vld [vmem:[#allocation8 + $0x1810] sm:$0xff]
    %v1245 = vld [vmem:[#allocation8 + $0x1818] sm:$0xff]
    %v1246 = vld [vmem:[#allocation8 + $0x1820] sm:$0xff]
    %v1247 = vld [vmem:[#allocation8 + $0x1828] sm:$0xff]
    %v1248 = vld [vmem:[#allocation8 + $0x1830] sm:$0xff]
    %v1249 = vld [vmem:[#allocation8 + $0x1838] sm:$0xff]
    %v1250 = vld [vmem:[#allocation8 + $0x1840] sm:$0xff]
    %v1251 = vld [vmem:[#allocation8 + $0x1848] sm:$0xff]
    %v1252 = vld [vmem:[#allocation8 + $0x1850] sm:$0xff]
    %v1253 = vld [vmem:[#allocation8 + $0x1858] sm:$0xff]
    %v1254 = vld [vmem:[#allocation8 + $0x1860] sm:$0xff]
    %v1255 = vld [vmem:[#allocation8 + $0x1868] sm:$0xff]
    %v1256 = vld [vmem:[#allocation8 + $0x1870] sm:$0xff]
    %v1257 = vld [vmem:[#allocation8 + $0x1878] sm:$0xff]
    %v1258 = vld [vmem:[#allocation8 + $0x1880] sm:$0xff]
    %v1259 = vld [vmem:[#allocation8 + $0x1888] sm:$0xff]
    %v1260 = vld [vmem:[#allocation8 + $0x1890] sm:$0xff]
    %v1261 = vld [vmem:[#allocation8 + $0x1898] sm:$0xff]
    %v1262 = vld [vmem:[#allocation8 + $0x18a0] sm:$0xff]
    %v1263 = vld [vmem:[#allocation8 + $0x18a8] sm:$0xff]
    %v1264 = vld [vmem:[#allocation8 + $0x18b0] sm:$0xff]
    %v1265 = vld [vmem:[#allocation8 + $0x18b8] sm:$0xff]
    %v1266 = vld [vmem:[#allocation8 + $0x18c0] sm:$0xff]
    %v1267 = vld [vmem:[#allocation8 + $0x18c8] sm:$0xff]
    %v1268 = vld [vmem:[#allocation8 + $0x18d0] sm:$0xff]
    %v1269 = vld [vmem:[#allocation8 + $0x18d8] sm:$0xff]
    %v1270 = vld [vmem:[#allocation8 + $0x18e0] sm:$0xff]
    %v1271 = vld [vmem:[#allocation8 + $0x18e8] sm:$0xff]
    %v1272 = vld [vmem:[#allocation8 + $0x18f0] sm:$0xff]
    %v1273 = vld [vmem:[#allocation8 + $0x18f8] sm:$0xff]
    %v1274 = vld [vmem:[#allocation8 + $0x1900] sm:$0xff]
    %v1275 = vld [vmem:[#allocation8 + $0x1908] sm:$0xff]
    %v1276 = vld [vmem:[#allocation8 + $0x1910] sm:$0xff]
    %v1277 = vld [vmem:[#allocation8 + $0x1918] sm:$0xff]
    %v1278 = vld [vmem:[#allocation8 + $0x1920] sm:$0xff]
    %v1279 = vld [vmem:[#allocation8 + $0x1928] sm:$0xff]
    %v1280 = vld [vmem:[#allocation8 + $0x1930] sm:$0xff]
    %v1281 = vld [vmem:[#allocation8 + $0x1938] sm:$0xff]
    %v1282 = vld [vmem:[#allocation8 + $0x1940] sm:$0xff]
    %v1283 = vld [vmem:[#allocation8 + $0x1948] sm:$0xff]
    %v1284 = vld [vmem:[#allocation8 + $0x1950] sm:$0xff]
    %v1285 = vld [vmem:[#allocation8 + $0x1958] sm:$0xff]
    %v1286 = vld [vmem:[#allocation8 + $0x1960] sm:$0xff]
    %v1287 = vld [vmem:[#allocation8 + $0x1968] sm:$0xff]
    %v1288 = vld [vmem:[#allocation8 + $0x1970] sm:$0xff]
    %v1289 = vld [vmem:[#allocation8 + $0x1978] sm:$0xff]
    %v1290 = vld [vmem:[#allocation8 + $0x1980] sm:$0xff]
    %v1291 = vld [vmem:[#allocation8 + $0x1988] sm:$0xff]
    %v1292 = vld [vmem:[#allocation8 + $0x1990] sm:$0xff]
    %v1293 = vld [vmem:[#allocation8 + $0x1998] sm:$0xff]
    %v1294 = vld [vmem:[#allocation8 + $0x19a0] sm:$0xff]
    %v1295 = vld [vmem:[#allocation8 + $0x19a8] sm:$0xff]
    %v1296 = vld [vmem:[#allocation8 + $0x19b0] sm:$0xff]
    %v1297 = vld [vmem:[#allocation8 + $0x19b8] sm:$0xff]
    %v1298 = vld [vmem:[#allocation8 + $0x19c0] sm:$0xff]
    %v1299 = vld [vmem:[#allocation8 + $0x19c8] sm:$0xff]
    %v1300 = vld [vmem:[#allocation8 + $0x19d0] sm:$0xff]
    %v1301 = vld [vmem:[#allocation8 + $0x19d8] sm:$0xff]
    %v1302 = vld [vmem:[#allocation8 + $0x19e0] sm:$0xff]
    %v1303 = vld [vmem:[#allocation8 + $0x19e8] sm:$0xff]
    %v1304 = vld [vmem:[#allocation8 + $0x19f0] sm:$0xff]
    %v1305 = vld [vmem:[#allocation8 + $0x19f8] sm:$0xff]
    %v1306 = vld [vmem:[#allocation8 + $0x1a00] sm:$0xff]
    %v1307 = vld [vmem:[#allocation8 + $0x1a08] sm:$0xff]
    %v1308 = vld [vmem:[#allocation8 + $0x1a10] sm:$0xff]
    %v1309 = vld [vmem:[#allocation8 + $0x1a18] sm:$0xff]
    %v1310 = vld [vmem:[#allocation8 + $0x1a20] sm:$0xff]
    %v1311 = vld [vmem:[#allocation8 + $0x1a28] sm:$0xff]
    %v1312 = vld [vmem:[#allocation8 + $0x1a30] sm:$0xff]
    %v1313 = vld [vmem:[#allocation8 + $0x1a38] sm:$0xff]
    %v1314 = vld [vmem:[#allocation8 + $0x1a40] sm:$0xff]
    %v1315 = vld [vmem:[#allocation8 + $0x1a48] sm:$0xff]
    %v1316 = vld [vmem:[#allocation8 + $0x1a50] sm:$0xff]
    %v1317 = vld [vmem:[#allocation8 + $0x1a58] sm:$0xff]
    %v1318 = vld [vmem:[#allocation8 + $0x1a60] sm:$0xff]
    %v1319 = vld [vmem:[#allocation8 + $0x1a68] sm:$0xff]
    %v1320 = vld [vmem:[#allocation8 + $0x1a70] sm:$0xff]
    %v1321 = vld [vmem:[#allocation8 + $0x1a78] sm:$0xff]
    %v1322 = vld [vmem:[#allocation8 + $0x1a80] sm:$0xff]
    %v1323 = vld [vmem:[#allocation8 + $0x1a88] sm:$0xff]
    %v1324 = vld [vmem:[#allocation8 + $0x1a90] sm:$0xff]
    %v1325 = vld [vmem:[#allocation8 + $0x1a98] sm:$0xff]
    %v1326 = vld [vmem:[#allocation8 + $0x1aa0] sm:$0xff]
    %v1327 = vld [vmem:[#allocation8 + $0x1aa8] sm:$0xff]
    %v1328 = vld [vmem:[#allocation8 + $0x1ab0] sm:$0xff]
    %v1329 = vld [vmem:[#allocation8 + $0x1ab8] sm:$0xff]
    %v1330 = vld [vmem:[#allocation8 + $0x1ac0] sm:$0xff]
    %v1331 = vld [vmem:[#allocation8 + $0x1ac8] sm:$0xff]
    %v1332 = vld [vmem:[#allocation8 + $0x1ad0] sm:$0xff]
    %v1333 = vld [vmem:[#allocation8 + $0x1ad8] sm:$0xff]
    %v1334 = vld [vmem:[#allocation8 + $0x1ae0] sm:$0xff]
    %v1335 = vld [vmem:[#allocation8 + $0x1ae8] sm:$0xff]
    %v1336 = vld [vmem:[#allocation8 + $0x1af0] sm:$0xff]
    %v1337 = vld [vmem:[#allocation8 + $0x1af8] sm:$0xff]
    %v1338 = vld [vmem:[#allocation8 + $0x1b00] sm:$0xff]
    %v1339 = vld [vmem:[#allocation8 + $0x1b08] sm:$0xff]
    %v1340 = vld [vmem:[#allocation8 + $0x1b10] sm:$0xff]
    %v1341 = vld [vmem:[#allocation8 + $0x1b18] sm:$0xff]
    %v1342 = vld [vmem:[#allocation8 + $0x1b20] sm:$0xff]
    %v1343 = vld [vmem:[#allocation8 + $0x1b28] sm:$0xff]
    %v1344 = vld [vmem:[#allocation8 + $0x1b30] sm:$0xff]
    %v1345 = vld [vmem:[#allocation8 + $0x1b38] sm:$0xff]
    %v1346 = vld [vmem:[#allocation8 + $0x1b40] sm:$0xff]
    %v1347 = vld [vmem:[#allocation8 + $0x1b48] sm:$0xff]
    %v1348 = vld [vmem:[#allocation8 + $0x1b50] sm:$0xff]
    %v1349 = vld [vmem:[#allocation8 + $0x1b58] sm:$0xff]
    %v1350 = vld [vmem:[#allocation8 + $0x1b60] sm:$0xff]
    %v1351 = vld [vmem:[#allocation8 + $0x1b68] sm:$0xff]
    %v1352 = vld [vmem:[#allocation8 + $0x1b70] sm:$0xff]
    %v1353 = vld [vmem:[#allocation8 + $0x1b78] sm:$0xff]
    %v1354 = vld [vmem:[#allocation8 + $0x1b80] sm:$0xff]
    %v1355 = vld [vmem:[#allocation8 + $0x1b88] sm:$0xff]
    %v1356 = vld [vmem:[#allocation8 + $0x1b90] sm:$0xff]
    %v1357 = vld [vmem:[#allocation8 + $0x1b98] sm:$0xff]
    %v1358 = vld [vmem:[#allocation8 + $0x1ba0] sm:$0xff]
    %v1359 = vld [vmem:[#allocation8 + $0x1ba8] sm:$0xff]
    %v1360 = vld [vmem:[#allocation8 + $0x1bb0] sm:$0xff]
    %v1361 = vld [vmem:[#allocation8 + $0x1bb8] sm:$0xff]
    %v1362 = vld [vmem:[#allocation8 + $0x1bc0] sm:$0xff]
    %v1363 = vld [vmem:[#allocation8 + $0x1bc8] sm:$0xff]
    %v1364 = vld [vmem:[#allocation8 + $0x1bd0] sm:$0xff]
    %v1365 = vld [vmem:[#allocation8 + $0x1bd8] sm:$0xff]
    %v1366 = vld [vmem:[#allocation8 + $0x1be0] sm:$0xff]
    %v1367 = vld [vmem:[#allocation8 + $0x1be8] sm:$0xff]
    %v1368 = vld [vmem:[#allocation8 + $0x1bf0] sm:$0xff]
    %v1369 = vld [vmem:[#allocation8 + $0x1bf8] sm:$0xff]
    %v1370 = vld [vmem:[#allocation8 + $0x1c00] sm:$0xff]
    %v1371 = vld [vmem:[#allocation8 + $0x1c08] sm:$0xff]
    %v1372 = vld [vmem:[#allocation8 + $0x1c10] sm:$0xff]
    %v1373 = vld [vmem:[#allocation8 + $0x1c18] sm:$0xff]
    %v1374 = vld [vmem:[#allocation8 + $0x1c20] sm:$0xff]
    %v1375 = vld [vmem:[#allocation8 + $0x1c28] sm:$0xff]
    %v1376 = vld [vmem:[#allocation8 + $0x1c30] sm:$0xff]
    %v1377 = vld [vmem:[#allocation8 + $0x1c38] sm:$0xff]
    %v1378 = vld [vmem:[#allocation8 + $0x1c40] sm:$0xff]
    %v1379 = vld [vmem:[#allocation8 + $0x1c48] sm:$0xff]
    %v1380 = vld [vmem:[#allocation8 + $0x1c50] sm:$0xff]
    %v1381 = vld [vmem:[#allocation8 + $0x1c58] sm:$0xff]
    %v1382 = vld [vmem:[#allocation8 + $0x1c60] sm:$0xff]
    %v1383 = vld [vmem:[#allocation8 + $0x1c68] sm:$0xff]
    %v1384 = vld [vmem:[#allocation8 + $0x1c70] sm:$0xff]
    %v1385 = vld [vmem:[#allocation8 + $0x1c78] sm:$0xff]
    %v1386 = vld [vmem:[#allocation8 + $0x1c80] sm:$0xff]
    %v1387 = vld [vmem:[#allocation8 + $0x1c88] sm:$0xff]
    %v1388 = vld [vmem:[#allocation8 + $0x1c90] sm:$0xff]
    %v1389 = vld [vmem:[#allocation8 + $0x1c98] sm:$0xff]
    %v1390 = vld [vmem:[#allocation8 + $0x1ca0] sm:$0xff]
    %v1391 = vld [vmem:[#allocation8 + $0x1ca8] sm:$0xff]
    %v1392 = vld [vmem:[#allocation8 + $0x1cb0] sm:$0xff]
    %v1393 = vld [vmem:[#allocation8 + $0x1cb8] sm:$0xff]
    %v1394 = vld [vmem:[#allocation8 + $0x1cc0] sm:$0xff]
    %v1395 = vld [vmem:[#allocation8 + $0x1cc8] sm:$0xff]
    %v1396 = vld [vmem:[#allocation8 + $0x1cd0] sm:$0xff]
    %v1397 = vld [vmem:[#allocation8 + $0x1cd8] sm:$0xff]
    %v1398 = vld [vmem:[#allocation8 + $0x1ce0] sm:$0xff]
    %v1399 = vld [vmem:[#allocation8 + $0x1ce8] sm:$0xff]
    %v1400 = vld [vmem:[#allocation8 + $0x1cf0] sm:$0xff]
    %v1401 = vld [vmem:[#allocation8 + $0x1cf8] sm:$0xff]
    %v1402 = vld [vmem:[#allocation8 + $0x1d00] sm:$0xff]
    %v1403 = vld [vmem:[#allocation8 + $0x1d08] sm:$0xff]
    %v1404 = vld [vmem:[#allocation8 + $0x1d10] sm:$0xff]
    %v1405 = vld [vmem:[#allocation8 + $0x1d18] sm:$0xff]
    %v1406 = vld [vmem:[#allocation8 + $0x1d20] sm:$0xff]
    %v1407 = vld [vmem:[#allocation8 + $0x1d28] sm:$0xff]
    %v1408 = vld [vmem:[#allocation8 + $0x1d30] sm:$0xff]
    %v1409 = vld [vmem:[#allocation8 + $0x1d38] sm:$0xff]
    %v1410 = vld [vmem:[#allocation8 + $0x1d40] sm:$0xff]
    %v1411 = vld [vmem:[#allocation8 + $0x1d48] sm:$0xff]
    %v1412 = vld [vmem:[#allocation8 + $0x1d50] sm:$0xff]
    %v1413 = vld [vmem:[#allocation8 + $0x1d58] sm:$0xff]
    %v1414 = vld [vmem:[#allocation8 + $0x1d60] sm:$0xff]
    %v1415 = vld [vmem:[#allocation8 + $0x1d68] sm:$0xff]
    %v1416 = vld [vmem:[#allocation8 + $0x1d70] sm:$0xff]
    %v1417 = vld [vmem:[#allocation8 + $0x1d78] sm:$0xff]
    %v1418 = vld [vmem:[#allocation8 + $0x1d80] sm:$0xff]
    %v1419 = vld [vmem:[#allocation8 + $0x1d88] sm:$0xff]
    %v1420 = vld [vmem:[#allocation8 + $0x1d90] sm:$0xff]
    %v1421 = vld [vmem:[#allocation8 + $0x1d98] sm:$0xff]
    %v1422 = vld [vmem:[#allocation8 + $0x1da0] sm:$0xff]
    %v1423 = vld [vmem:[#allocation8 + $0x1da8] sm:$0xff]
    %v1424 = vld [vmem:[#allocation8 + $0x1db0] sm:$0xff]
    %v1425 = vld [vmem:[#allocation8 + $0x1db8] sm:$0xff]
    %v1426 = vld [vmem:[#allocation8 + $0x1dc0] sm:$0xff]
    %v1427 = vld [vmem:[#allocation8 + $0x1dc8] sm:$0xff]
    %v1428 = vld [vmem:[#allocation8 + $0x1dd0] sm:$0xff]
    %v1429 = vld [vmem:[#allocation8 + $0x1dd8] sm:$0xff]
    %v1430 = vld [vmem:[#allocation8 + $0x1de0] sm:$0xff]
    %v1431 = vld [vmem:[#allocation8 + $0x1de8] sm:$0xff]
    %v1432 = vld [vmem:[#allocation8 + $0x1df0] sm:$0xff]
    %v1433 = vld [vmem:[#allocation8 + $0x1df8] sm:$0xff]
    %v1434 = vld [vmem:[#allocation8 + $0x1e00] sm:$0xff]
    %v1435 = vld [vmem:[#allocation8 + $0x1e08] sm:$0xff]
    %v1436 = vld [vmem:[#allocation8 + $0x1e10] sm:$0xff]
    %v1437 = vld [vmem:[#allocation8 + $0x1e18] sm:$0xff]
    %v1438 = vld [vmem:[#allocation8 + $0x1e20] sm:$0xff]
    %v1439 = vld [vmem:[#allocation8 + $0x1e28] sm:$0xff]
    %v1440 = vld [vmem:[#allocation8 + $0x1e30] sm:$0xff]
    %v1441 = vld [vmem:[#allocation8 + $0x1e38] sm:$0xff]
    %v1442 = vld [vmem:[#allocation8 + $0x1e40] sm:$0xff]
    %v1443 = vld [vmem:[#allocation8 + $0x1e48] sm:$0xff]
    %v1444 = vld [vmem:[#allocation8 + $0x1e50] sm:$0xff]
    %v1445 = vld [vmem:[#allocation8 + $0x1e58] sm:$0xff]
    %v1446 = vld [vmem:[#allocation8 + $0x1e60] sm:$0xff]
    %v1447 = vld [vmem:[#allocation8 + $0x1e68] sm:$0xff]
    %v1448 = vld [vmem:[#allocation8 + $0x1e70] sm:$0xff]
    %v1449 = vld [vmem:[#allocation8 + $0x1e78] sm:$0xff]
    %v1450 = vld [vmem:[#allocation8 + $0x1e80] sm:$0xff]
    %v1451 = vld [vmem:[#allocation8 + $0x1e88] sm:$0xff]
    %v1452 = vld [vmem:[#allocation8 + $0x1e90] sm:$0xff]
    %v1453 = vld [vmem:[#allocation8 + $0x1e98] sm:$0xff]
    %v1454 = vld [vmem:[#allocation8 + $0x1ea0] sm:$0xff]
    %v1455 = vld [vmem:[#allocation8 + $0x1ea8] sm:$0xff]
    %v1456 = vld [vmem:[#allocation8 + $0x1eb0] sm:$0xff]
    %v1457 = vld [vmem:[#allocation8 + $0x1eb8] sm:$0xff]
    %v1458 = vld [vmem:[#allocation8 + $0x1ec0] sm:$0xff]
    %v1459 = vld [vmem:[#allocation8 + $0x1ec8] sm:$0xff]
    %v1460 = vld [vmem:[#allocation8 + $0x1ed0] sm:$0xff]
    %v1461 = vld [vmem:[#allocation8 + $0x1ed8] sm:$0xff]
    %v1462 = vld [vmem:[#allocation8 + $0x1ee0] sm:$0xff]
    %v1463 = vld [vmem:[#allocation8 + $0x1ee8] sm:$0xff]
    %v1464 = vld [vmem:[#allocation8 + $0x1ef0] sm:$0xff]
    %v1465 = vld [vmem:[#allocation8 + $0x1ef8] sm:$0xff]
    %v1466 = vld [vmem:[#allocation8 + $0x1f00] sm:$0xff]
    %v1467 = vld [vmem:[#allocation8 + $0x1f08] sm:$0xff]
    %v1468 = vld [vmem:[#allocation8 + $0x1f10] sm:$0xff]
    %v1469 = vld [vmem:[#allocation8 + $0x1f18] sm:$0xff]
    %v1470 = vld [vmem:[#allocation8 + $0x1f20] sm:$0xff]
    %v1471 = vld [vmem:[#allocation8 + $0x1f28] sm:$0xff]
    %v1472 = vld [vmem:[#allocation8 + $0x1f30] sm:$0xff]
    %v1473 = vld [vmem:[#allocation8 + $0x1f38] sm:$0xff]
    %v1474 = vld [vmem:[#allocation8 + $0x1f40] sm:$0xff]
    %v1475 = vld [vmem:[#allocation8 + $0x1f48] sm:$0xff]
    %v1476 = vld [vmem:[#allocation8 + $0x1f50] sm:$0xff]
    %v1477 = vld [vmem:[#allocation8 + $0x1f58] sm:$0xff]
    %v1478 = vld [vmem:[#allocation8 + $0x1f60] sm:$0xff]
    %v1479 = vld [vmem:[#allocation8 + $0x1f68] sm:$0xff]
    %v1480 = vld [vmem:[#allocation8 + $0x1f70] sm:$0xff]
    %v1481 = vld [vmem:[#allocation8 + $0x1f78] sm:$0xff]
    %v1482 = vld [vmem:[#allocation8 + $0x1f80] sm:$0xff]
    %v1483 = vld [vmem:[#allocation8 + $0x1f88] sm:$0xff]
    %v1484 = vld [vmem:[#allocation8 + $0x1f90] sm:$0xff]
    %v1485 = vld [vmem:[#allocation8 + $0x1f98] sm:$0xff]
    %v1486 = vld [vmem:[#allocation8 + $0x1fa0] sm:$0xff]
    %v1487 = vld [vmem:[#allocation8 + $0x1fa8] sm:$0xff]
    %v1488 = vld [vmem:[#allocation8 + $0x1fb0] sm:$0xff]
    %v1489 = vld [vmem:[#allocation8 + $0x1fb8] sm:$0xff]
    %v1490 = vld [vmem:[#allocation8 + $0x1fc0] sm:$0xff]
    %v1491 = vld [vmem:[#allocation8 + $0x1fc8] sm:$0xff]
    %v1492 = vld [vmem:[#allocation8 + $0x1fd0] sm:$0xff]
    %v1493 = vld [vmem:[#allocation8 + $0x1fd8] sm:$0xff]
    %v1494 = vld [vmem:[#allocation8 + $0x1fe0] sm:$0xff]
    %v1495 = vld [vmem:[#allocation8 + $0x1fe8] sm:$0xff]
    %v1496 = vld [vmem:[#allocation8 + $0x1ff0] sm:$0xff]
    %v1497 = vld [vmem:[#allocation8 + $0x1ff8] sm:$0xff]
    %v1498 = vld [vmem:[#allocation10] sm:$0xff]
    %v1500 = vlaneseq
    %v1501 = vshrl.u32 %v1500, 7
    %v1502 = vsub.s32 0, %v1501
    %v1503 = vrot.slane %v1498, %v1502
    %v1504 = vlaneseq
    %v1505 = vshrl.u32 %v1504, 7
    %v1506 = vsub.s32 1, %v1505
    %v1507 = vrot.slane %v1498, %v1506
    %v1508 = vlaneseq
    %v1509 = vshrl.u32 %v1508, 7
    %v1510 = vsub.s32 2, %v1509
    %v1511 = vrot.slane %v1498, %v1510
    %v1512 = vlaneseq
    %v1513 = vshrl.u32 %v1512, 7
    %v1514 = vsub.s32 3, %v1513
    %v1515 = vrot.slane %v1498, %v1514
    %v1516 = vlaneseq
    %v1517 = vshrl.u32 %v1516, 7
    %v1518 = vsub.s32 4, %v1517
    %v1519 = vrot.slane %v1498, %v1518
    %v1520 = vlaneseq
    %v1521 = vshrl.u32 %v1520, 7
    %v1522 = vsub.s32 5, %v1521
    %v1523 = vrot.slane %v1498, %v1522
    %v1524 = vlaneseq
    %v1525 = vshrl.u32 %v1524, 7
    %v1526 = vsub.s32 6, %v1525
    %v1527 = vrot.slane %v1498, %v1526
    %v1528 = vlaneseq
    %v1529 = vshrl.u32 %v1528, 7
    %v1530 = vsub.s32 7, %v1529
    %v1531 = vrot.slane %v1498, %v1530
    %1540 = vmatprep.subr.mxu0 %v475
    %1541 = vmatpush1.msra.mxu0 %v474
    %1542 = vmatprep.subr.mxu0 %v483
    %1543 = vmatpush1.msra.mxu0 %v482
    %1544 = vmatprep.subr.mxu0 %v491
    %1545 = vmatpush1.msra.mxu0 %v490
    %1546 = vmatprep.subr.mxu0 %v499
    %1547 = vmatpush1.msra.mxu0 %v498
    %1548 = vmatprep.subr.mxu0 %v507
    %1549 = vmatpush1.msra.mxu0 %v506
    %1550 = vmatprep.subr.mxu0 %v515
    %1551 = vmatpush1.msra.mxu0 %v514
    %1552 = vmatprep.subr.mxu0 %v523
    %1553 = vmatpush1.msra.mxu0 %v522
    %1554 = vmatprep.subr.mxu0 %v531
    %1555 = vmatpush1.msra.mxu0 %v530
    %1556 = vmatprep.subr.mxu0 %v539
    %1557 = vmatpush1.msra.mxu0 %v538
    %1558 = vmatprep.subr.mxu0 %v547
    %1559 = vmatpush1.msra.mxu0 %v546
    %1560 = vmatprep.subr.mxu0 %v555
    %1561 = vmatpush1.msra.mxu0 %v554
    %1562 = vmatprep.subr.mxu0 %v563
    %1563 = vmatpush1.msra.mxu0 %v562
    %1564 = vmatprep.subr.mxu0 %v571
    %1565 = vmatpush1.msra.mxu0 %v570
    %1566 = vmatprep.subr.mxu0 %v579
    %1567 = vmatpush1.msra.mxu0 %v578
    %1568 = vmatprep.subr.mxu0 %v587
    %1569 = vmatpush1.msra.mxu0 %v586
    %1570 = vmatprep.subr.mxu0 %v595
    %1571 = vmatpush1.msra.mxu0 %v594
    %1572 = vmatprep.subr.mxu0 %v603
    %1573 = vmatpush1.msra.mxu0 %v602
    %1574 = vmatprep.subr.mxu0 %v611
    %1575 = vmatpush1.msra.mxu0 %v610
    %1576 = vmatprep.subr.mxu0 %v619
    %1577 = vmatpush1.msra.mxu0 %v618
    %1578 = vmatprep.subr.mxu0 %v627
    %1579 = vmatpush1.msra.mxu0 %v626
    %1580 = vmatprep.subr.mxu0 %v635
    %1581 = vmatpush1.msra.mxu0 %v634
    %1582 = vmatprep.subr.mxu0 %v643
    %1583 = vmatpush1.msra.mxu0 %v642
    %1584 = vmatprep.subr.mxu0 %v651
    %1585 = vmatpush1.msra.mxu0 %v650
    %1586 = vmatprep.subr.mxu0 %v659
    %1587 = vmatpush1.msra.mxu0 %v658
    %1588 = vmatprep.subr.mxu0 %v667
    %1589 = vmatpush1.msra.mxu0 %v666
    %1590 = vmatprep.subr.mxu0 %v675
    %1591 = vmatpush1.msra.mxu0 %v674
    %1592 = vmatprep.subr.mxu0 %v683
    %1593 = vmatpush1.msra.mxu0 %v682
    %1594 = vmatprep.subr.mxu0 %v691
    %1595 = vmatpush1.msra.mxu0 %v690
    %1596 = vmatprep.subr.mxu0 %v699
    %1597 = vmatpush1.msra.mxu0 %v698
    %1598 = vmatprep.subr.mxu0 %v707
    %1599 = vmatpush1.msra.mxu0 %v706
    %1600 = vmatprep.subr.mxu0 %v715
    %1601 = vmatpush1.msra.mxu0 %v714
    %1602 = vmatprep.subr.mxu0 %v723
    %1603 = vmatpush1.msra.mxu0 %v722
    %1604 = vmatprep.mubr.f32.mxu0 %v467
    %1605 = vmatmul.mubr.f32.gmra.mrb[0].mxu0 %v466
    %v1606 = vpop.f32.mrb[0].mxu0
    %v1607 = vadd.f32 %v1503, %v1606
    %v1608 = vpop.f32.mrb[0].mxu0
    %v1609 = vadd.f32 %v1507, %v1608
    %1610 = vdwg.mxu0
    %1611 = vmatprep.subr.mxu0 %v731
    %1612 = vmatpush1.msra.mxu0 %v730
    %1613 = vmatprep.subr.mxu0 %v739
    %1614 = vmatpush1.msra.mxu0 %v738
    %1615 = vmatprep.subr.mxu0 %v747
    %1616 = vmatpush1.msra.mxu0 %v746
    %1617 = vmatprep.subr.mxu0 %v755
    %1618 = vmatpush1.msra.mxu0 %v754
    %1619 = vmatprep.subr.mxu0 %v763
    %1620 = vmatpush1.msra.mxu0 %v762
    %1621 = vmatprep.subr.mxu0 %v771
    %1622 = vmatpush1.msra.mxu0 %v770
    %1623 = vmatprep.subr.mxu0 %v779
    %1624 = vmatpush1.msra.mxu0 %v778
    %1625 = vmatprep.subr.mxu0 %v787
    %1626 = vmatpush1.msra.mxu0 %v786
    %1627 = vmatprep.subr.mxu0 %v795
    %1628 = vmatpush1.msra.mxu0 %v794
    %1629 = vmatprep.subr.mxu0 %v803
    %1630 = vmatpush1.msra.mxu0 %v802
    %1631 = vmatprep.subr.mxu0 %v811
    %1632 = vmatpush1.msra.mxu0 %v810
    %1633 = vmatprep.subr.mxu0 %v819
    %1634 = vmatpush1.msra.mxu0 %v818
    %1635 = vmatprep.subr.mxu0 %v827
    %1636 = vmatpush1.msra.mxu0 %v826
    %1637 = vmatprep.subr.mxu0 %v835
    %1638 = vmatpush1.msra.mxu0 %v834
    %1639 = vmatprep.subr.mxu0 %v843
    %1640 = vmatpush1.msra.mxu0 %v842
    %1641 = vmatprep.subr.mxu0 %v851
    %1642 = vmatpush1.msra.mxu0 %v850
    %1643 = vmatprep.subr.mxu0 %v859
    %1644 = vmatpush1.msra.mxu0 %v858
    %1645 = vmatprep.subr.mxu0 %v867
    %1646 = vmatpush1.msra.mxu0 %v866
    %1647 = vmatprep.subr.mxu0 %v875
    %1648 = vmatpush1.msra.mxu0 %v874
    %1649 = vmatprep.subr.mxu0 %v883
    %1650 = vmatpush1.msra.mxu0 %v882
    %1651 = vmatprep.subr.mxu0 %v891
    %1652 = vmatpush1.msra.mxu0 %v890
    %1653 = vmatprep.subr.mxu0 %v899
    %1654 = vmatpush1.msra.mxu0 %v898
    %1655 = vmatprep.subr.mxu0 %v907
    %1656 = vmatpush1.msra.mxu0 %v906
    %1657 = vmatprep.subr.mxu0 %v915
    %1658 = vmatpush1.msra.mxu0 %v914
    %1659 = vmatprep.subr.mxu0 %v923
    %1660 = vmatpush1.msra.mxu0 %v922
    %1661 = vmatprep.subr.mxu0 %v931
    %1662 = vmatpush1.msra.mxu0 %v930
    %1663 = vmatprep.subr.mxu0 %v939
    %1664 = vmatpush1.msra.mxu0 %v938
    %1665 = vmatprep.subr.mxu0 %v947
    %1666 = vmatpush1.msra.mxu0 %v946
    %1667 = vmatprep.subr.mxu0 %v955
    %1668 = vmatpush1.msra.mxu0 %v954
    %1669 = vmatprep.subr.mxu0 %v963
    %1670 = vmatpush1.msra.mxu0 %v962
    %1671 = vmatprep.subr.mxu0 %v971
    %1672 = vmatpush1.msra.mxu0 %v970
    %1673 = vmatprep.subr.mxu0 %v979
    %1674 = vmatpush1.msra.mxu0 %v978
    %1675 = vmatprep.mubr.f32.mxu0 %v469
    %1676 = vmatmul.mubr.f32.gmra.mrb[0].mxu0 %v468
    %v1677 = vpop.f32.mrb[0].mxu0
    %v1678 = vadd.f32 %v1607, %v1677
    %v1679 = vpop.f32.mrb[0].mxu0
    %v1680 = vadd.f32 %v1609, %v1679
    %1681 = vdwg.mxu0
    %1682 = vmatprep.subr.mxu0 %v987
    %1683 = vmatpush1.msra.mxu0 %v986
    %1684 = vmatprep.subr.mxu0 %v995
    %1685 = vmatpush1.msra.mxu0 %v994
    %1686 = vmatprep.subr.mxu0 %v1003
    %1687 = vmatpush1.msra.mxu0 %v1002
    %1688 = vmatprep.subr.mxu0 %v1011
    %1689 = vmatpush1.msra.mxu0 %v1010
    %1690 = vmatprep.subr.mxu0 %v1019
    %1691 = vmatpush1.msra.mxu0 %v1018
    %1692 = vmatprep.subr.mxu0 %v1027
    %1693 = vmatpush1.msra.mxu0 %v1026
    %1694 = vmatprep.subr.mxu0 %v1035
    %1695 = vmatpush1.msra.mxu0 %v1034
    %1696 = vmatprep.subr.mxu0 %v1043
    %1697 = vmatpush1.msra.mxu0 %v1042
    %1698 = vmatprep.subr.mxu0 %v1051
    %1699 = vmatpush1.msra.mxu0 %v1050
    %1700 = vmatprep.subr.mxu0 %v1059
    %1701 = vmatpush1.msra.mxu0 %v1058
    %1702 = vmatprep.subr.mxu0 %v1067
    %1703 = vmatpush1.msra.mxu0 %v1066
    %1704 = vmatprep.subr.mxu0 %v1075
    %1705 = vmatpush1.msra.mxu0 %v1074
    %1706 = vmatprep.subr.mxu0 %v1083
    %1707 = vmatpush1.msra.mxu0 %v1082
    %1708 = vmatprep.subr.mxu0 %v1091
    %1709 = vmatpush1.msra.mxu0 %v1090
    %1710 = vmatprep.subr.mxu0 %v1099
    %1711 = vmatpush1.msra.mxu0 %v1098
    %1712 = vmatprep.subr.mxu0 %v1107
    %1713 = vmatpush1.msra.mxu0 %v1106
    %1714 = vmatprep.subr.mxu0 %v1115
    %1715 = vmatpush1.msra.mxu0 %v1114
    %1716 = vmatprep.subr.mxu0 %v1123
    %1717 = vmatpush1.msra.mxu0 %v1122
    %1718 = vmatprep.subr.mxu0 %v1131
    %1719 = vmatpush1.msra.mxu0 %v1130
    %1720 = vmatprep.subr.mxu0 %v1139
    %1721 = vmatpush1.msra.mxu0 %v1138
    %1722 = vmatprep.subr.mxu0 %v1147
    %1723 = vmatpush1.msra.mxu0 %v1146
    %1724 = vmatprep.subr.mxu0 %v1155
    %1725 = vmatpush1.msra.mxu0 %v1154
    %1726 = vmatprep.subr.mxu0 %v1163
    %1727 = vmatpush1.msra.mxu0 %v1162
    %1728 = vmatprep.subr.mxu0 %v1171
    %1729 = vmatpush1.msra.mxu0 %v1170
    %1730 = vmatprep.subr.mxu0 %v1179
    %1731 = vmatpush1.msra.mxu0 %v1178
    %1732 = vmatprep.subr.mxu0 %v1187
    %1733 = vmatpush1.msra.mxu0 %v1186
    %1734 = vmatprep.subr.mxu0 %v1195
    %1735 = vmatpush1.msra.mxu0 %v1194
    %1736 = vmatprep.subr.mxu0 %v1203
    %1737 = vmatpush1.msra.mxu0 %v1202
    %1738 = vmatprep.subr.mxu0 %v1211
    %1739 = vmatpush1.msra.mxu0 %v1210
    %1740 = vmatprep.subr.mxu0 %v1219
    %1741 = vmatpush1.msra.mxu0 %v1218
    %1742 = vmatprep.subr.mxu0 %v1227
    %1743 = vmatpush1.msra.mxu0 %v1226
    %1744 = vmatprep.subr.mxu0 %v1235
    %1745 = vmatpush1.msra.mxu0 %v1234
    %1746 = vmatprep.mubr.f32.mxu0 %v471
    %1747 = vmatmul.mubr.f32.gmra.mrb[0].mxu0 %v470
    %v1748 = vpop.f32.mrb[0].mxu0
    %v1749 = vadd.f32 %v1678, %v1748
    %v1750 = vpop.f32.mrb[0].mxu0
    %v1751 = vadd.f32 %v1680, %v1750
    %1752 = vdwg.mxu0
    %1753 = vmatprep.subr.mxu0 %v1243
    %1754 = vmatpush1.msra.mxu0 %v1242
    %1755 = vmatprep.subr.mxu0 %v1251
    %1756 = vmatpush1.msra.mxu0 %v1250
    %1757 = vmatprep.subr.mxu0 %v1259
    %1758 = vmatpush1.msra.mxu0 %v1258
    %1759 = vmatprep.subr.mxu0 %v1267
    %1760 = vmatpush1.msra.mxu0 %v1266
    %1761 = vmatprep.subr.mxu0 %v1275
    %1762 = vmatpush1.msra.mxu0 %v1274
    %1763 = vmatprep.subr.mxu0 %v1283
    %1764 = vmatpush1.msra.mxu0 %v1282
    %1765 = vmatprep.subr.mxu0 %v1291
    %1766 = vmatpush1.msra.mxu0 %v1290
    %1767 = vmatprep.subr.mxu0 %v1299
    %1768 = vmatpush1.msra.mxu0 %v1298
    %1769 = vmatprep.subr.mxu0 %v1307
    %1770 = vmatpush1.msra.mxu0 %v1306
    %1771 = vmatprep.subr.mxu0 %v1315
    %1772 = vmatpush1.msra.mxu0 %v1314
    %1773 = vmatprep.subr.mxu0 %v1323
    %1774 = vmatpush1.msra.mxu0 %v1322
    %1775 = vmatprep.subr.mxu0 %v1331
    %1776 = vmatpush1.msra.mxu0 %v1330
    %1777 = vmatprep.subr.mxu0 %v1339
    %1778 = vmatpush1.msra.mxu0 %v1338
    %1779 = vmatprep.subr.mxu0 %v1347
    %1780 = vmatpush1.msra.mxu0 %v1346
    %1781 = vmatprep.subr.mxu0 %v1355
    %1782 = vmatpush1.msra.mxu0 %v1354
    %1783 = vmatprep.subr.mxu0 %v1363
    %1784 = vmatpush1.msra.mxu0 %v1362
    %1785 = vmatprep.subr.mxu0 %v1371
    %1786 = vmatpush1.msra.mxu0 %v1370
    %1787 = vmatprep.subr.mxu0 %v1379
    %1788 = vmatpush1.msra.mxu0 %v1378
    %1789 = vmatprep.subr.mxu0 %v1387
    %1790 = vmatpush1.msra.mxu0 %v1386
    %1791 = vmatprep.subr.mxu0 %v1395
    %1792 = vmatpush1.msra.mxu0 %v1394
    %1793 = vmatprep.subr.mxu0 %v1403
    %1794 = vmatpush1.msra.mxu0 %v1402
    %1795 = vmatprep.subr.mxu0 %v1411
    %1796 = vmatpush1.msra.mxu0 %v1410
    %1797 = vmatprep.subr.mxu0 %v1419
    %1798 = vmatpush1.msra.mxu0 %v1418
    %1799 = vmatprep.subr.mxu0 %v1427
    %1800 = vmatpush1.msra.mxu0 %v1426
    %1801 = vmatprep.subr.mxu0 %v1435
    %1802 = vmatpush1.msra.mxu0 %v1434
    %1803 = vmatprep.subr.mxu0 %v1443
    %1804 = vmatpush1.msra.mxu0 %v1442
    %1805 = vmatprep.subr.mxu0 %v1451
    %1806 = vmatpush1.msra.mxu0 %v1450
    %1807 = vmatprep.subr.mxu0 %v1459
    %1808 = vmatpush1.msra.mxu0 %v1458
    %1809 = vmatprep.subr.mxu0 %v1467
    %1810 = vmatpush1.msra.mxu0 %v1466
    %1811 = vmatprep.subr.mxu0 %v1475
    %1812 = vmatpush1.msra.mxu0 %v1474
    %1813 = vmatprep.subr.mxu0 %v1483
    %1814 = vmatpush1.msra.mxu0 %v1482
    %1815 = vmatprep.subr.mxu0 %v1491
    %1816 = vmatpush1.msra.mxu0 %v1490
    %1817 = vmatprep.mubr.f32.mxu0 %v473
    %1818 = vmatmul.mubr.f32.gmra.mrb[0].mxu0 %v472
    %v1819 = vpop.f32.mrb[0].mxu0
    %v1820 = vadd.f32 %v1749, %v1819
    %v1821 = vpop.f32.mrb[0].mxu0
    %v1822 = vadd.f32 %v1751, %v1821
    %1823 = vdwg.mxu0
    %1824 = vmatprep.subr.mxu0 %v477
    %1825 = vmatpush1.msra.mxu0 %v476
    %1826 = vmatprep.subr.mxu0 %v485
    %1827 = vmatpush1.msra.mxu0 %v484
    %1828 = vmatprep.subr.mxu0 %v493
    %1829 = vmatpush1.msra.mxu0 %v492
    %1830 = vmatprep.subr.mxu0 %v501
    %1831 = vmatpush1.msra.mxu0 %v500
    %1832 = vmatprep.subr.mxu0 %v509
    %1833 = vmatpush1.msra.mxu0 %v508
    %1834 = vmatprep.subr.mxu0 %v517
    %1835 = vmatpush1.msra.mxu0 %v516
    %1836 = vmatprep.subr.mxu0 %v525
    %1837 = vmatpush1.msra.mxu0 %v524
    %1838 = vmatprep.subr.mxu0 %v533
    %1839 = vmatpush1.msra.mxu0 %v532
    %1840 = vmatprep.subr.mxu0 %v541
    %1841 = vmatpush1.msra.mxu0 %v540
    %1842 = vmatprep.subr.mxu0 %v549
    %1843 = vmatpush1.msra.mxu0 %v548
    %1844 = vmatprep.subr.mxu0 %v557
    %1845 = vmatpush1.msra.mxu0 %v556
    %1846 = vmatprep.subr.mxu0 %v565
    %1847 = vmatpush1.msra.mxu0 %v564
    %1848 = vmatprep.subr.mxu0 %v573
    %1849 = vmatpush1.msra.mxu0 %v572
    %1850 = vmatprep.subr.mxu0 %v581
    %1851 = vmatpush1.msra.mxu0 %v580
    %1852 = vmatprep.subr.mxu0 %v589
    %1853 = vmatpush1.msra.mxu0 %v588
    %1854 = vmatprep.subr.mxu0 %v597
    %1855 = vmatpush1.msra.mxu0 %v596
    %1856 = vmatprep.subr.mxu0 %v605
    %1857 = vmatpush1.msra.mxu0 %v604
    %1858 = vmatprep.subr.mxu0 %v613
    %1859 = vmatpush1.msra.mxu0 %v612
    %1860 = vmatprep.subr.mxu0 %v621
    %1861 = vmatpush1.msra.mxu0 %v620
    %1862 = vmatprep.subr.mxu0 %v629
    %1863 = vmatpush1.msra.mxu0 %v628
    %1864 = vmatprep.subr.mxu0 %v637
    %1865 = vmatpush1.msra.mxu0 %v636
    %1866 = vmatprep.subr.mxu0 %v645
    %1867 = vmatpush1.msra.mxu0 %v644
    %1868 = vmatprep.subr.mxu0 %v653
    %1869 = vmatpush1.msra.mxu0 %v652
    %1870 = vmatprep.subr.mxu0 %v661
    %1871 = vmatpush1.msra.mxu0 %v660
    %1872 = vmatprep.subr.mxu0 %v669
    %1873 = vmatpush1.msra.mxu0 %v668
    %1874 = vmatprep.subr.mxu0 %v677
    %1875 = vmatpush1.msra.mxu0 %v676
    %1876 = vmatprep.subr.mxu0 %v685
    %1877 = vmatpush1.msra.mxu0 %v684
    %1878 = vmatprep.subr.mxu0 %v693
    %1879 = vmatpush1.msra.mxu0 %v692
    %1880 = vmatprep.subr.mxu0 %v701
    %1881 = vmatpush1.msra.mxu0 %v700
    %1882 = vmatprep.subr.mxu0 %v709
    %1883 = vmatpush1.msra.mxu0 %v708
    %1884 = vmatprep.subr.mxu0 %v717
    %1885 = vmatpush1.msra.mxu0 %v716
    %1886 = vmatprep.subr.mxu0 %v725
    %1887 = vmatpush1.msra.mxu0 %v724
    %1888 = vmatprep.mubr.f32.mxu0 %v467
    %1889 = vmatmul.mubr.f32.gmra.mrb[0].mxu0 %v466
    %v1890 = vpop.f32.mrb[0].mxu0
    %v1891 = vadd.f32 %v1511, %v1890
    %v1892 = vpop.f32.mrb[0].mxu0
    %v1893 = vadd.f32 %v1515, %v1892
    %1894 = vdwg.mxu0
    %1895 = vmatprep.subr.mxu0 %v733
    %1896 = vmatpush1.msra.mxu0 %v732
    %1897 = vmatprep.subr.mxu0 %v741
    %1898 = vmatpush1.msra.mxu0 %v740
    %1899 = vmatprep.subr.mxu0 %v749
    %1900 = vmatpush1.msra.mxu0 %v748
    %1901 = vmatprep.subr.mxu0 %v757
    %1902 = vmatpush1.msra.mxu0 %v756
    %1903 = vmatprep.subr.mxu0 %v765
    %1904 = vmatpush1.msra.mxu0 %v764
    %1905 = vmatprep.subr.mxu0 %v773
    %1906 = vmatpush1.msra.mxu0 %v772
    %1907 = vmatprep.subr.mxu0 %v781
    %1908 = vmatpush1.msra.mxu0 %v780
    %1909 = vmatprep.subr.mxu0 %v789
    %1910 = vmatpush1.msra.mxu0 %v788
    %1911 = vmatprep.subr.mxu0 %v797
    %1912 = vmatpush1.msra.mxu0 %v796
    %1913 = vmatprep.subr.mxu0 %v805
    %1914 = vmatpush1.msra.mxu0 %v804
    %1915 = vmatprep.subr.mxu0 %v813
    %1916 = vmatpush1.msra.mxu0 %v812
    %1917 = vmatprep.subr.mxu0 %v821
    %1918 = vmatpush1.msra.mxu0 %v820
    %1919 = vmatprep.subr.mxu0 %v829
    %1920 = vmatpush1.msra.mxu0 %v828
    %1921 = vmatprep.subr.mxu0 %v837
    %1922 = vmatpush1.msra.mxu0 %v836
    %1923 = vmatprep.subr.mxu0 %v845
    %1924 = vmatpush1.msra.mxu0 %v844
    %1925 = vmatprep.subr.mxu0 %v853
    %1926 = vmatpush1.msra.mxu0 %v852
    %1927 = vmatprep.subr.mxu0 %v861
    %1928 = vmatpush1.msra.mxu0 %v860
    %1929 = vmatprep.subr.mxu0 %v869
    %1930 = vmatpush1.msra.mxu0 %v868
    %1931 = vmatprep.subr.mxu0 %v877
    %1932 = vmatpush1.msra.mxu0 %v876
    %1933 = vmatprep.subr.mxu0 %v885
    %1934 = vmatpush1.msra.mxu0 %v884
    %1935 = vmatprep.subr.mxu0 %v893
    %1936 = vmatpush1.msra.mxu0 %v892
    %1937 = vmatprep.subr.mxu0 %v901
    %1938 = vmatpush1.msra.mxu0 %v900
    %1939 = vmatprep.subr.mxu0 %v909
    %1940 = vmatpush1.msra.mxu0 %v908
    %1941 = vmatprep.subr.mxu0 %v917
    %1942 = vmatpush1.msra.mxu0 %v916
    %1943 = vmatprep.subr.mxu0 %v925
    %1944 = vmatpush1.msra.mxu0 %v924
    %1945 = vmatprep.subr.mxu0 %v933
    %1946 = vmatpush1.msra.mxu0 %v932
    %1947 = vmatprep.subr.mxu0 %v941
    %1948 = vmatpush1.msra.mxu0 %v940
    %1949 = vmatprep.subr.mxu0 %v949
    %1950 = vmatpush1.msra.mxu0 %v948
    %1951 = vmatprep.subr.mxu0 %v957
    %1952 = vmatpush1.msra.mxu0 %v956
    %1953 = vmatprep.subr.mxu0 %v965
    %1954 = vmatpush1.msra.mxu0 %v964
    %1955 = vmatprep.subr.mxu0 %v973
    %1956 = vmatpush1.msra.mxu0 %v972
    %1957 = vmatprep.subr.mxu0 %v981
    %1958 = vmatpush1.msra.mxu0 %v980
    %1959 = vmatprep.mubr.f32.mxu0 %v469
    %1960 = vmatmul.mubr.f32.gmra.mrb[0].mxu0 %v468
    %v1961 = vpop.f32.mrb[0].mxu0
    %v1962 = vadd.f32 %v1891, %v1961
    %v1963 = vpop.f32.mrb[0].mxu0
    %v1964 = vadd.f32 %v1893, %v1963
    %1965 = vdwg.mxu0
    %1966 = vmatprep.subr.mxu0 %v989
    %1967 = vmatpush1.msra.mxu0 %v988
    %1968 = vmatprep.subr.mxu0 %v997
    %1969 = vmatpush1.msra.mxu0 %v996
    %1970 = vmatprep.subr.mxu0 %v1005
    %1971 = vmatpush1.msra.mxu0 %v1004
    %1972 = vmatprep.subr.mxu0 %v1013
    %1973 = vmatpush1.msra.mxu0 %v1012
    %1974 = vmatprep.subr.mxu0 %v1021
    %1975 = vmatpush1.msra.mxu0 %v1020
    %1976 = vmatprep.subr.mxu0 %v1029
    %1977 = vmatpush1.msra.mxu0 %v1028
    %1978 = vmatprep.subr.mxu0 %v1037
    %1979 = vmatpush1.msra.mxu0 %v1036
    %1980 = vmatprep.subr.mxu0 %v1045
    %1981 = vmatpush1.msra.mxu0 %v1044
    %1982 = vmatprep.subr.mxu0 %v1053
    %1983 = vmatpush1.msra.mxu0 %v1052
    %1984 = vmatprep.subr.mxu0 %v1061
    %1985 = vmatpush1.msra.mxu0 %v1060
    %1986 = vmatprep.subr.mxu0 %v1069
    %1987 = vmatpush1.msra.mxu0 %v1068
    %1988 = vmatprep.subr.mxu0 %v1077
    %1989 = vmatpush1.msra.mxu0 %v1076
    %1990 = vmatprep.subr.mxu0 %v1085
    %1991 = vmatpush1.msra.mxu0 %v1084
    %1992 = vmatprep.subr.mxu0 %v1093
    %1993 = vmatpush1.msra.mxu0 %v1092
    %1994 = vmatprep.subr.mxu0 %v1101
    %1995 = vmatpush1.msra.mxu0 %v1100
    %1996 = vmatprep.subr.mxu0 %v1109
    %1997 = vmatpush1.msra.mxu0 %v1108
    %1998 = vmatprep.subr.mxu0 %v1117
    %1999 = vmatpush1.msra.mxu0 %v1116
    %2000 = vmatprep.subr.mxu0 %v1125
    %2001 = vmatpush1.msra.mxu0 %v1124
    %2002 = vmatprep.subr.mxu0 %v1133
    %2003 = vmatpush1.msra.mxu0 %v1132
    %2004 = vmatprep.subr.mxu0 %v1141
    %2005 = vmatpush1.msra.mxu0 %v1140
    %2006 = vmatprep.subr.mxu0 %v1149
    %2007 = vmatpush1.msra.mxu0 %v1148
    %2008 = vmatprep.subr.mxu0 %v1157
    %2009 = vmatpush1.msra.mxu0 %v1156
    %2010 = vmatprep.subr.mxu0 %v1165
    %2011 = vmatpush1.msra.mxu0 %v1164
    %2012 = vmatprep.subr.mxu0 %v1173
    %2013 = vmatpush1.msra.mxu0 %v1172
    %2014 = vmatprep.subr.mxu0 %v1181
    %2015 = vmatpush1.msra.mxu0 %v1180
    %2016 = vmatprep.subr.mxu0 %v1189
    %2017 = vmatpush1.msra.mxu0 %v1188
    %2018 = vmatprep.subr.mxu0 %v1197
    %2019 = vmatpush1.msra.mxu0 %v1196
    %2020 = vmatprep.subr.mxu0 %v1205
    %2021 = vmatpush1.msra.mxu0 %v1204
    %2022 = vmatprep.subr.mxu0 %v1213
    %2023 = vmatpush1.msra.mxu0 %v1212
    %2024 = vmatprep.subr.mxu0 %v1221
    %2025 = vmatpush1.msra.mxu0 %v1220
    %2026 = vmatprep.subr.mxu0 %v1229
    %2027 = vmatpush1.msra.mxu0 %v1228
    %2028 = vmatprep.subr.mxu0 %v1237
    %2029 = vmatpush1.msra.mxu0 %v1236
    %2030 = vmatprep.mubr.f32.mxu0 %v471
    %2031 = vmatmul.mubr.f32.gmra.mrb[0].mxu0 %v470
    %v2032 = vpop.f32.mrb[0].mxu0
    %v2033 = vadd.f32 %v1962, %v2032
    %v2034 = vpop.f32.mrb[0].mxu0
    %v2035 = vadd.f32 %v1964, %v2034
    %2036 = vdwg.mxu0
    %2037 = vmatprep.subr.mxu0 %v1245
    %2038 = vmatpush1.msra.mxu0 %v1244
    %2039 = vmatprep.subr.mxu0 %v1253
    %2040 = vmatpush1.msra.mxu0 %v1252
    %2041 = vmatprep.subr.mxu0 %v1261
    %2042 = vmatpush1.msra.mxu0 %v1260
    %2043 = vmatprep.subr.mxu0 %v1269
    %2044 = vmatpush1.msra.mxu0 %v1268
    %2045 = vmatprep.subr.mxu0 %v1277
    %2046 = vmatpush1.msra.mxu0 %v1276
    %2047 = vmatprep.subr.mxu0 %v1285
    %2048 = vmatpush1.msra.mxu0 %v1284
    %2049 = vmatprep.subr.mxu0 %v1293
    %2050 = vmatpush1.msra.mxu0 %v1292
    %2051 = vmatprep.subr.mxu0 %v1301
    %2052 = vmatpush1.msra.mxu0 %v1300
    %2053 = vmatprep.subr.mxu0 %v1309
    %2054 = vmatpush1.msra.mxu0 %v1308
    %2055 = vmatprep.subr.mxu0 %v1317
    %2056 = vmatpush1.msra.mxu0 %v1316
    %2057 = vmatprep.subr.mxu0 %v1325
    %2058 = vmatpush1.msra.mxu0 %v1324
    %2059 = vmatprep.subr.mxu0 %v1333
    %2060 = vmatpush1.msra.mxu0 %v1332
    %2061 = vmatprep.subr.mxu0 %v1341
    %2062 = vmatpush1.msra.mxu0 %v1340
    %2063 = vmatprep.subr.mxu0 %v1349
    %2064 = vmatpush1.msra.mxu0 %v1348
    %2065 = vmatprep.subr.mxu0 %v1357
    %2066 = vmatpush1.msra.mxu0 %v1356
    %2067 = vmatprep.subr.mxu0 %v1365
    %2068 = vmatpush1.msra.mxu0 %v1364
    %2069 = vmatprep.subr.mxu0 %v1373
    %2070 = vmatpush1.msra.mxu0 %v1372
    %2071 = vmatprep.subr.mxu0 %v1381
    %2072 = vmatpush1.msra.mxu0 %v1380
    %2073 = vmatprep.subr.mxu0 %v1389
    %2074 = vmatpush1.msra.mxu0 %v1388
    %2075 = vmatprep.subr.mxu0 %v1397
    %2076 = vmatpush1.msra.mxu0 %v1396
    %2077 = vmatprep.subr.mxu0 %v1405
    %2078 = vmatpush1.msra.mxu0 %v1404
    %2079 = vmatprep.subr.mxu0 %v1413
    %2080 = vmatpush1.msra.mxu0 %v1412
    %2081 = vmatprep.subr.mxu0 %v1421
    %2082 = vmatpush1.msra.mxu0 %v1420
    %2083 = vmatprep.subr.mxu0 %v1429
    %2084 = vmatpush1.msra.mxu0 %v1428
    %2085 = vmatprep.subr.mxu0 %v1437
    %2086 = vmatpush1.msra.mxu0 %v1436
    %2087 = vmatprep.subr.mxu0 %v1445
    %2088 = vmatpush1.msra.mxu0 %v1444
    %2089 = vmatprep.subr.mxu0 %v1453
    %2090 = vmatpush1.msra.mxu0 %v1452
    %2091 = vmatprep.subr.mxu0 %v1461
    %2092 = vmatpush1.msra.mxu0 %v1460
    %2093 = vmatprep.subr.mxu0 %v1469
    %2094 = vmatpush1.msra.mxu0 %v1468
    %2095 = vmatprep.subr.mxu0 %v1477
    %2096 = vmatpush1.msra.mxu0 %v1476
    %2097 = vmatprep.subr.mxu0 %v1485
    %2098 = vmatpush1.msra.mxu0 %v1484
    %2099 = vmatprep.subr.mxu0 %v1493
    %2100 = vmatpush1.msra.mxu0 %v1492
    %2101 = vmatprep.mubr.f32.mxu0 %v473
    %2102 = vmatmul.mubr.f32.gmra.mrb[0].mxu0 %v472
    %v2103 = vpop.f32.mrb[0].mxu0
    %v2104 = vadd.f32 %v2033, %v2103
    %v2105 = vpop.f32.mrb[0].mxu0
    %v2106 = vadd.f32 %v2035, %v2105
    %2107 = vdwg.mxu0
    %2108 = vmatprep.subr.mxu0 %v479
    %2109 = vmatpush1.msra.mxu0 %v478
    %2110 = vmatprep.subr.mxu0 %v487
    %2111 = vmatpush1.msra.mxu0 %v486
    %2112 = vmatprep.subr.mxu0 %v495
    %2113 = vmatpush1.msra.mxu0 %v494
    %2114 = vmatprep.subr.mxu0 %v503
    %2115 = vmatpush1.msra.mxu0 %v502
    %2116 = vmatprep.subr.mxu0 %v511
    %2117 = vmatpush1.msra.mxu0 %v510
    %2118 = vmatprep.subr.mxu0 %v519
    %2119 = vmatpush1.msra.mxu0 %v518
    %2120 = vmatprep.subr.mxu0 %v527
    %2121 = vmatpush1.msra.mxu0 %v526
    %2122 = vmatprep.subr.mxu0 %v535
    %2123 = vmatpush1.msra.mxu0 %v534
    %2124 = vmatprep.subr.mxu0 %v543
    %2125 = vmatpush1.msra.mxu0 %v542
    %2126 = vmatprep.subr.mxu0 %v551
    %2127 = vmatpush1.msra.mxu0 %v550
    %2128 = vmatprep.subr.mxu0 %v559
    %2129 = vmatpush1.msra.mxu0 %v558
    %2130 = vmatprep.subr.mxu0 %v567
    %2131 = vmatpush1.msra.mxu0 %v566
    %2132 = vmatprep.subr.mxu0 %v575
    %2133 = vmatpush1.msra.mxu0 %v574
    %2134 = vmatprep.subr.mxu0 %v583
    %2135 = vmatpush1.msra.mxu0 %v582
    %2136 = vmatprep.subr.mxu0 %v591
    %2137 = vmatpush1.msra.mxu0 %v590
    %2138 = vmatprep.subr.mxu0 %v599
    %2139 = vmatpush1.msra.mxu0 %v598
    %2140 = vmatprep.subr.mxu0 %v607
    %2141 = vmatpush1.msra.mxu0 %v606
    %2142 = vmatprep.subr.mxu0 %v615
    %2143 = vmatpush1.msra.mxu0 %v614
    %2144 = vmatprep.subr.mxu0 %v623
    %2145 = vmatpush1.msra.mxu0 %v622
    %2146 = vmatprep.subr.mxu0 %v631
    %2147 = vmatpush1.msra.mxu0 %v630
    %2148 = vmatprep.subr.mxu0 %v639
    %2149 = vmatpush1.msra.mxu0 %v638
    %2150 = vmatprep.subr.mxu0 %v647
    %2151 = vmatpush1.msra.mxu0 %v646
    %2152 = vmatprep.subr.mxu0 %v655
    %2153 = vmatpush1.msra.mxu0 %v654
    %2154 = vmatprep.subr.mxu0 %v663
    %2155 = vmatpush1.msra.mxu0 %v662
    %2156 = vmatprep.subr.mxu0 %v671
    %2157 = vmatpush1.msra.mxu0 %v670
    %2158 = vmatprep.subr.mxu0 %v679
    %2159 = vmatpush1.msra.mxu0 %v678
    %2160 = vmatprep.subr.mxu0 %v687
    %2161 = vmatpush1.msra.mxu0 %v686
    %2162 = vmatprep.subr.mxu0 %v695
    %2163 = vmatpush1.msra.mxu0 %v694
    %2164 = vmatprep.subr.mxu0 %v703
    %2165 = vmatpush1.msra.mxu0 %v702
    %2166 = vmatprep.subr.mxu0 %v711
    %2167 = vmatpush1.msra.mxu0 %v710
    %2168 = vmatprep.subr.mxu0 %v719
    %2169 = vmatpush1.msra.mxu0 %v718
    %2170 = vmatprep.subr.mxu0 %v727
    %2171 = vmatpush1.msra.mxu0 %v726
    %2172 = vmatprep.mubr.f32.mxu0 %v467
    %2173 = vmatmul.mubr.f32.gmra.mrb[0].mxu0 %v466
    %v2174 = vpop.f32.mrb[0].mxu0
    %v2175 = vadd.f32 %v1519, %v2174
    %v2176 = vpop.f32.mrb[0].mxu0
    %v2177 = vadd.f32 %v1523, %v2176
    %2178 = vdwg.mxu0
    %2179 = vmatprep.subr.mxu0 %v735
    %2180 = vmatpush1.msra.mxu0 %v734
    %2181 = vmatprep.subr.mxu0 %v743
    %2182 = vmatpush1.msra.mxu0 %v742
    %2183 = vmatprep.subr.mxu0 %v751
    %2184 = vmatpush1.msra.mxu0 %v750
    %2185 = vmatprep.subr.mxu0 %v759
    %2186 = vmatpush1.msra.mxu0 %v758
    %2187 = vmatprep.subr.mxu0 %v767
    %2188 = vmatpush1.msra.mxu0 %v766
    %2189 = vmatprep.subr.mxu0 %v775
    %2190 = vmatpush1.msra.mxu0 %v774
    %2191 = vmatprep.subr.mxu0 %v783
    %2192 = vmatpush1.msra.mxu0 %v782
    %2193 = vmatprep.subr.mxu0 %v791
    %2194 = vmatpush1.msra.mxu0 %v790
    %2195 = vmatprep.subr.mxu0 %v799
    %2196 = vmatpush1.msra.mxu0 %v798
    %2197 = vmatprep.subr.mxu0 %v807
    %2198 = vmatpush1.msra.mxu0 %v806
    %2199 = vmatprep.subr.mxu0 %v815
    %2200 = vmatpush1.msra.mxu0 %v814
    %2201 = vmatprep.subr.mxu0 %v823
    %2202 = vmatpush1.msra.mxu0 %v822
    %2203 = vmatprep.subr.mxu0 %v831
    %2204 = vmatpush1.msra.mxu0 %v830
    %2205 = vmatprep.subr.mxu0 %v839
    %2206 = vmatpush1.msra.mxu0 %v838
    %2207 = vmatprep.subr.mxu0 %v847
    %2208 = vmatpush1.msra.mxu0 %v846
    %2209 = vmatprep.subr.mxu0 %v855
    %2210 = vmatpush1.msra.mxu0 %v854
    %2211 = vmatprep.subr.mxu0 %v863
    %2212 = vmatpush1.msra.mxu0 %v862
    %2213 = vmatprep.subr.mxu0 %v871
    %2214 = vmatpush1.msra.mxu0 %v870
    %2215 = vmatprep.subr.mxu0 %v879
    %2216 = vmatpush1.msra.mxu0 %v878
    %2217 = vmatprep.subr.mxu0 %v887
    %2218 = vmatpush1.msra.mxu0 %v886
    %2219 = vmatprep.subr.mxu0 %v895
    %2220 = vmatpush1.msra.mxu0 %v894
    %2221 = vmatprep.subr.mxu0 %v903
    %2222 = vmatpush1.msra.mxu0 %v902
    %2223 = vmatprep.subr.mxu0 %v911
    %2224 = vmatpush1.msra.mxu0 %v910
    %2225 = vmatprep.subr.mxu0 %v919
    %2226 = vmatpush1.msra.mxu0 %v918
    %2227 = vmatprep.subr.mxu0 %v927
    %2228 = vmatpush1.msra.mxu0 %v926
    %2229 = vmatprep.subr.mxu0 %v935
    %2230 = vmatpush1.msra.mxu0 %v934
    %2231 = vmatprep.subr.mxu0 %v943
    %2232 = vmatpush1.msra.mxu0 %v942
    %2233 = vmatprep.subr.mxu0 %v951
    %2234 = vmatpush1.msra.mxu0 %v950
    %2235 = vmatprep.subr.mxu0 %v959
    %2236 = vmatpush1.msra.mxu0 %v958
    %2237 = vmatprep.subr.mxu0 %v967
    %2238 = vmatpush1.msra.mxu0 %v966
    %2239 = vmatprep.subr.mxu0 %v975
    %2240 = vmatpush1.msra.mxu0 %v974
    %2241 = vmatprep.subr.mxu0 %v983
    %2242 = vmatpush1.msra.mxu0 %v982
    %2243 = vmatprep.mubr.f32.mxu0 %v469
    %2244 = vmatmul.mubr.f32.gmra.mrb[0].mxu0 %v468
    %v2245 = vpop.f32.mrb[0].mxu0
    %v2246 = vadd.f32 %v2175, %v2245
    %v2247 = vpop.f32.mrb[0].mxu0
    %v2248 = vadd.f32 %v2177, %v2247
    %2249 = vdwg.mxu0
    %2250 = vmatprep.subr.mxu0 %v991
    %2251 = vmatpush1.msra.mxu0 %v990
    %2252 = vmatprep.subr.mxu0 %v999
    %2253 = vmatpush1.msra.mxu0 %v998
    %2254 = vmatprep.subr.mxu0 %v1007
    %2255 = vmatpush1.msra.mxu0 %v1006
    %2256 = vmatprep.subr.mxu0 %v1015
    %2257 = vmatpush1.msra.mxu0 %v1014
    %2258 = vmatprep.subr.mxu0 %v1023
    %2259 = vmatpush1.msra.mxu0 %v1022
    %2260 = vmatprep.subr.mxu0 %v1031
    %2261 = vmatpush1.msra.mxu0 %v1030
    %2262 = vmatprep.subr.mxu0 %v1039
    %2263 = vmatpush1.msra.mxu0 %v1038
    %2264 = vmatprep.subr.mxu0 %v1047
    %2265 = vmatpush1.msra.mxu0 %v1046
    %2266 = vmatprep.subr.mxu0 %v1055
    %2267 = vmatpush1.msra.mxu0 %v1054
    %2268 = vmatprep.subr.mxu0 %v1063
    %2269 = vmatpush1.msra.mxu0 %v1062
    %2270 = vmatprep.subr.mxu0 %v1071
    %2271 = vmatpush1.msra.mxu0 %v1070
    %2272 = vmatprep.subr.mxu0 %v1079
    %2273 = vmatpush1.msra.mxu0 %v1078
    %2274 = vmatprep.subr.mxu0 %v1087
    %2275 = vmatpush1.msra.mxu0 %v1086
    %2276 = vmatprep.subr.mxu0 %v1095
    %2277 = vmatpush1.msra.mxu0 %v1094
    %2278 = vmatprep.subr.mxu0 %v1103
    %2279 = vmatpush1.msra.mxu0 %v1102
    %2280 = vmatprep.subr.mxu0 %v1111
    %2281 = vmatpush1.msra.mxu0 %v1110
    %2282 = vmatprep.subr.mxu0 %v1119
    %2283 = vmatpush1.msra.mxu0 %v1118
    %2284 = vmatprep.subr.mxu0 %v1127
    %2285 = vmatpush1.msra.mxu0 %v1126
    %2286 = vmatprep.subr.mxu0 %v1135
    %2287 = vmatpush1.msra.mxu0 %v1134
    %2288 = vmatprep.subr.mxu0 %v1143
    %2289 = vmatpush1.msra.mxu0 %v1142
    %2290 = vmatprep.subr.mxu0 %v1151
    %2291 = vmatpush1.msra.mxu0 %v1150
    %2292 = vmatprep.subr.mxu0 %v1159
    %2293 = vmatpush1.msra.mxu0 %v1158
    %2294 = vmatprep.subr.mxu0 %v1167
    %2295 = vmatpush1.msra.mxu0 %v1166
    %2296 = vmatprep.subr.mxu0 %v1175
    %2297 = vmatpush1.msra.mxu0 %v1174
    %2298 = vmatprep.subr.mxu0 %v1183
    %2299 = vmatpush1.msra.mxu0 %v1182
    %2300 = vmatprep.subr.mxu0 %v1191
    %2301 = vmatpush1.msra.mxu0 %v1190
    %2302 = vmatprep.subr.mxu0 %v1199
    %2303 = vmatpush1.msra.mxu0 %v1198
    %2304 = vmatprep.subr.mxu0 %v1207
    %2305 = vmatpush1.msra.mxu0 %v1206
    %2306 = vmatprep.subr.mxu0 %v1215
    %2307 = vmatpush1.msra.mxu0 %v1214
    %2308 = vmatprep.subr.mxu0 %v1223
    %2309 = vmatpush1.msra.mxu0 %v1222
    %2310 = vmatprep.subr.mxu0 %v1231
    %2311 = vmatpush1.msra.mxu0 %v1230
    %2312 = vmatprep.subr.mxu0 %v1239
    %2313 = vmatpush1.msra.mxu0 %v1238
    %2314 = vmatprep.mubr.f32.mxu0 %v471
    %2315 = vmatmul.mubr.f32.gmra.mrb[0].mxu0 %v470
    %v2316 = vpop.f32.mrb[0].mxu0
    %v2317 = vadd.f32 %v2246, %v2316
    %v2318 = vpop.f32.mrb[0].mxu0
    %v2319 = vadd.f32 %v2248, %v2318
    %2320 = vdwg.mxu0
    %2321 = vmatprep.subr.mxu0 %v1247
    %2322 = vmatpush1.msra.mxu0 %v1246
    %2323 = vmatprep.subr.mxu0 %v1255
    %2324 = vmatpush1.msra.mxu0 %v1254
    %2325 = vmatprep.subr.mxu0 %v1263
    %2326 = vmatpush1.msra.mxu0 %v1262
    %2327 = vmatprep.subr.mxu0 %v1271
    %2328 = vmatpush1.msra.mxu0 %v1270
    %2329 = vmatprep.subr.mxu0 %v1279
    %2330 = vmatpush1.msra.mxu0 %v1278
    %2331 = vmatprep.subr.mxu0 %v1287
    %2332 = vmatpush1.msra.mxu0 %v1286
    %2333 = vmatprep.subr.mxu0 %v1295
    %2334 = vmatpush1.msra.mxu0 %v1294
    %2335 = vmatprep.subr.mxu0 %v1303
    %2336 = vmatpush1.msra.mxu0 %v1302
    %2337 = vmatprep.subr.mxu0 %v1311
    %2338 = vmatpush1.msra.mxu0 %v1310
    %2339 = vmatprep.subr.mxu0 %v1319
    %2340 = vmatpush1.msra.mxu0 %v1318
    %2341 = vmatprep.subr.mxu0 %v1327
    %2342 = vmatpush1.msra.mxu0 %v1326
    %2343 = vmatprep.subr.mxu0 %v1335
    %2344 = vmatpush1.msra.mxu0 %v1334
    %2345 = vmatprep.subr.mxu0 %v1343
    %2346 = vmatpush1.msra.mxu0 %v1342
    %2347 = vmatprep.subr.mxu0 %v1351
    %2348 = vmatpush1.msra.mxu0 %v1350
    %2349 = vmatprep.subr.mxu0 %v1359
    %2350 = vmatpush1.msra.mxu0 %v1358
    %2351 = vmatprep.subr.mxu0 %v1367
    %2352 = vmatpush1.msra.mxu0 %v1366
    %2353 = vmatprep.subr.mxu0 %v1375
    %2354 = vmatpush1.msra.mxu0 %v1374
    %2355 = vmatprep.subr.mxu0 %v1383
    %2356 = vmatpush1.msra.mxu0 %v1382
    %2357 = vmatprep.subr.mxu0 %v1391
    %2358 = vmatpush1.msra.mxu0 %v1390
    %2359 = vmatprep.subr.mxu0 %v1399
    %2360 = vmatpush1.msra.mxu0 %v1398
    %2361 = vmatprep.subr.mxu0 %v1407
    %2362 = vmatpush1.msra.mxu0 %v1406
    %2363 = vmatprep.subr.mxu0 %v1415
    %2364 = vmatpush1.msra.mxu0 %v1414
    %2365 = vmatprep.subr.mxu0 %v1423
    %2366 = vmatpush1.msra.mxu0 %v1422
    %2367 = vmatprep.subr.mxu0 %v1431
    %2368 = vmatpush1.msra.mxu0 %v1430
    %2369 = vmatprep.subr.mxu0 %v1439
    %2370 = vmatpush1.msra.mxu0 %v1438
    %2371 = vmatprep.subr.mxu0 %v1447
    %2372 = vmatpush1.msra.mxu0 %v1446
    %2373 = vmatprep.subr.mxu0 %v1455
    %2374 = vmatpush1.msra.mxu0 %v1454
    %2375 = vmatprep.subr.mxu0 %v1463
    %2376 = vmatpush1.msra.mxu0 %v1462
    %2377 = vmatprep.subr.mxu0 %v1471
    %2378 = vmatpush1.msra.mxu0 %v1470
    %2379 = vmatprep.subr.mxu0 %v1479
    %2380 = vmatpush1.msra.mxu0 %v1478
    %2381 = vmatprep.subr.mxu0 %v1487
    %2382 = vmatpush1.msra.mxu0 %v1486
    %2383 = vmatprep.subr.mxu0 %v1495
    %2384 = vmatpush1.msra.mxu0 %v1494
    %2385 = vmatprep.mubr.f32.mxu0 %v473
    %2386 = vmatmul.mubr.f32.gmra.mrb[0].mxu0 %v472
    %v2387 = vpop.f32.mrb[0].mxu0
    %v2388 = vadd.f32 %v2317, %v2387
    %v2389 = vpop.f32.mrb[0].mxu0
    %v2390 = vadd.f32 %v2319, %v2389
    %2391 = vdwg.mxu0
    %2392 = vmatprep.subr.mxu0 %v481
    %2393 = vmatpush1.msra.mxu0 %v480
    %2394 = vmatprep.subr.mxu0 %v489
    %2395 = vmatpush1.msra.mxu0 %v488
    %2396 = vmatprep.subr.mxu0 %v497
    %2397 = vmatpush1.msra.mxu0 %v496
    %2398 = vmatprep.subr.mxu0 %v505
    %2399 = vmatpush1.msra.mxu0 %v504
    %2400 = vmatprep.subr.mxu0 %v513
    %2401 = vmatpush1.msra.mxu0 %v512
    %2402 = vmatprep.subr.mxu0 %v521
    %2403 = vmatpush1.msra.mxu0 %v520
    %2404 = vmatprep.subr.mxu0 %v529
    %2405 = vmatpush1.msra.mxu0 %v528
    %2406 = vmatprep.subr.mxu0 %v537
    %2407 = vmatpush1.msra.mxu0 %v536
    %2408 = vmatprep.subr.mxu0 %v545
    %2409 = vmatpush1.msra.mxu0 %v544
    %2410 = vmatprep.subr.mxu0 %v553
    %2411 = vmatpush1.msra.mxu0 %v552
    %2412 = vmatprep.subr.mxu0 %v561
    %2413 = vmatpush1.msra.mxu0 %v560
    %2414 = vmatprep.subr.mxu0 %v569
    %2415 = vmatpush1.msra.mxu0 %v568
    %2416 = vmatprep.subr.mxu0 %v577
    %2417 = vmatpush1.msra.mxu0 %v576
    %2418 = vmatprep.subr.mxu0 %v585
    %2419 = vmatpush1.msra.mxu0 %v584
    %2420 = vmatprep.subr.mxu0 %v593
    %2421 = vmatpush1.msra.mxu0 %v592
    %2422 = vmatprep.subr.mxu0 %v601
    %2423 = vmatpush1.msra.mxu0 %v600
    %2424 = vmatprep.subr.mxu0 %v609
    %2425 = vmatpush1.msra.mxu0 %v608
    %2426 = vmatprep.subr.mxu0 %v617
    %2427 = vmatpush1.msra.mxu0 %v616
    %2428 = vmatprep.subr.mxu0 %v625
    %2429 = vmatpush1.msra.mxu0 %v624
    %2430 = vmatprep.subr.mxu0 %v633
    %2431 = vmatpush1.msra.mxu0 %v632
    %2432 = vmatprep.subr.mxu0 %v641
    %2433 = vmatpush1.msra.mxu0 %v640
    %2434 = vmatprep.subr.mxu0 %v649
    %2435 = vmatpush1.msra.mxu0 %v648
    %2436 = vmatprep.subr.mxu0 %v657
    %2437 = vmatpush1.msra.mxu0 %v656
    %2438 = vmatprep.subr.mxu0 %v665
    %2439 = vmatpush1.msra.mxu0 %v664
    %2440 = vmatprep.subr.mxu0 %v673
    %2441 = vmatpush1.msra.mxu0 %v672
    %2442 = vmatprep.subr.mxu0 %v681
    %2443 = vmatpush1.msra.mxu0 %v680
    %2444 = vmatprep.subr.mxu0 %v689
    %2445 = vmatpush1.msra.mxu0 %v688
    %2446 = vmatprep.subr.mxu0 %v697
    %2447 = vmatpush1.msra.mxu0 %v696
    %2448 = vmatprep.subr.mxu0 %v705
    %2449 = vmatpush1.msra.mxu0 %v704
    %2450 = vmatprep.subr.mxu0 %v713
    %2451 = vmatpush1.msra.mxu0 %v712
    %2452 = vmatprep.subr.mxu0 %v721
    %2453 = vmatpush1.msra.mxu0 %v720
    %2454 = vmatprep.subr.mxu0 %v729
    %2455 = vmatpush1.msra.mxu0 %v728
    %2456 = vmatprep.mubr.f32.mxu0 %v467
    %2457 = vmatmul.mubr.f32.gmra.mrb[0].mxu0 %v466
    %v2458 = vpop.f32.mrb[0].mxu0
    %v2459 = vadd.f32 %v1527, %v2458
    %v2460 = vpop.f32.mrb[0].mxu0
    %v2461 = vadd.f32 %v1531, %v2460
    %2462 = vdwg.mxu0
    %2463 = vmatprep.subr.mxu0 %v737
    %2464 = vmatpush1.msra.mxu0 %v736
    %2465 = vmatprep.subr.mxu0 %v745
    %2466 = vmatpush1.msra.mxu0 %v744
    %2467 = vmatprep.subr.mxu0 %v753
    %2468 = vmatpush1.msra.mxu0 %v752
    %2469 = vmatprep.subr.mxu0 %v761
    %2470 = vmatpush1.msra.mxu0 %v760
    %2471 = vmatprep.subr.mxu0 %v769
    %2472 = vmatpush1.msra.mxu0 %v768
    %2473 = vmatprep.subr.mxu0 %v777
    %2474 = vmatpush1.msra.mxu0 %v776
    %2475 = vmatprep.subr.mxu0 %v785
    %2476 = vmatpush1.msra.mxu0 %v784
    %2477 = vmatprep.subr.mxu0 %v793
    %2478 = vmatpush1.msra.mxu0 %v792
    %2479 = vmatprep.subr.mxu0 %v801
    %2480 = vmatpush1.msra.mxu0 %v800
    %2481 = vmatprep.subr.mxu0 %v809
    %2482 = vmatpush1.msra.mxu0 %v808
    %2483 = vmatprep.subr.mxu0 %v817
    %2484 = vmatpush1.msra.mxu0 %v816
    %2485 = vmatprep.subr.mxu0 %v825
    %2486 = vmatpush1.msra.mxu0 %v824
    %2487 = vmatprep.subr.mxu0 %v833
    %2488 = vmatpush1.msra.mxu0 %v832
    %2489 = vmatprep.subr.mxu0 %v841
    %2490 = vmatpush1.msra.mxu0 %v840
    %2491 = vmatprep.subr.mxu0 %v849
    %2492 = vmatpush1.msra.mxu0 %v848
    %2493 = vmatprep.subr.mxu0 %v857
    %2494 = vmatpush1.msra.mxu0 %v856
    %2495 = vmatprep.subr.mxu0 %v865
    %2496 = vmatpush1.msra.mxu0 %v864
    %2497 = vmatprep.subr.mxu0 %v873
    %2498 = vmatpush1.msra.mxu0 %v872
    %2499 = vmatprep.subr.mxu0 %v881
    %2500 = vmatpush1.msra.mxu0 %v880
    %2501 = vmatprep.subr.mxu0 %v889
    %2502 = vmatpush1.msra.mxu0 %v888
    %2503 = vmatprep.subr.mxu0 %v897
    %2504 = vmatpush1.msra.mxu0 %v896
    %2505 = vmatprep.subr.mxu0 %v905
    %2506 = vmatpush1.msra.mxu0 %v904
    %2507 = vmatprep.subr.mxu0 %v913
    %2508 = vmatpush1.msra.mxu0 %v912
    %2509 = vmatprep.subr.mxu0 %v921
    %2510 = vmatpush1.msra.mxu0 %v920
    %2511 = vmatprep.subr.mxu0 %v929
    %2512 = vmatpush1.msra.mxu0 %v928
    %2513 = vmatprep.subr.mxu0 %v937
    %2514 = vmatpush1.msra.mxu0 %v936
    %2515 = vmatprep.subr.mxu0 %v945
    %2516 = vmatpush1.msra.mxu0 %v944
    %2517 = vmatprep.subr.mxu0 %v953
    %2518 = vmatpush1.msra.mxu0 %v952
    %2519 = vmatprep.subr.mxu0 %v961
    %2520 = vmatpush1.msra.mxu0 %v960
    %2521 = vmatprep.subr.mxu0 %v969
    %2522 = vmatpush1.msra.mxu0 %v968
    %2523 = vmatprep.subr.mxu0 %v977
    %2524 = vmatpush1.msra.mxu0 %v976
    %2525 = vmatprep.subr.mxu0 %v985
    %2526 = vmatpush1.msra.mxu0 %v984
    %2527 = vmatprep.mubr.f32.mxu0 %v469
    %2528 = vmatmul.mubr.f32.gmra.mrb[0].mxu0 %v468
    %v2529 = vpop.f32.mrb[0].mxu0
    %v2530 = vadd.f32 %v2459, %v2529
    %v2531 = vpop.f32.mrb[0].mxu0
    %v2532 = vadd.f32 %v2461, %v2531
    %2533 = vdwg.mxu0
    %2534 = vmatprep.subr.mxu0 %v993
    %2535 = vmatpush1.msra.mxu0 %v992
    %2536 = vmatprep.subr.mxu0 %v1001
    %2537 = vmatpush1.msra.mxu0 %v1000
    %2538 = vmatprep.subr.mxu0 %v1009
    %2539 = vmatpush1.msra.mxu0 %v1008
    %2540 = vmatprep.subr.mxu0 %v1017
    %2541 = vmatpush1.msra.mxu0 %v1016
    %2542 = vmatprep.subr.mxu0 %v1025
    %2543 = vmatpush1.msra.mxu0 %v1024
    %2544 = vmatprep.subr.mxu0 %v1033
    %2545 = vmatpush1.msra.mxu0 %v1032
    %2546 = vmatprep.subr.mxu0 %v1041
    %2547 = vmatpush1.msra.mxu0 %v1040
    %2548 = vmatprep.subr.mxu0 %v1049
    %2549 = vmatpush1.msra.mxu0 %v1048
    %2550 = vmatprep.subr.mxu0 %v1057
    %2551 = vmatpush1.msra.mxu0 %v1056
    %2552 = vmatprep.subr.mxu0 %v1065
    %2553 = vmatpush1.msra.mxu0 %v1064
    %2554 = vmatprep.subr.mxu0 %v1073
    %2555 = vmatpush1.msra.mxu0 %v1072
    %2556 = vmatprep.subr.mxu0 %v1081
    %2557 = vmatpush1.msra.mxu0 %v1080
    %2558 = vmatprep.subr.mxu0 %v1089
    %2559 = vmatpush1.msra.mxu0 %v1088
    %2560 = vmatprep.subr.mxu0 %v1097
    %2561 = vmatpush1.msra.mxu0 %v1096
    %2562 = vmatprep.subr.mxu0 %v1105
    %2563 = vmatpush1.msra.mxu0 %v1104
    %2564 = vmatprep.subr.mxu0 %v1113
    %2565 = vmatpush1.msra.mxu0 %v1112
    %2566 = vmatprep.subr.mxu0 %v1121
    %2567 = vmatpush1.msra.mxu0 %v1120
    %2568 = vmatprep.subr.mxu0 %v1129
    %2569 = vmatpush1.msra.mxu0 %v1128
    %2570 = vmatprep.subr.mxu0 %v1137
    %2571 = vmatpush1.msra.mxu0 %v1136
    %2572 = vmatprep.subr.mxu0 %v1145
    %2573 = vmatpush1.msra.mxu0 %v1144
    %2574 = vmatprep.subr.mxu0 %v1153
    %2575 = vmatpush1.msra.mxu0 %v1152
    %2576 = vmatprep.subr.mxu0 %v1161
    %2577 = vmatpush1.msra.mxu0 %v1160
    %2578 = vmatprep.subr.mxu0 %v1169
    %2579 = vmatpush1.msra.mxu0 %v1168
    %2580 = vmatprep.subr.mxu0 %v1177
    %2581 = vmatpush1.msra.mxu0 %v1176
    %2582 = vmatprep.subr.mxu0 %v1185
    %2583 = vmatpush1.msra.mxu0 %v1184
    %2584 = vmatprep.subr.mxu0 %v1193
    %2585 = vmatpush1.msra.mxu0 %v1192
    %2586 = vmatprep.subr.mxu0 %v1201
    %2587 = vmatpush1.msra.mxu0 %v1200
    %2588 = vmatprep.subr.mxu0 %v1209
    %2589 = vmatpush1.msra.mxu0 %v1208
    %2590 = vmatprep.subr.mxu0 %v1217
    %2591 = vmatpush1.msra.mxu0 %v1216
    %2592 = vmatprep.subr.mxu0 %v1225
    %2593 = vmatpush1.msra.mxu0 %v1224
    %2594 = vmatprep.subr.mxu0 %v1233
    %2595 = vmatpush1.msra.mxu0 %v1232
    %2596 = vmatprep.subr.mxu0 %v1241
    %2597 = vmatpush1.msra.mxu0 %v1240
    %2598 = vmatprep.mubr.f32.mxu0 %v471
    %2599 = vmatmul.mubr.f32.gmra.mrb[0].mxu0 %v470
    %v2600 = vpop.f32.mrb[0].mxu0
    %v2601 = vadd.f32 %v2530, %v2600
    %v2602 = vpop.f32.mrb[0].mxu0
    %v2603 = vadd.f32 %v2532, %v2602
    %2604 = vdwg.mxu0
    %2605 = vmatprep.subr.mxu0 %v1249
    %2606 = vmatpush1.msra.mxu0 %v1248
    %2607 = vmatprep.subr.mxu0 %v1257
    %2608 = vmatpush1.msra.mxu0 %v1256
    %2609 = vmatprep.subr.mxu0 %v1265
    %2610 = vmatpush1.msra.mxu0 %v1264
    %2611 = vmatprep.subr.mxu0 %v1273
    %2612 = vmatpush1.msra.mxu0 %v1272
    %2613 = vmatprep.subr.mxu0 %v1281
    %2614 = vmatpush1.msra.mxu0 %v1280
    %2615 = vmatprep.subr.mxu0 %v1289
    %2616 = vmatpush1.msra.mxu0 %v1288
    %2617 = vmatprep.subr.mxu0 %v1297
    %2618 = vmatpush1.msra.mxu0 %v1296
    %2619 = vmatprep.subr.mxu0 %v1305
    %2620 = vmatpush1.msra.mxu0 %v1304
    %2621 = vmatprep.subr.mxu0 %v1313
    %2622 = vmatpush1.msra.mxu0 %v1312
    %2623 = vmatprep.subr.mxu0 %v1321
    %2624 = vmatpush1.msra.mxu0 %v1320
    %2625 = vmatprep.subr.mxu0 %v1329
    %2626 = vmatpush1.msra.mxu0 %v1328
    %2627 = vmatprep.subr.mxu0 %v1337
    %2628 = vmatpush1.msra.mxu0 %v1336
    %2629 = vmatprep.subr.mxu0 %v1345
    %2630 = vmatpush1.msra.mxu0 %v1344
    %2631 = vmatprep.subr.mxu0 %v1353
    %2632 = vmatpush1.msra.mxu0 %v1352
    %2633 = vmatprep.subr.mxu0 %v1361
    %2634 = vmatpush1.msra.mxu0 %v1360
    %2635 = vmatprep.subr.mxu0 %v1369
    %2636 = vmatpush1.msra.mxu0 %v1368
    %2637 = vmatprep.subr.mxu0 %v1377
    %2638 = vmatpush1.msra.mxu0 %v1376
    %2639 = vmatprep.subr.mxu0 %v1385
    %2640 = vmatpush1.msra.mxu0 %v1384
    %2641 = vmatprep.subr.mxu0 %v1393
    %2642 = vmatpush1.msra.mxu0 %v1392
    %2643 = vmatprep.subr.mxu0 %v1401
    %2644 = vmatpush1.msra.mxu0 %v1400
    %2645 = vmatprep.subr.mxu0 %v1409
    %2646 = vmatpush1.msra.mxu0 %v1408
    %2647 = vmatprep.subr.mxu0 %v1417
    %2648 = vmatpush1.msra.mxu0 %v1416
    %2649 = vmatprep.subr.mxu0 %v1425
    %2650 = vmatpush1.msra.mxu0 %v1424
    %2651 = vmatprep.subr.mxu0 %v1433
    %2652 = vmatpush1.msra.mxu0 %v1432
    %2653 = vmatprep.subr.mxu0 %v1441
    %2654 = vmatpush1.msra.mxu0 %v1440
    %2655 = vmatprep.subr.mxu0 %v1449
    %2656 = vmatpush1.msra.mxu0 %v1448
    %2657 = vmatprep.subr.mxu0 %v1457
    %2658 = vmatpush1.msra.mxu0 %v1456
    %2659 = vmatprep.subr.mxu0 %v1465
    %2660 = vmatpush1.msra.mxu0 %v1464
    %2661 = vmatprep.subr.mxu0 %v1473
    %2662 = vmatpush1.msra.mxu0 %v1472
    %2663 = vmatprep.subr.mxu0 %v1481
    %2664 = vmatpush1.msra.mxu0 %v1480
    %2665 = vmatprep.subr.mxu0 %v1489
    %2666 = vmatpush1.msra.mxu0 %v1488
    %2667 = vmatprep.subr.mxu0 %v1497
    %2668 = vmatpush1.msra.mxu0 %v1496
    %2669 = vmatprep.mubr.f32.mxu0 %v473
    %2670 = vmatmul.mubr.f32.gmra.mrb[0].mxu0 %v472
    %v2671 = vpop.f32.mrb[0].mxu0
    %v2672 = vadd.f32 %v2601, %v2671
    %v2673 = vpop.f32.mrb[0].mxu0
    %v2674 = vadd.f32 %v2603, %v2673
    %2675 = vdwg.mxu0
    %v2676 = vtanh.pop %v1820
    %v2677 = vtanh.pop %v1822
    %v2678 = vtanh.pop %v2104
    %v2679 = vtanh.pop %v2106
    %v2680 = vtanh.pop %v2388
    %v2681 = vtanh.pop %v2390
    %v2682 = vtanh.pop %v2672
    %v2683 = vtanh.pop %v2674
    %v2684 = vlaneseq
    %v2685 = vand.u32 %v2684, 127
    %v2686 = vadd.s32 %v2685, 128
    %v2687 = vadd.s32 %v2685, 256
    %v2688 = vadd.s32 %v2685, 384
    %v2689 = vadd.s32 %v2685, 512
    %v2690 = vadd.s32 %v2685, 640
    %v2691 = vadd.s32 %v2685, 768
    %v2692 = vadd.s32 %v2685, 896
    %v2693 = vld [vmem:[%s0] sm:$0xff]
    %v2694 = vmul.u32 %v2693, 64
    %2695 = vset.pattern.permute.xlu0 0
    %2696 = vperm.xlu0 %2695, %v2694
    %v2697 = vpop.permute.xlu0 %2696
    %vm2698 = vcmp.ge.s32.totalorder %v2685, %v2697
    %vm2699 = vcmp.ge.s32.totalorder %v2686, %v2697
    %vm2700 = vcmp.ge.s32.totalorder %v2687, %v2697
    %vm2701 = vcmp.ge.s32.totalorder %v2688, %v2697
    %vm2702 = vcmp.ge.s32.totalorder %v2689, %v2697
    %vm2703 = vcmp.ge.s32.totalorder %v2690, %v2697
    %vm2704 = vcmp.ge.s32.totalorder %v2691, %v2697
    %vm2705 = vcmp.ge.s32.totalorder %v2692, %v2697
    %v2706 = vadd.s32 %v2694, 64
    %2707 = vset.pattern.permute.xlu0 0
    %2708 = vperm.xlu0 %2707, %v2706
    %v2709 = vpop.permute.xlu0 %2708
    %vm2710 = vcmp.lt.s32.totalorder %v2685, %v2709
    %vm2711 = vcmp.lt.s32.totalorder %v2686, %v2709
    %vm2712 = vcmp.lt.s32.totalorder %v2687, %v2709
    %vm2713 = vcmp.lt.s32.totalorder %v2688, %v2709
    %vm2714 = vcmp.lt.s32.totalorder %v2689, %v2709
    %vm2715 = vcmp.lt.s32.totalorder %v2690, %v2709
    %vm2716 = vcmp.lt.s32.totalorder %v2691, %v2709
    %vm2717 = vcmp.lt.s32.totalorder %v2692, %v2709
    %vm2718 = vmand %vm2698, %vm2710
    %vm2719 = vmand %vm2699, %vm2711
    %vm2720 = vmand %vm2700, %vm2712
    %vm2721 = vmand %vm2701, %vm2713
    %vm2722 = vmand %vm2702, %vm2714
    %vm2723 = vmand %vm2703, %vm2715
    %vm2724 = vmand %vm2704, %vm2716
    %vm2725 = vmand %vm2705, %vm2717
    %v2726 = vsel %vm2718, %v2676, 0.0
    %v2727 = vsel %vm2719, %v2677, 0.0
    %v2728 = vsel %vm2720, %v2678, 0.0
    %v2729 = vsel %vm2721, %v2679, 0.0
    %v2730 = vsel %vm2722, %v2680, 0.0
    %v2731 = vsel %vm2723, %v2681, 0.0
    %v2732 = vsel %vm2724, %v2682, 0.0
    %v2733 = vsel %vm2725, %v2683, 0.0
    %v2734 = vld [vmem:[#allocation11] sm:$0xff]
    %v2735 = vld [vmem:[#allocation11 + $0x8] sm:$0xff]
    %v2736 = vld [vmem:[#allocation11 + $0x10] sm:$0xff]
    %v2737 = vld [vmem:[#allocation11 + $0x18] sm:$0xff]
    %v2738 = vld [vmem:[#allocation11 + $0x20] sm:$0xff]
    %v2739 = vld [vmem:[#allocation11 + $0x28] sm:$0xff]
    %v2740 = vld [vmem:[#allocation11 + $0x30] sm:$0xff]
    %v2741 = vld [vmem:[#allocation11 + $0x38] sm:$0xff]
    %v2742 = vld [vmem:[#allocation11 + $0x40] sm:$0xff]
    %v2743 = vld [vmem:[#allocation11 + $0x48] sm:$0xff]
    %v2744 = vld [vmem:[#allocation11 + $0x50] sm:$0xff]
    %v2745 = vld [vmem:[#allocation11 + $0x58] sm:$0xff]
    %v2746 = vld [vmem:[#allocation11 + $0x60] sm:$0xff]
    %v2747 = vld [vmem:[#allocation11 + $0x68] sm:$0xff]
    %v2748 = vld [vmem:[#allocation11 + $0x70] sm:$0xff]
    %v2749 = vld [vmem:[#allocation11 + $0x78] sm:$0xff]
    %v2750 = vld [vmem:[#allocation11 + $0x80] sm:$0xff]
    %v2751 = vld [vmem:[#allocation11 + $0x88] sm:$0xff]
    %v2752 = vld [vmem:[#allocation11 + $0x90] sm:$0xff]
    %v2753 = vld [vmem:[#allocation11 + $0x98] sm:$0xff]
    %v2754 = vld [vmem:[#allocation11 + $0xa0] sm:$0xff]
    %v2755 = vld [vmem:[#allocation11 + $0xa8] sm:$0xff]
    %v2756 = vld [vmem:[#allocation11 + $0xb0] sm:$0xff]
    %v2757 = vld [vmem:[#allocation11 + $0xb8] sm:$0xff]
    %v2758 = vld [vmem:[#allocation11 + $0xc0] sm:$0xff]
    %v2759 = vld [vmem:[#allocation11 + $0xc8] sm:$0xff]
    %v2760 = vld [vmem:[#allocation11 + $0xd0] sm:$0xff]
    %v2761 = vld [vmem:[#allocation11 + $0xd8] sm:$0xff]
    %v2762 = vld [vmem:[#allocation11 + $0xe0] sm:$0xff]
    %v2763 = vld [vmem:[#allocation11 + $0xe8] sm:$0xff]
    %v2764 = vld [vmem:[#allocation11 + $0xf0] sm:$0xff]
    %v2765 = vld [vmem:[#allocation11 + $0xf8] sm:$0xff]
    %v2766 = vld [vmem:[#allocation11 + $0x100] sm:$0xff]
    %v2767 = vld [vmem:[#allocation11 + $0x108] sm:$0xff]
    %v2768 = vld [vmem:[#allocation11 + $0x110] sm:$0xff]
    %v2769 = vld [vmem:[#allocation11 + $0x118] sm:$0xff]
    %v2770 = vld [vmem:[#allocation11 + $0x120] sm:$0xff]
    %v2771 = vld [vmem:[#allocation11 + $0x128] sm:$0xff]
    %v2772 = vld [vmem:[#allocation11 + $0x130] sm:$0xff]
    %v2773 = vld [vmem:[#allocation11 + $0x138] sm:$0xff]
    %v2774 = vld [vmem:[#allocation11 + $0x140] sm:$0xff]
    %v2775 = vld [vmem:[#allocation11 + $0x148] sm:$0xff]
    %v2776 = vld [vmem:[#allocation11 + $0x150] sm:$0xff]
    %v2777 = vld [vmem:[#allocation11 + $0x158] sm:$0xff]
    %v2778 = vld [vmem:[#allocation11 + $0x160] sm:$0xff]
    %v2779 = vld [vmem:[#allocation11 + $0x168] sm:$0xff]
    %v2780 = vld [vmem:[#allocation11 + $0x170] sm:$0xff]
    %v2781 = vld [vmem:[#allocation11 + $0x178] sm:$0xff]
    %v2782 = vld [vmem:[#allocation11 + $0x180] sm:$0xff]
    %v2783 = vld [vmem:[#allocation11 + $0x188] sm:$0xff]
    %v2784 = vld [vmem:[#allocation11 + $0x190] sm:$0xff]
    %v2785 = vld [vmem:[#allocation11 + $0x198] sm:$0xff]
    %v2786 = vld [vmem:[#allocation11 + $0x1a0] sm:$0xff]
    %v2787 = vld [vmem:[#allocation11 + $0x1a8] sm:$0xff]
    %v2788 = vld [vmem:[#allocation11 + $0x1b0] sm:$0xff]
    %v2789 = vld [vmem:[#allocation11 + $0x1b8] sm:$0xff]
    %v2790 = vld [vmem:[#allocation11 + $0x1c0] sm:$0xff]
    %v2791 = vld [vmem:[#allocation11 + $0x1c8] sm:$0xff]
    %v2792 = vld [vmem:[#allocation11 + $0x1d0] sm:$0xff]
    %v2793 = vld [vmem:[#allocation11 + $0x1d8] sm:$0xff]
    %v2794 = vld [vmem:[#allocation11 + $0x1e0] sm:$0xff]
    %v2795 = vld [vmem:[#allocation11 + $0x1e8] sm:$0xff]
    %v2796 = vld [vmem:[#allocation11 + $0x1f0] sm:$0xff]
    %v2797 = vld [vmem:[#allocation11 + $0x1f8] sm:$0xff]
    %v2798 = vld [vmem:[#allocation11 + $0x200] sm:$0xff]
    %v2799 = vld [vmem:[#allocation11 + $0x208] sm:$0xff]
    %v2800 = vld [vmem:[#allocation11 + $0x210] sm:$0xff]
    %v2801 = vld [vmem:[#allocation11 + $0x218] sm:$0xff]
    %v2802 = vld [vmem:[#allocation11 + $0x220] sm:$0xff]
    %v2803 = vld [vmem:[#allocation11 + $0x228] sm:$0xff]
    %v2804 = vld [vmem:[#allocation11 + $0x230] sm:$0xff]
    %v2805 = vld [vmem:[#allocation11 + $0x238] sm:$0xff]
    %v2806 = vld [vmem:[#allocation11 + $0x240] sm:$0xff]
    %v2807 = vld [vmem:[#allocation11 + $0x248] sm:$0xff]
    %v2808 = vld [vmem:[#allocation11 + $0x250] sm:$0xff]
    %v2809 = vld [vmem:[#allocation11 + $0x258] sm:$0xff]
    %v2810 = vld [vmem:[#allocation11 + $0x260] sm:$0xff]
    %v2811 = vld [vmem:[#allocation11 + $0x268] sm:$0xff]
    %v2812 = vld [vmem:[#allocation11 + $0x270] sm:$0xff]
    %v2813 = vld [vmem:[#allocation11 + $0x278] sm:$0xff]
    %v2814 = vld [vmem:[#allocation11 + $0x280] sm:$0xff]
    %v2815 = vld [vmem:[#allocation11 + $0x288] sm:$0xff]
    %v2816 = vld [vmem:[#allocation11 + $0x290] sm:$0xff]
    %v2817 = vld [vmem:[#allocation11 + $0x298] sm:$0xff]
    %v2818 = vld [vmem:[#allocation11 + $0x2a0] sm:$0xff]
    %v2819 = vld [vmem:[#allocation11 + $0x2a8] sm:$0xff]
    %v2820 = vld [vmem:[#allocation11 + $0x2b0] sm:$0xff]
    %v2821 = vld [vmem:[#allocation11 + $0x2b8] sm:$0xff]
    %v2822 = vld [vmem:[#allocation11 + $0x2c0] sm:$0xff]
    %v2823 = vld [vmem:[#allocation11 + $0x2c8] sm:$0xff]
    %v2824 = vld [vmem:[#allocation11 + $0x2d0] sm:$0xff]
    %v2825 = vld [vmem:[#allocation11 + $0x2d8] sm:$0xff]
    %v2826 = vld [vmem:[#allocation11 + $0x2e0] sm:$0xff]
    %v2827 = vld [vmem:[#allocation11 + $0x2e8] sm:$0xff]
    %v2828 = vld [vmem:[#allocation11 + $0x2f0] sm:$0xff]
    %v2829 = vld [vmem:[#allocation11 + $0x2f8] sm:$0xff]
    %v2830 = vld [vmem:[#allocation11 + $0x300] sm:$0xff]
    %v2831 = vld [vmem:[#allocation11 + $0x308] sm:$0xff]
    %v2832 = vld [vmem:[#allocation11 + $0x310] sm:$0xff]
    %v2833 = vld [vmem:[#allocation11 + $0x318] sm:$0xff]
    %v2834 = vld [vmem:[#allocation11 + $0x320] sm:$0xff]
    %v2835 = vld [vmem:[#allocation11 + $0x328] sm:$0xff]
    %v2836 = vld [vmem:[#allocation11 + $0x330] sm:$0xff]
    %v2837 = vld [vmem:[#allocation11 + $0x338] sm:$0xff]
    %v2838 = vld [vmem:[#allocation11 + $0x340] sm:$0xff]
    %v2839 = vld [vmem:[#allocation11 + $0x348] sm:$0xff]
    %v2840 = vld [vmem:[#allocation11 + $0x350] sm:$0xff]
    %v2841 = vld [vmem:[#allocation11 + $0x358] sm:$0xff]
    %v2842 = vld [vmem:[#allocation11 + $0x360] sm:$0xff]
    %v2843 = vld [vmem:[#allocation11 + $0x368] sm:$0xff]
    %v2844 = vld [vmem:[#allocation11 + $0x370] sm:$0xff]
    %v2845 = vld [vmem:[#allocation11 + $0x378] sm:$0xff]
    %v2846 = vld [vmem:[#allocation11 + $0x380] sm:$0xff]
    %v2847 = vld [vmem:[#allocation11 + $0x388] sm:$0xff]
    %v2848 = vld [vmem:[#allocation11 + $0x390] sm:$0xff]
    %v2849 = vld [vmem:[#allocation11 + $0x398] sm:$0xff]
    %v2850 = vld [vmem:[#allocation11 + $0x3a0] sm:$0xff]
    %v2851 = vld [vmem:[#allocation11 + $0x3a8] sm:$0xff]
    %v2852 = vld [vmem:[#allocation11 + $0x3b0] sm:$0xff]
    %v2853 = vld [vmem:[#allocation11 + $0x3b8] sm:$0xff]
    %v2854 = vld [vmem:[#allocation11 + $0x3c0] sm:$0xff]
    %v2855 = vld [vmem:[#allocation11 + $0x3c8] sm:$0xff]
    %v2856 = vld [vmem:[#allocation11 + $0x3d0] sm:$0xff]
    %v2857 = vld [vmem:[#allocation11 + $0x3d8] sm:$0xff]
    %v2858 = vld [vmem:[#allocation11 + $0x3e0] sm:$0xff]
    %v2859 = vld [vmem:[#allocation11 + $0x3e8] sm:$0xff]
    %v2860 = vld [vmem:[#allocation11 + $0x3f0] sm:$0xff]
    %v2861 = vld [vmem:[#allocation11 + $0x3f8] sm:$0xff]
    %2862 = vmatprep.subr.mxu0 0.0
    %2863 = vmatpush1.msra.mxu0 %v2734
    %2864 = vmatprep.subr.mxu0 0.0
    %2865 = vmatpush1.msra.mxu0 %v2735
    %2866 = vmatprep.subr.mxu0 0.0
    %2867 = vmatpush1.msra.mxu0 %v2736
    %2868 = vmatprep.subr.mxu0 0.0
    %2869 = vmatpush1.msra.mxu0 %v2737
    %2870 = vmatprep.subr.mxu0 0.0
    %2871 = vmatpush1.msra.mxu0 %v2738
    %2872 = vmatprep.subr.mxu0 0.0
    %2873 = vmatpush1.msra.mxu0 %v2739
    %2874 = vmatprep.subr.mxu0 0.0
    %2875 = vmatpush1.msra.mxu0 %v2740
    %2876 = vmatprep.subr.mxu0 0.0
    %2877 = vmatpush1.msra.mxu0 %v2741
    %2878 = vmatprep.subr.mxu0 0.0
    %2879 = vmatpush1.msra.mxu0 %v2742
    %2880 = vmatprep.subr.mxu0 0.0
    %2881 = vmatpush1.msra.mxu0 %v2743
    %2882 = vmatprep.subr.mxu0 0.0
    %2883 = vmatpush1.msra.mxu0 %v2744
    %2884 = vmatprep.subr.mxu0 0.0
    %2885 = vmatpush1.msra.mxu0 %v2745
    %2886 = vmatprep.subr.mxu0 0.0
    %2887 = vmatpush1.msra.mxu0 %v2746
    %2888 = vmatprep.subr.mxu0 0.0
    %2889 = vmatpush1.msra.mxu0 %v2747
    %2890 = vmatprep.subr.mxu0 0.0
    %2891 = vmatpush1.msra.mxu0 %v2748
    %2892 = vmatprep.subr.mxu0 0.0
    %2893 = vmatpush1.msra.mxu0 %v2749
    %2894 = vmatprep.subr.mxu0 0.0
    %2895 = vmatpush1.msra.mxu0 %v2750
    %2896 = vmatprep.subr.mxu0 0.0
    %2897 = vmatpush1.msra.mxu0 %v2751
    %2898 = vmatprep.subr.mxu0 0.0
    %2899 = vmatpush1.msra.mxu0 %v2752
    %2900 = vmatprep.subr.mxu0 0.0
    %2901 = vmatpush1.msra.mxu0 %v2753
    %2902 = vmatprep.subr.mxu0 0.0
    %2903 = vmatpush1.msra.mxu0 %v2754
    %2904 = vmatprep.subr.mxu0 0.0
    %2905 = vmatpush1.msra.mxu0 %v2755
    %2906 = vmatprep.subr.mxu0 0.0
    %2907 = vmatpush1.msra.mxu0 %v2756
    %2908 = vmatprep.subr.mxu0 0.0
    %2909 = vmatpush1.msra.mxu0 %v2757
    %2910 = vmatprep.subr.mxu0 0.0
    %2911 = vmatpush1.msra.mxu0 %v2758
    %2912 = vmatprep.subr.mxu0 0.0
    %2913 = vmatpush1.msra.mxu0 %v2759
    %2914 = vmatprep.subr.mxu0 0.0
    %2915 = vmatpush1.msra.mxu0 %v2760
    %2916 = vmatprep.subr.mxu0 0.0
    %2917 = vmatpush1.msra.mxu0 %v2761
    %2918 = vmatprep.subr.mxu0 0.0
    %2919 = vmatpush1.msra.mxu0 %v2762
    %2920 = vmatprep.subr.mxu0 0.0
    %2921 = vmatpush1.msra.mxu0 %v2763
    %2922 = vmatprep.subr.mxu0 0.0
    %2923 = vmatpush1.msra.mxu0 %v2764
    %2924 = vmatprep.subr.mxu0 0.0
    %2925 = vmatpush1.msra.mxu0 %v2765
    %2926 = vmatprep.mubr.f32.mxu0 %v2727
    %2927 = vmatmul.mubr.f32.gmra.mrb[0].mxu0 %v2726
    %v2928 = vpop.f32.mrb[0].mxu0
    %v2929 = vadd.f32 0.0, %v2928
    %v2930 = vpop.f32.mrb[0].mxu0
    %2931 = vdwg.mxu0
    %2932 = vmatprep.subr.mxu0 0.0
    %2933 = vmatpush1.msra.mxu0 %v2766
    %2934 = vmatprep.subr.mxu0 0.0
    %2935 = vmatpush1.msra.mxu0 %v2767
    %2936 = vmatprep.subr.mxu0 0.0
    %2937 = vmatpush1.msra.mxu0 %v2768
    %2938 = vmatprep.subr.mxu0 0.0
    %2939 = vmatpush1.msra.mxu0 %v2769
    %2940 = vmatprep.subr.mxu0 0.0
    %2941 = vmatpush1.msra.mxu0 %v2770
    %2942 = vmatprep.subr.mxu0 0.0
    %2943 = vmatpush1.msra.mxu0 %v2771
    %2944 = vmatprep.subr.mxu0 0.0
    %2945 = vmatpush1.msra.mxu0 %v2772
    %2946 = vmatprep.subr.mxu0 0.0
    %2947 = vmatpush1.msra.mxu0 %v2773
    %2948 = vmatprep.subr.mxu0 0.0
    %2949 = vmatpush1.msra.mxu0 %v2774
    %2950 = vmatprep.subr.mxu0 0.0
    %2951 = vmatpush1.msra.mxu0 %v2775
    %2952 = vmatprep.subr.mxu0 0.0
    %2953 = vmatpush1.msra.mxu0 %v2776
    %2954 = vmatprep.subr.mxu0 0.0
    %2955 = vmatpush1.msra.mxu0 %v2777
    %2956 = vmatprep.subr.mxu0 0.0
    %2957 = vmatpush1.msra.mxu0 %v2778
    %2958 = vmatprep.subr.mxu0 0.0
    %2959 = vmatpush1.msra.mxu0 %v2779
    %2960 = vmatprep.subr.mxu0 0.0
    %2961 = vmatpush1.msra.mxu0 %v2780
    %2962 = vmatprep.subr.mxu0 0.0
    %2963 = vmatpush1.msra.mxu0 %v2781
    %2964 = vmatprep.subr.mxu0 0.0
    %2965 = vmatpush1.msra.mxu0 %v2782
    %2966 = vmatprep.subr.mxu0 0.0
    %2967 = vmatpush1.msra.mxu0 %v2783
    %2968 = vmatprep.subr.mxu0 0.0
    %2969 = vmatpush1.msra.mxu0 %v2784
    %2970 = vmatprep.subr.mxu0 0.0
    %2971 = vmatpush1.msra.mxu0 %v2785
    %2972 = vmatprep.subr.mxu0 0.0
    %2973 = vmatpush1.msra.mxu0 %v2786
    %2974 = vmatprep.subr.mxu0 0.0
    %2975 = vmatpush1.msra.mxu0 %v2787
    %2976 = vmatprep.subr.mxu0 0.0
    %2977 = vmatpush1.msra.mxu0 %v2788
    %2978 = vmatprep.subr.mxu0 0.0
    %2979 = vmatpush1.msra.mxu0 %v2789
    %2980 = vmatprep.subr.mxu0 0.0
    %2981 = vmatpush1.msra.mxu0 %v2790
    %2982 = vmatprep.subr.mxu0 0.0
    %2983 = vmatpush1.msra.mxu0 %v2791
    %2984 = vmatprep.subr.mxu0 0.0
    %2985 = vmatpush1.msra.mxu0 %v2792
    %2986 = vmatprep.subr.mxu0 0.0
    %2987 = vmatpush1.msra.mxu0 %v2793
    %2988 = vmatprep.subr.mxu0 0.0
    %2989 = vmatpush1.msra.mxu0 %v2794
    %2990 = vmatprep.subr.mxu0 0.0
    %2991 = vmatpush1.msra.mxu0 %v2795
    %2992 = vmatprep.subr.mxu0 0.0
    %2993 = vmatpush1.msra.mxu0 %v2796
    %2994 = vmatprep.subr.mxu0 0.0
    %2995 = vmatpush1.msra.mxu0 %v2797
    %2996 = vmatprep.mubr.f32.mxu0 %v2729
    %2997 = vmatmul.mubr.f32.gmra.mrb[0].mxu0 %v2728
    %v2998 = vpop.f32.mrb[0].mxu0
    %v2999 = vadd.f32 %v2929, %v2998
    %v3000 = vpop.f32.mrb[0].mxu0
    %3001 = vdwg.mxu0
    %3002 = vmatprep.subr.mxu0 0.0
    %3003 = vmatpush1.msra.mxu0 %v2798
    %3004 = vmatprep.subr.mxu0 0.0
    %3005 = vmatpush1.msra.mxu0 %v2799
    %3006 = vmatprep.subr.mxu0 0.0
    %3007 = vmatpush1.msra.mxu0 %v2800
    %3008 = vmatprep.subr.mxu0 0.0
    %3009 = vmatpush1.msra.mxu0 %v2801
    %3010 = vmatprep.subr.mxu0 0.0
    %3011 = vmatpush1.msra.mxu0 %v2802
    %3012 = vmatprep.subr.mxu0 0.0
    %3013 = vmatpush1.msra.mxu0 %v2803
    %3014 = vmatprep.subr.mxu0 0.0
    %3015 = vmatpush1.msra.mxu0 %v2804
    %3016 = vmatprep.subr.mxu0 0.0
    %3017 = vmatpush1.msra.mxu0 %v2805
    %3018 = vmatprep.subr.mxu0 0.0
    %3019 = vmatpush1.msra.mxu0 %v2806
    %3020 = vmatprep.subr.mxu0 0.0
    %3021 = vmatpush1.msra.mxu0 %v2807
    %3022 = vmatprep.subr.mxu0 0.0
    %3023 = vmatpush1.msra.mxu0 %v2808
    %3024 = vmatprep.subr.mxu0 0.0
    %3025 = vmatpush1.msra.mxu0 %v2809
    %3026 = vmatprep.subr.mxu0 0.0
    %3027 = vmatpush1.msra.mxu0 %v2810
    %3028 = vmatprep.subr.mxu0 0.0
    %3029 = vmatpush1.msra.mxu0 %v2811
    %3030 = vmatprep.subr.mxu0 0.0
    %3031 = vmatpush1.msra.mxu0 %v2812
    %3032 = vmatprep.subr.mxu0 0.0
    %3033 = vmatpush1.msra.mxu0 %v2813
    %3034 = vmatprep.subr.mxu0 0.0
    %3035 = vmatpush1.msra.mxu0 %v2814
    %3036 = vmatprep.subr.mxu0 0.0
    %3037 = vmatpush1.msra.mxu0 %v2815
    %3038 = vmatprep.subr.mxu0 0.0
    %3039 = vmatpush1.msra.mxu0 %v2816
    %3040 = vmatprep.subr.mxu0 0.0
    %3041 = vmatpush1.msra.mxu0 %v2817
    %3042 = vmatprep.subr.mxu0 0.0
    %3043 = vmatpush1.msra.mxu0 %v2818
    %3044 = vmatprep.subr.mxu0 0.0
    %3045 = vmatpush1.msra.mxu0 %v2819
    %3046 = vmatprep.subr.mxu0 0.0
    %3047 = vmatpush1.msra.mxu0 %v2820
    %3048 = vmatprep.subr.mxu0 0.0
    %3049 = vmatpush1.msra.mxu0 %v2821
    %3050 = vmatprep.subr.mxu0 0.0
    %3051 = vmatpush1.msra.mxu0 %v2822
    %3052 = vmatprep.subr.mxu0 0.0
    %3053 = vmatpush1.msra.mxu0 %v2823
    %3054 = vmatprep.subr.mxu0 0.0
    %3055 = vmatpush1.msra.mxu0 %v2824
    %3056 = vmatprep.subr.mxu0 0.0
    %3057 = vmatpush1.msra.mxu0 %v2825
    %3058 = vmatprep.subr.mxu0 0.0
    %3059 = vmatpush1.msra.mxu0 %v2826
    %3060 = vmatprep.subr.mxu0 0.0
    %3061 = vmatpush1.msra.mxu0 %v2827
    %3062 = vmatprep.subr.mxu0 0.0
    %3063 = vmatpush1.msra.mxu0 %v2828
    %3064 = vmatprep.subr.mxu0 0.0
    %3065 = vmatpush1.msra.mxu0 %v2829
    %3066 = vmatprep.mubr.f32.mxu0 %v2731
    %3067 = vmatmul.mubr.f32.gmra.mrb[0].mxu0 %v2730
    %v3068 = vpop.f32.mrb[0].mxu0
    %v3069 = vadd.f32 %v2999, %v3068
    %v3070 = vpop.f32.mrb[0].mxu0
    %3071 = vdwg.mxu0
    %3072 = vmatprep.subr.mxu0 0.0
    %3073 = vmatpush1.msra.mxu0 %v2830
    %3074 = vmatprep.subr.mxu0 0.0
    %3075 = vmatpush1.msra.mxu0 %v2831
    %3076 = vmatprep.subr.mxu0 0.0
    %3077 = vmatpush1.msra.mxu0 %v2832
    %3078 = vmatprep.subr.mxu0 0.0
    %3079 = vmatpush1.msra.mxu0 %v2833
    %3080 = vmatprep.subr.mxu0 0.0
    %3081 = vmatpush1.msra.mxu0 %v2834
    %3082 = vmatprep.subr.mxu0 0.0
    %3083 = vmatpush1.msra.mxu0 %v2835
    %3084 = vmatprep.subr.mxu0 0.0
    %3085 = vmatpush1.msra.mxu0 %v2836
    %3086 = vmatprep.subr.mxu0 0.0
    %3087 = vmatpush1.msra.mxu0 %v2837
    %3088 = vmatprep.subr.mxu0 0.0
    %3089 = vmatpush1.msra.mxu0 %v2838
    %3090 = vmatprep.subr.mxu0 0.0
    %3091 = vmatpush1.msra.mxu0 %v2839
    %3092 = vmatprep.subr.mxu0 0.0
    %3093 = vmatpush1.msra.mxu0 %v2840
    %3094 = vmatprep.subr.mxu0 0.0
    %3095 = vmatpush1.msra.mxu0 %v2841
    %3096 = vmatprep.subr.mxu0 0.0
    %3097 = vmatpush1.msra.mxu0 %v2842
    %3098 = vmatprep.subr.mxu0 0.0
    %3099 = vmatpush1.msra.mxu0 %v2843
    %3100 = vmatprep.subr.mxu0 0.0
    %3101 = vmatpush1.msra.mxu0 %v2844
    %3102 = vmatprep.subr.mxu0 0.0
    %3103 = vmatpush1.msra.mxu0 %v2845
    %3104 = vmatprep.subr.mxu0 0.0
    %3105 = vmatpush1.msra.mxu0 %v2846
    %3106 = vmatprep.subr.mxu0 0.0
    %3107 = vmatpush1.msra.mxu0 %v2847
    %3108 = vmatprep.subr.mxu0 0.0
    %3109 = vmatpush1.msra.mxu0 %v2848
    %3110 = vmatprep.subr.mxu0 0.0
    %3111 = vmatpush1.msra.mxu0 %v2849
    %3112 = vmatprep.subr.mxu0 0.0
    %3113 = vmatpush1.msra.mxu0 %v2850
    %3114 = vmatprep.subr.mxu0 0.0
    %3115 = vmatpush1.msra.mxu0 %v2851
    %3116 = vmatprep.subr.mxu0 0.0
    %3117 = vmatpush1.msra.mxu0 %v2852
    %3118 = vmatprep.subr.mxu0 0.0
    %3119 = vmatpush1.msra.mxu0 %v2853
    %3120 = vmatprep.subr.mxu0 0.0
    %3121 = vmatpush1.msra.mxu0 %v2854
    %3122 = vmatprep.subr.mxu0 0.0
    %3123 = vmatpush1.msra.mxu0 %v2855
    %3124 = vmatprep.subr.mxu0 0.0
    %3125 = vmatpush1.msra.mxu0 %v2856
    %3126 = vmatprep.subr.mxu0 0.0
    %3127 = vmatpush1.msra.mxu0 %v2857
    %3128 = vmatprep.subr.mxu0 0.0
    %3129 = vmatpush1.msra.mxu0 %v2858
    %3130 = vmatprep.subr.mxu0 0.0
    %3131 = vmatpush1.msra.mxu0 %v2859
    %3132 = vmatprep.subr.mxu0 0.0
    %3133 = vmatpush1.msra.mxu0 %v2860
    %3134 = vmatprep.subr.mxu0 0.0
    %3135 = vmatpush1.msra.mxu0 %v2861
    %3136 = vmatprep.mubr.f32.mxu0 %v2733
    %3137 = vmatmul.mubr.f32.gmra.mrb[0].mxu0 %v2732
    %v3138 = vpop.f32.mrb[0].mxu0
    %v3139 = vadd.f32 %v3069, %v3138
    %v3140 = vpop.f32.mrb[0].mxu0
    %3141 = vdwg.mxu0
    %3142 = vst [vmem:[#allocation13] sm:$0xff] %v3139
    // Predicated region
    $region54: #{tpu_custom_call.1} parent=1 // pred_check
      _
    $region55: #{tpu_custom_call.1} parent=1 // pred_check_branch
      %3144 = sbr.rel (0) target = $region57
    $region56: #{tpu_custom_call.1} parent=1 // pred_region
      %s3146 = ssub.s32 128, 128
      %3147 = vsyncadd [#allocation4], %s3146
      %s3149 = sshll.u32 [#allocation13], 4
      %s3150 = int_to_ptr.vmem [resolvable:$true] %s3149
      %3152 = dma.vmem_to_hbm [thread:$0]  %s3150, 128, %s7, [#allocation4]
    $region57: #{tpu_custom_call.1} parent=1 // pred_fallthru
      _
    // Predicated region
    $region58: #{tpu_custom_call.1} parent=1 // pred_check
      _
    $region59: #{tpu_custom_call.1} parent=1 // pred_check_branch
      %3154 = sbr.rel (0) target = $region61
    $region60: #{tpu_custom_call.1} parent=1 // pred_region
      %3155 = dma.done [#allocation4], 128
    $region61: #{tpu_custom_call.1} parent=1 // pred_fallthru
      _
    %3156 = vsyncpa [#allocation3], 1
    %3157 = vsyncpa [#allocation6], 1
    %3158 = vsyncpa [#allocation9], 1
    %3159 = vsyncpa [#allocation12], 1
    %3160 = vsyncpa [#allocation4], 1

</llo_original>
